<compile_context>
chip_gen: v7x
topology: tpu7x:2x2x1
jax: 0.10.0
libtpu: 0.0.40
codegen_flags: <defaults>
</compile_context>

<pallas_src>
import math

import jax
import jax.numpy as jnp
from jax.experimental import pallas as pl

# ---------------- config (small, consistent with the forward pass) ----------------
BATCH = 2
SEQ = 8
HIDDEN = 32
N_HEADS = 2
HEAD_DIM = HIDDEN // N_HEADS
INTERMEDIATE = 64
N_LAYERS = 2
VOCAB = 128
N_CLASSES = 3
LN_EPS = 1e-12
LANE = 128          # lane-dense padded width
IPAD = LANE         # FFN intermediate padded 64 -> 128 lanes

# ---------------- packed-slab row offsets (all multiples of 8) ----------------
# WH slab: all 32-column matrices stacked on rows.
WORD_OFF = 0                              # word embedding table     (VOCAB rows)
POS_OFF = VOCAB                           # pos (+folded type) table (SEQ rows)
_WH_L0 = POS_OFF + SEQ
_WH_STRIDE = HIDDEN + IPAD                # per layer: wo (H rows) + w2_pad (IPAD rows)


def _wo_off(l):
    return _WH_L0 + l * _WH_STRIDE


def _w2_off(l):
    return _wo_off(l) + HIDDEN


POOL_OFF = _WH_L0 + N_LAYERS * _WH_STRIDE  # pooler weight (H rows)

# WW slab: all 128-column matrices stacked on rows.


def _wqkv_off(l):
    return l * 2 * HIDDEN


def _w1_off(l):
    return _wqkv_off(l) + HIDDEN


WC_OFF = N_LAYERS * 2 * HIDDEN             # classifier weight (H rows)

# VEC slab: one bias / LN row per slab row (128 lanes each).
EMB_G_ROW, EMB_B_ROW = 0, 1
_VEC_L0, _VEC_STRIDE = 2, 8                # per layer: bqkv,bo,ln1g,ln1b,b1,b2,ln2g,ln2b
POOLB_ROW = _VEC_L0 + N_LAYERS * _VEC_STRIDE
BC_ROW = POOLB_ROW + 1


# ---------------- in-kernel helpers ----------------
def _layernorm(x, gamma, beta):
    mu = jnp.mean(x, axis=-1, keepdims=True)
    var = jnp.mean((x - mu) ** 2, axis=-1, keepdims=True)
    return (x - mu) * jax.lax.rsqrt(var + LN_EPS) * gamma + beta


def _gelu(x):
    # tanh-approximate GELU (BERT "gelu_new")
    c = math.sqrt(2.0 / math.pi)
    return 0.5 * x * (1.0 + jnp.tanh(c * (x + 0.044715 * x * x * x)))


# -------- single fused kernel: embed -> LN -> 2 encoder layers -> pooler -> head ---
def fused_forward_kernel(tok_ref, wh_ref, ww_ref, vec_ref, probs_ref):
    B, S, H = BATCH, SEQ, HIDDEN
    M = B * S

    # Bias / LayerNorm slab loaded once (~3 vregs); rows selected from the value.
    V = vec_ref[...]                                        # (20, 128)

    def vrow(r, width=LANE):
        row = V[r:r + 1, :]                                 # (1, 128)
        return row if width == LANE else row[:, :width]

    # ---- in-kernel embedding lookup (one-hot MXU gather) + mask bias ----
    tok = tok_ref[...]                                      # (2, B, S) int32
    ids = tok[0]                                            # (B, S)
    att = tok[1].astype(jnp.float32)                        # (B, S)

    onehot = (jax.lax.broadcasted_iota(jnp.int32, (B, S, VOCAB), 2)
              == ids[:, :, None]).astype(jnp.float32)       # (B, S, VOCAB)
    emb = jnp.dot(onehot.reshape(M, VOCAB),
                  wh_ref[WORD_OFF:WORD_OFF + VOCAB, :],
                  preferred_element_type=jnp.float32)       # (M, H)
    pos = wh_ref[POS_OFF:POS_OFF + S, :]                    # (S, H), token-type folded in
    emb = (emb.reshape(B, S, H) + pos[None, :, :]).reshape(M, H)

    x = _layernorm(emb, vrow(EMB_G_ROW, H), vrow(EMB_B_ROW, H))

    # Additive attention-mask bias, broadcast ONCE (hoisted out of both loops).
    mask_b = jnp.broadcast_to(((1.0 - att) * -1e9).reshape(B, 1, S), (B, S, S))

    for l in range(N_LAYERS):                               # static unroll (2 layers)
        vb = _VEC_L0 + l * _VEC_STRIDE

        # Fused QKV projection (scale already folded into the Q block).
        qkv = jnp.dot(x, ww_ref[_wqkv_off(l):_wqkv_off(l) + H, :],
                      preferred_element_type=jnp.float32) + vrow(vb + 0)   # (M, 128)
        q = qkv[:, 0 * H:1 * H].reshape(B, S, H)
        k = qkv[:, 1 * H:2 * H].reshape(B, S, H)
        v = qkv[:, 2 * H:3 * H].reshape(B, S, H)

        # Attention: batched over B, static 2-head loop, per-head W_O accumulation
        # (no lane concatenate).
        attn = None
        for h in range(N_HEADS):
            sl = slice(h * HEAD_DIM, (h + 1) * HEAD_DIM)
            s = jnp.einsum('bqd,bkd->bqk', q[..., sl], k[..., sl],
                           preferred_element_type=jnp.float32) + mask_b   # (B, S, S)
            mx = jnp.max(s, axis=-1, keepdims=True)
            e = jnp.exp(s - mx)
            p = e * pl.reciprocal(jnp.sum(e, axis=-1, keepdims=True), approx=True)
            ctx = jnp.einsum('bqk,bkd->bqd', p, v[..., sl],
                             preferred_element_type=jnp.float32).reshape(M, HEAD_DIM)
            part = jnp.dot(
                ctx,
                wh_ref[_wo_off(l) + h * HEAD_DIM:_wo_off(l) + (h + 1) * HEAD_DIM, :],
                preferred_element_type=jnp.float32)                       # (M, H)
            attn = part if attn is None else attn + part
        attn = attn + vrow(vb + 1, H)

        h1 = _layernorm(x + attn, vrow(vb + 2, H), vrow(vb + 3, H))

        # FFN, lane-dense intermediate (padded lanes are exactly zero through GELU).
        ff = jnp.dot(h1, ww_ref[_w1_off(l):_w1_off(l) + H, :],
                     preferred_element_type=jnp.float32) + vrow(vb + 4)   # (M, 128)
        ff = _gelu(ff)
        ff = jnp.dot(ff, wh_ref[_w2_off(l):_w2_off(l) + IPAD, :],
                     preferred_element_type=jnp.float32) + vrow(vb + 5, H)  # (M, H)
        x = _layernorm(h1 + ff, vrow(vb + 6, H), vrow(vb + 7, H))

    # Pooler + classifier over ALL M rows so the store is a full unmasked (M, 128)
    # slab; the wrapper picks out the CLS rows (0::SEQ) and the 3 real classes.
    # TODO(synk): nn.Dropout(p=0.3) is identity at inference and is elided.
    pooled = jnp.tanh(jnp.dot(x, wh_ref[POOL_OFF:POOL_OFF + H, :],
                              preferred_element_type=jnp.float32)
                      + vrow(POOLB_ROW, H))                               # (M, H)
    logits = jnp.dot(pooled, ww_ref[WC_OFF:WC_OFF + H, :],
                     preferred_element_type=jnp.float32) + vrow(BC_ROW)   # (M, 128)
    # Padded class lanes carry a -1e30 bias -> exp underflows to exactly 0.
    mx = jnp.max(logits, axis=-1, keepdims=True)
    e = jnp.exp(logits - mx)
    probs_ref[...] = e * pl.reciprocal(jnp.sum(e, axis=-1, keepdims=True), approx=False)


# ---------------- deterministic parameter construction ----------------
def init_params(key):
    H, I = HIDDEN, INTERMEDIATE
    n_needed = 3 + N_LAYERS * 6 + 2
    keys = iter(jax.random.split(key, n_needed))

    def w(shape):
        return (0.02 * jax.random.normal(next(keys), shape)).astype(jnp.float32)

    params = {
        "word_emb": w((VOCAB, H)),
        "pos_emb": w((SEQ, H)),
        "type_emb": w((2, H)),
        "emb_ln_g": jnp.ones((1, H), jnp.float32),
        "emb_ln_b": jnp.zeros((1, H), jnp.float32),
        "layers": [],
        "pool_w": w((H, H)),
        "pool_b": jnp.zeros((1, H), jnp.float32),
        "out_w": w((H, N_CLASSES)),
        "out_b": jnp.zeros((1, N_CLASSES), jnp.float32),
    }
    for _ in range(N_LAYERS):
        layer = (
            w((H, H)), jnp.zeros((1, H), jnp.float32),   # wq, bq
            w((H, H)), jnp.zeros((1, H), jnp.float32),   # wk, bk
            w((H, H)), jnp.zeros((1, H), jnp.float32),   # wv, bv
            w((H, H)), jnp.zeros((1, H), jnp.float32),   # wo, bo
            jnp.ones((1, H), jnp.float32), jnp.zeros((1, H), jnp.float32),   # ln1
            w((H, I)), jnp.zeros((1, I), jnp.float32),   # w1, b1
            w((I, H)), jnp.zeros((1, H), jnp.float32),   # w2, b2
            jnp.ones((1, H), jnp.float32), jnp.zeros((1, H), jnp.float32),   # ln2
        )
        params["layers"].append(layer)
    return params


def pack_params(p):
    """Fuse QKV (+fold attn scale / token type), pad lane-dense, build 3 slabs."""
    H, I = HIDDEN, INTERMEDIATE
    scale = 1.0 / math.sqrt(HEAD_DIM)

    def pad_cols(a, width=LANE, fill=0.0):
        out = jnp.full((a.shape[0], width), fill, jnp.float32)
        return out.at[:, :a.shape[1]].set(a.astype(jnp.float32))

    wh_rows = [p["word_emb"],
               p["pos_emb"] + p["type_emb"][0][None, :]]          # token type folded
    ww_rows = []
    vec_rows = [pad_cols(p["emb_ln_g"]), pad_cols(p["emb_ln_b"])]

    for (wq, bq, wk, bk, wv, bv, wo, bo, g1, be1,
         w1, b1, w2, b2, g2, be2) in p["layers"]:
        w2_pad = jnp.zeros((IPAD, H), jnp.float32).at[:I, :].set(w2)
        wh_rows += [wo, w2_pad]
        ww_rows += [pad_cols(jnp.concatenate([wq * scale, wk, wv], axis=1)),   # wqkv
                    pad_cols(w1)]                                              # w1
        vec_rows += [pad_cols(jnp.concatenate([bq * scale, bk, bv], axis=1)),  # bqkv
                     pad_cols(bo), pad_cols(g1), pad_cols(be1),
                     pad_cols(b1), pad_cols(b2), pad_cols(g2), pad_cols(be2)]

    wh_rows.append(p["pool_w"])
    ww_rows.append(jnp.zeros((H, LANE), jnp.float32).at[:, :N_CLASSES].set(p["out_w"]))
    vec_rows += [pad_cols(p["pool_b"]),
                 jnp.full((1, LANE), -1e30, jnp.float32).at[:, :N_CLASSES].set(p["out_b"])]

    return {"wh": jnp.concatenate(wh_rows, axis=0),    # (488, 32)
            "ww": jnp.concatenate(ww_rows, axis=0),    # (160, 128)
            "vec": jnp.concatenate(vec_rows, axis=0)}  # (20, 128)


# ---------------- forward pass (== SentimentClassifier.forward, eval mode) --------
def sentiment_classifier_forward(input_ids, attention_mask, packed):
    tok = jnp.stack([input_ids, attention_mask]).astype(jnp.int32)   # (2, B, S)

    # One fused, no-grid pallas_call: 4 whole-array VMEM inputs, 1 lane-dense output.
    probs_pad = pl.pallas_call(
        fused_forward_kernel,
        out_shape=jax.ShapeDtypeStruct((BATCH * SEQ, LANE), jnp.float32),
    )(tok, packed["wh"], packed["ww"], packed["vec"])

    # CLS rows are 0::SEQ; real classes are the first 3 lanes.
    return probs_pad[0::SEQ, :N_CLASSES]


if __name__ == "__main__":
    key = jax.random.PRNGKey(0)
    k_param, k_ids = jax.random.split(key)

    params = init_params(k_param)
    packed = pack_params(params)

    input_ids = jax.random.randint(k_ids, (BATCH, SEQ), 0, VOCAB, dtype=jnp.int32)
    attention_mask = jnp.array(
        [[1] * SEQ, [1] * (SEQ - 2) + [0] * 2], dtype=jnp.int32)   # second row padded

    probs = sentiment_classifier_forward(input_ids, attention_mask, packed)
    probs = jax.block_until_ready(probs)

    assert probs.shape == (BATCH, N_CLASSES)
    assert bool(jnp.all(jnp.abs(jnp.sum(probs, axis=1) - 1.0) < 1e-4))
    print("KERNEL_OK")
</pallas_src>

<mosaic_0001>
module attributes {stable_mosaic.version = 11 : i64} {
  func.func @fused_forward_kernel(%arg0: memref<2x2x8xi32, #tpu.memory_space<vmem>>, %arg1: memref<488x32xf32, #tpu.memory_space<vmem>>, %arg2: memref<160x128xf32, #tpu.memory_space<vmem>>, %arg3: memref<20x128xf32, #tpu.memory_space<vmem>>, %arg4: memref<16x128xf32, #tpu.memory_space<vmem>>) attributes {dimension_semantics = [], scalar_prefetch = 0 : i64, scratch_operands = 0 : i64, tpu.core_type = #tpu.core_type<tc>} {
    %c0 = arith.constant 0 : index
    %c0_0 = arith.constant 0 : index
    %0 = vector.load %arg3[%c0, %c0_0] : memref<20x128xf32, #tpu.memory_space<vmem>>, vector<20x128xf32>
    %c0_1 = arith.constant 0 : index
    %c0_2 = arith.constant 0 : index
    %c0_3 = arith.constant 0 : index
    %1 = vector.load %arg0[%c0_1, %c0_2, %c0_3] : memref<2x2x8xi32, #tpu.memory_space<vmem>>, vector<2x2x8xi32>
    %2 = vector.extract_strided_slice %1 {offsets = [0, 0, 0], sizes = [1, 2, 8], strides = [1, 1, 1]} : vector<2x2x8xi32> to vector<1x2x8xi32>
    %3 = vector.shape_cast %2 : vector<1x2x8xi32> to vector<2x8xi32>
    %4 = vector.extract_strided_slice %1 {offsets = [1, 0, 0], sizes = [1, 2, 8], strides = [1, 1, 1]} : vector<2x2x8xi32> to vector<1x2x8xi32>
    %5 = vector.shape_cast %4 : vector<1x2x8xi32> to vector<2x8xi32>
    %6 = arith.sitofp %5 : vector<2x8xi32> to vector<2x8xf32>
    %7 = tpu.iota {dimensions = array<i32: 2>} : vector<2x8x128xi32>
    %8 = vector.shape_cast %3 : vector<2x8xi32> to vector<2x8x1xi32>
    %9 = vector.broadcast %8 : vector<2x8x1xi32> to vector<2x8x128xi32>
    %10 = arith.cmpi eq, %7, %9 : vector<2x8x128xi32>
    %11 = arith.extui %10 : vector<2x8x128xi1> to vector<2x8x128xi32>
    %12 = arith.sitofp %11 : vector<2x8x128xi32> to vector<2x8x128xf32>
    %13 = vector.shape_cast %12 : vector<2x8x128xf32> to vector<16x128xf32>
    %c0_4 = arith.constant 0 : index
    %c0_5 = arith.constant 0 : index
    %14 = vector.load %arg1[%c0_4, %c0_5] : memref<488x32xf32, #tpu.memory_space<vmem>>, vector<128x32xf32>
    %cst = arith.constant dense<0.000000e+00> : vector<16x32xf32>
    %15 = tpu.matmul %13, %14, %cst {dimension_numbers = #tpu.dot_dimension_numbers<[1], [0], [0], [1], [0, 0, 1, 1], [], []>} : vector<16x128xf32>, vector<128x32xf32>, vector<16x32xf32> -> vector<16x32xf32>
    %c128 = arith.constant 128 : index
    %c0_6 = arith.constant 0 : index
    %16 = vector.load %arg1[%c128, %c0_6] : memref<488x32xf32, #tpu.memory_space<vmem>>, vector<8x32xf32>
    %17 = vector.shape_cast %15 : vector<16x32xf32> to vector<2x8x32xf32>
    %18 = vector.shape_cast %16 : vector<8x32xf32> to vector<1x8x32xf32>
    %19 = vector.broadcast %18 : vector<1x8x32xf32> to vector<2x8x32xf32>
    %20 = arith.addf %17, %19 : vector<2x8x32xf32>
    %21 = vector.shape_cast %20 : vector<2x8x32xf32> to vector<16x32xf32>
    %22 = vector.extract_strided_slice %0 {offsets = [0, 0], sizes = [1, 128], strides = [1, 1]} : vector<20x128xf32> to vector<1x128xf32>
    %23 = vector.extract_strided_slice %22 {offsets = [0, 0], sizes = [1, 32], strides = [1, 1]} : vector<1x128xf32> to vector<1x32xf32>
    %24 = vector.extract_strided_slice %0 {offsets = [1, 0], sizes = [1, 128], strides = [1, 1]} : vector<20x128xf32> to vector<1x128xf32>
    %25 = vector.extract_strided_slice %24 {offsets = [0, 0], sizes = [1, 32], strides = [1, 1]} : vector<1x128xf32> to vector<1x32xf32>
    %cst_7 = arith.constant dense<0.000000e+00> : vector<16xf32>
    %26 = vector.multi_reduction <add>, %21, %cst_7 [1] : vector<16x32xf32> to vector<16xf32>
    %27 = vector.shape_cast %26 : vector<16xf32> to vector<16x1xf32>
    %cst_8 = arith.constant 3.200000e+01 : f32
    %28 = vector.broadcast %cst_8 : f32 to vector<16x1xf32>
    %29 = arith.divf %27, %28 : vector<16x1xf32>
    %30 = vector.broadcast %29 : vector<16x1xf32> to vector<16x32xf32>
    %31 = arith.subf %21, %30 : vector<16x32xf32>
    %32 = arith.mulf %31, %31 : vector<16x32xf32>
    %cst_9 = arith.constant dense<0.000000e+00> : vector<16xf32>
    %33 = vector.multi_reduction <add>, %32, %cst_9 [1] : vector<16x32xf32> to vector<16xf32>
    %34 = vector.shape_cast %33 : vector<16xf32> to vector<16x1xf32>
    %cst_10 = arith.constant 3.200000e+01 : f32
    %35 = vector.broadcast %cst_10 : f32 to vector<16x1xf32>
    %36 = arith.divf %34, %35 : vector<16x1xf32>
    %37 = vector.broadcast %29 : vector<16x1xf32> to vector<16x32xf32>
    %38 = arith.subf %21, %37 : vector<16x32xf32>
    %cst_11 = arith.constant 9.99999996E-13 : f32
    %39 = vector.broadcast %cst_11 : f32 to vector<16x1xf32>
    %40 = arith.addf %36, %39 : vector<16x1xf32>
    %41 = math.rsqrt %40 : vector<16x1xf32>
    %42 = vector.broadcast %41 : vector<16x1xf32> to vector<16x32xf32>
    %43 = arith.mulf %38, %42 : vector<16x32xf32>
    %44 = vector.broadcast %23 : vector<1x32xf32> to vector<16x32xf32>
    %45 = arith.mulf %43, %44 : vector<16x32xf32>
    %46 = vector.broadcast %25 : vector<1x32xf32> to vector<16x32xf32>
    %47 = arith.addf %45, %46 : vector<16x32xf32>
    %cst_12 = arith.constant 1.000000e+00 : f32
    %48 = vector.broadcast %cst_12 : f32 to vector<2x8xf32>
    %49 = arith.subf %48, %6 : vector<2x8xf32>
    %cst_13 = arith.constant -1.000000e+09 : f32
    %50 = vector.broadcast %cst_13 : f32 to vector<2x8xf32>
    %51 = arith.mulf %49, %50 : vector<2x8xf32>
    %52 = vector.shape_cast %51 : vector<2x8xf32> to vector<2x1x8xf32>
    %53 = vector.shape_cast %52 : vector<2x1x8xf32> to vector<2x1x8xf32>
    %54 = vector.broadcast %53 : vector<2x1x8xf32> to vector<2x8x8xf32>
    %c0_14 = arith.constant 0 : index
    %c0_15 = arith.constant 0 : index
    %55 = vector.load %arg2[%c0_14, %c0_15] : memref<160x128xf32, #tpu.memory_space<vmem>>, vector<32x128xf32>
    %cst_16 = arith.constant dense<0.000000e+00> : vector<16x128xf32>
    %56 = tpu.matmul %47, %55, %cst_16 {dimension_numbers = #tpu.dot_dimension_numbers<[1], [0], [0], [1], [0, 0, 1, 1], [], []>} : vector<16x32xf32>, vector<32x128xf32>, vector<16x128xf32> -> vector<16x128xf32>
    %57 = vector.extract_strided_slice %0 {offsets = [2, 0], sizes = [1, 128], strides = [1, 1]} : vector<20x128xf32> to vector<1x128xf32>
    %58 = vector.broadcast %57 : vector<1x128xf32> to vector<16x128xf32>
    %59 = arith.addf %56, %58 : vector<16x128xf32>
    %60 = vector.extract_strided_slice %59 {offsets = [0, 0], sizes = [16, 32], strides = [1, 1]} : vector<16x128xf32> to vector<16x32xf32>
    %61 = vector.shape_cast %60 : vector<16x32xf32> to vector<2x8x32xf32>
    %62 = vector.extract_strided_slice %59 {offsets = [0, 32], sizes = [16, 32], strides = [1, 1]} : vector<16x128xf32> to vector<16x32xf32>
    %63 = vector.shape_cast %62 : vector<16x32xf32> to vector<2x8x32xf32>
    %64 = vector.extract_strided_slice %59 {offsets = [0, 64], sizes = [16, 32], strides = [1, 1]} : vector<16x128xf32> to vector<16x32xf32>
    %65 = vector.shape_cast %64 : vector<16x32xf32> to vector<2x8x32xf32>
    %66 = vector.extract_strided_slice %61 {offsets = [0, 0, 0], sizes = [2, 8, 16], strides = [1, 1, 1]} : vector<2x8x32xf32> to vector<2x8x16xf32>
    %67 = vector.extract_strided_slice %63 {offsets = [0, 0, 0], sizes = [2, 8, 16], strides = [1, 1, 1]} : vector<2x8x32xf32> to vector<2x8x16xf32>
    "tpu.trace_start"() <{level = 10 : i32, message = "bqd,bkd->bqk"}> : () -> ()
    %cst_17 = arith.constant dense<0.000000e+00> : vector<2x8x8xf32>
    %68 = tpu.matmul %66, %67, %cst_17 {dimension_numbers = #tpu.dot_dimension_numbers<[2], [2], [1], [1], [0, 0, 0, 1, 1, 1], [0], [0]>} : vector<2x8x16xf32>, vector<2x8x16xf32>, vector<2x8x8xf32> -> vector<2x8x8xf32>
    "tpu.trace_stop"() : () -> ()
    %69 = arith.addf %68, %54 : vector<2x8x8xf32>
    %cst_18 = arith.constant dense<0xFF800000> : vector<2x8xf32>
    %70 = vector.multi_reduction <maximumf>, %69, %cst_18 [2] : vector<2x8x8xf32> to vector<2x8xf32>
    %71 = vector.shape_cast %70 : vector<2x8xf32> to vector<2x8x1xf32>
    %72 = vector.broadcast %71 : vector<2x8x1xf32> to vector<2x8x8xf32>
    %73 = arith.subf %69, %72 : vector<2x8x8xf32>
    %74 = math.exp %73 : vector<2x8x8xf32>
    %cst_19 = arith.constant dense<0.000000e+00> : vector<2x8xf32>
    %75 = vector.multi_reduction <add>, %74, %cst_19 [2] : vector<2x8x8xf32> to vector<2x8xf32>
    %76 = vector.shape_cast %75 : vector<2x8xf32> to vector<2x8x1xf32>
    %77 = tpu.reciprocal %76 {approx = true} : vector<2x8x1xf32> -> vector<2x8x1xf32>
    %78 = vector.broadcast %77 : vector<2x8x1xf32> to vector<2x8x8xf32>
    %79 = arith.mulf %74, %78 : vector<2x8x8xf32>
    %80 = vector.extract_strided_slice %65 {offsets = [0, 0, 0], sizes = [2, 8, 16], strides = [1, 1, 1]} : vector<2x8x32xf32> to vector<2x8x16xf32>
    "tpu.trace_start"() <{level = 10 : i32, message = "bqk,bkd->bqd"}> : () -> ()
    %cst_20 = arith.constant dense<0.000000e+00> : vector<2x8x16xf32>
    %81 = tpu.matmul %79, %80, %cst_20 {dimension_numbers = #tpu.dot_dimension_numbers<[2], [1], [1], [2], [0, 0, 0, 1, 1, 2], [0], [0]>} : vector<2x8x8xf32>, vector<2x8x16xf32>, vector<2x8x16xf32> -> vector<2x8x16xf32>
    "tpu.trace_stop"() : () -> ()
    %82 = vector.shape_cast %81 : vector<2x8x16xf32> to vector<16x16xf32>
    %c136 = arith.constant 136 : index
    %c0_21 = arith.constant 0 : index
    %83 = vector.load %arg1[%c136, %c0_21] : memref<488x32xf32, #tpu.memory_space<vmem>>, vector<16x32xf32>
    %cst_22 = arith.constant dense<0.000000e+00> : vector<16x32xf32>
    %84 = tpu.matmul %82, %83, %cst_22 {dimension_numbers = #tpu.dot_dimension_numbers<[1], [0], [0], [1], [0, 0, 1, 1], [], []>} : vector<16x16xf32>, vector<16x32xf32>, vector<16x32xf32> -> vector<16x32xf32>
    %85 = vector.extract_strided_slice %61 {offsets = [0, 0, 16], sizes = [2, 8, 16], strides = [1, 1, 1]} : vector<2x8x32xf32> to vector<2x8x16xf32>
    %86 = vector.extract_strided_slice %63 {offsets = [0, 0, 16], sizes = [2, 8, 16], strides = [1, 1, 1]} : vector<2x8x32xf32> to vector<2x8x16xf32>
    "tpu.trace_start"() <{level = 10 : i32, message = "bqd,bkd->bqk"}> : () -> ()
    %cst_23 = arith.constant dense<0.000000e+00> : vector<2x8x8xf32>
    %87 = tpu.matmul %85, %86, %cst_23 {dimension_numbers = #tpu.dot_dimension_numbers<[2], [2], [1], [1], [0, 0, 0, 1, 1, 1], [0], [0]>} : vector<2x8x16xf32>, vector<2x8x16xf32>, vector<2x8x8xf32> -> vector<2x8x8xf32>
    "tpu.trace_stop"() : () -> ()
    %88 = arith.addf %87, %54 : vector<2x8x8xf32>
    %cst_24 = arith.constant dense<0xFF800000> : vector<2x8xf32>
    %89 = vector.multi_reduction <maximumf>, %88, %cst_24 [2] : vector<2x8x8xf32> to vector<2x8xf32>
    %90 = vector.shape_cast %89 : vector<2x8xf32> to vector<2x8x1xf32>
    %91 = vector.broadcast %90 : vector<2x8x1xf32> to vector<2x8x8xf32>
    %92 = arith.subf %88, %91 : vector<2x8x8xf32>
    %93 = math.exp %92 : vector<2x8x8xf32>
    %cst_25 = arith.constant dense<0.000000e+00> : vector<2x8xf32>
    %94 = vector.multi_reduction <add>, %93, %cst_25 [2] : vector<2x8x8xf32> to vector<2x8xf32>
    %95 = vector.shape_cast %94 : vector<2x8xf32> to vector<2x8x1xf32>
    %96 = tpu.reciprocal %95 {approx = true} : vector<2x8x1xf32> -> vector<2x8x1xf32>
    %97 = vector.broadcast %96 : vector<2x8x1xf32> to vector<2x8x8xf32>
    %98 = arith.mulf %93, %97 : vector<2x8x8xf32>
    %99 = vector.extract_strided_slice %65 {offsets = [0, 0, 16], sizes = [2, 8, 16], strides = [1, 1, 1]} : vector<2x8x32xf32> to vector<2x8x16xf32>
    "tpu.trace_start"() <{level = 10 : i32, message = "bqk,bkd->bqd"}> : () -> ()
    %cst_26 = arith.constant dense<0.000000e+00> : vector<2x8x16xf32>
    %100 = tpu.matmul %98, %99, %cst_26 {dimension_numbers = #tpu.dot_dimension_numbers<[2], [1], [1], [2], [0, 0, 0, 1, 1, 2], [0], [0]>} : vector<2x8x8xf32>, vector<2x8x16xf32>, vector<2x8x16xf32> -> vector<2x8x16xf32>
    "tpu.trace_stop"() : () -> ()
    %101 = vector.shape_cast %100 : vector<2x8x16xf32> to vector<16x16xf32>
    %c152 = arith.constant 152 : index
    %c0_27 = arith.constant 0 : index
    %102 = vector.load %arg1[%c152, %c0_27] : memref<488x32xf32, #tpu.memory_space<vmem>>, vector<16x32xf32>
    %cst_28 = arith.constant dense<0.000000e+00> : vector<16x32xf32>
    %103 = tpu.matmul %101, %102, %cst_28 {dimension_numbers = #tpu.dot_dimension_numbers<[1], [0], [0], [1], [0, 0, 1, 1], [], []>} : vector<16x16xf32>, vector<16x32xf32>, vector<16x32xf32> -> vector<16x32xf32>
    %104 = arith.addf %84, %103 : vector<16x32xf32>
    %105 = vector.extract_strided_slice %0 {offsets = [3, 0], sizes = [1, 128], strides = [1, 1]} : vector<20x128xf32> to vector<1x128xf32>
    %106 = vector.extract_strided_slice %105 {offsets = [0, 0], sizes = [1, 32], strides = [1, 1]} : vector<1x128xf32> to vector<1x32xf32>
    %107 = vector.broadcast %106 : vector<1x32xf32> to vector<16x32xf32>
    %108 = arith.addf %104, %107 : vector<16x32xf32>
    %109 = arith.addf %47, %108 : vector<16x32xf32>
    %110 = vector.extract_strided_slice %0 {offsets = [4, 0], sizes = [1, 128], strides = [1, 1]} : vector<20x128xf32> to vector<1x128xf32>
    %111 = vector.extract_strided_slice %110 {offsets = [0, 0], sizes = [1, 32], strides = [1, 1]} : vector<1x128xf32> to vector<1x32xf32>
    %112 = vector.extract_strided_slice %0 {offsets = [5, 0], sizes = [1, 128], strides = [1, 1]} : vector<20x128xf32> to vector<1x128xf32>
    %113 = vector.extract_strided_slice %112 {offsets = [0, 0], sizes = [1, 32], strides = [1, 1]} : vector<1x128xf32> to vector<1x32xf32>
    %cst_29 = arith.constant dense<0.000000e+00> : vector<16xf32>
    %114 = vector.multi_reduction <add>, %109, %cst_29 [1] : vector<16x32xf32> to vector<16xf32>
    %115 = vector.shape_cast %114 : vector<16xf32> to vector<16x1xf32>
    %cst_30 = arith.constant 3.200000e+01 : f32
    %116 = vector.broadcast %cst_30 : f32 to vector<16x1xf32>
    %117 = arith.divf %115, %116 : vector<16x1xf32>
    %118 = vector.broadcast %117 : vector<16x1xf32> to vector<16x32xf32>
    %119 = arith.subf %109, %118 : vector<16x32xf32>
    %120 = arith.mulf %119, %119 : vector<16x32xf32>
    %cst_31 = arith.constant dense<0.000000e+00> : vector<16xf32>
    %121 = vector.multi_reduction <add>, %120, %cst_31 [1] : vector<16x32xf32> to vector<16xf32>
    %122 = vector.shape_cast %121 : vector<16xf32> to vector<16x1xf32>
    %cst_32 = arith.constant 3.200000e+01 : f32
    %123 = vector.broadcast %cst_32 : f32 to vector<16x1xf32>
    %124 = arith.divf %122, %123 : vector<16x1xf32>
    %125 = vector.broadcast %117 : vector<16x1xf32> to vector<16x32xf32>
    %126 = arith.subf %109, %125 : vector<16x32xf32>
    %cst_33 = arith.constant 9.99999996E-13 : f32
    %127 = vector.broadcast %cst_33 : f32 to vector<16x1xf32>
    %128 = arith.addf %124, %127 : vector<16x1xf32>
    %129 = math.rsqrt %128 : vector<16x1xf32>
    %130 = vector.broadcast %129 : vector<16x1xf32> to vector<16x32xf32>
    %131 = arith.mulf %126, %130 : vector<16x32xf32>
    %132 = vector.broadcast %111 : vector<1x32xf32> to vector<16x32xf32>
    %133 = arith.mulf %131, %132 : vector<16x32xf32>
    %134 = vector.broadcast %113 : vector<1x32xf32> to vector<16x32xf32>
    %135 = arith.addf %133, %134 : vector<16x32xf32>
    %c32 = arith.constant 32 : index
    %c0_34 = arith.constant 0 : index
    %136 = vector.load %arg2[%c32, %c0_34] : memref<160x128xf32, #tpu.memory_space<vmem>>, vector<32x128xf32>
    %cst_35 = arith.constant dense<0.000000e+00> : vector<16x128xf32>
    %137 = tpu.matmul %135, %136, %cst_35 {dimension_numbers = #tpu.dot_dimension_numbers<[1], [0], [0], [1], [0, 0, 1, 1], [], []>} : vector<16x32xf32>, vector<32x128xf32>, vector<16x128xf32> -> vector<16x128xf32>
    %138 = vector.extract_strided_slice %0 {offsets = [6, 0], sizes = [1, 128], strides = [1, 1]} : vector<20x128xf32> to vector<1x128xf32>
    %139 = vector.broadcast %138 : vector<1x128xf32> to vector<16x128xf32>
    %140 = arith.addf %137, %139 : vector<16x128xf32>
    %cst_36 = arith.constant 5.000000e-01 : f32
    %141 = vector.broadcast %cst_36 : f32 to vector<16x128xf32>
    %142 = arith.mulf %141, %140 : vector<16x128xf32>
    %cst_37 = arith.constant 4.471500e-02 : f32
    %143 = vector.broadcast %cst_37 : f32 to vector<16x128xf32>
    %144 = arith.mulf %143, %140 : vector<16x128xf32>
    %145 = arith.mulf %144, %140 : vector<16x128xf32>
    %146 = arith.mulf %145, %140 : vector<16x128xf32>
    %147 = arith.addf %140, %146 : vector<16x128xf32>
    %cst_38 = arith.constant 0.797884583 : f32
    %148 = vector.broadcast %cst_38 : f32 to vector<16x128xf32>
    %149 = arith.mulf %148, %147 : vector<16x128xf32>
    %150 = math.tanh %149 : vector<16x128xf32>
    %cst_39 = arith.constant 1.000000e+00 : f32
    %151 = vector.broadcast %cst_39 : f32 to vector<16x128xf32>
    %152 = arith.addf %151, %150 : vector<16x128xf32>
    %153 = arith.mulf %142, %152 : vector<16x128xf32>
    %c168 = arith.constant 168 : index
    %c0_40 = arith.constant 0 : index
    %154 = vector.load %arg1[%c168, %c0_40] : memref<488x32xf32, #tpu.memory_space<vmem>>, vector<128x32xf32>
    %cst_41 = arith.constant dense<0.000000e+00> : vector<16x32xf32>
    %155 = tpu.matmul %153, %154, %cst_41 {dimension_numbers = #tpu.dot_dimension_numbers<[1], [0], [0], [1], [0, 0, 1, 1], [], []>} : vector<16x128xf32>, vector<128x32xf32>, vector<16x32xf32> -> vector<16x32xf32>
    %156 = vector.extract_strided_slice %0 {offsets = [7, 0], sizes = [1, 128], strides = [1, 1]} : vector<20x128xf32> to vector<1x128xf32>
    %157 = vector.extract_strided_slice %156 {offsets = [0, 0], sizes = [1, 32], strides = [1, 1]} : vector<1x128xf32> to vector<1x32xf32>
    %158 = vector.broadcast %157 : vector<1x32xf32> to vector<16x32xf32>
    %159 = arith.addf %155, %158 : vector<16x32xf32>
    %160 = arith.addf %135, %159 : vector<16x32xf32>
    %161 = vector.extract_strided_slice %0 {offsets = [8, 0], sizes = [1, 128], strides = [1, 1]} : vector<20x128xf32> to vector<1x128xf32>
    %162 = vector.extract_strided_slice %161 {offsets = [0, 0], sizes = [1, 32], strides = [1, 1]} : vector<1x128xf32> to vector<1x32xf32>
    %163 = vector.extract_strided_slice %0 {offsets = [9, 0], sizes = [1, 128], strides = [1, 1]} : vector<20x128xf32> to vector<1x128xf32>
    %164 = vector.extract_strided_slice %163 {offsets = [0, 0], sizes = [1, 32], strides = [1, 1]} : vector<1x128xf32> to vector<1x32xf32>
    %cst_42 = arith.constant dense<0.000000e+00> : vector<16xf32>
    %165 = vector.multi_reduction <add>, %160, %cst_42 [1] : vector<16x32xf32> to vector<16xf32>
    %166 = vector.shape_cast %165 : vector<16xf32> to vector<16x1xf32>
    %cst_43 = arith.constant 3.200000e+01 : f32
    %167 = vector.broadcast %cst_43 : f32 to vector<16x1xf32>
    %168 = arith.divf %166, %167 : vector<16x1xf32>
    %169 = vector.broadcast %168 : vector<16x1xf32> to vector<16x32xf32>
    %170 = arith.subf %160, %169 : vector<16x32xf32>
    %171 = arith.mulf %170, %170 : vector<16x32xf32>
    %cst_44 = arith.constant dense<0.000000e+00> : vector<16xf32>
    %172 = vector.multi_reduction <add>, %171, %cst_44 [1] : vector<16x32xf32> to vector<16xf32>
    %173 = vector.shape_cast %172 : vector<16xf32> to vector<16x1xf32>
    %cst_45 = arith.constant 3.200000e+01 : f32
    %174 = vector.broadcast %cst_45 : f32 to vector<16x1xf32>
    %175 = arith.divf %173, %174 : vector<16x1xf32>
    %176 = vector.broadcast %168 : vector<16x1xf32> to vector<16x32xf32>
    %177 = arith.subf %160, %176 : vector<16x32xf32>
    %cst_46 = arith.constant 9.99999996E-13 : f32
    %178 = vector.broadcast %cst_46 : f32 to vector<16x1xf32>
    %179 = arith.addf %175, %178 : vector<16x1xf32>
    %180 = math.rsqrt %179 : vector<16x1xf32>
    %181 = vector.broadcast %180 : vector<16x1xf32> to vector<16x32xf32>
    %182 = arith.mulf %177, %181 : vector<16x32xf32>
    %183 = vector.broadcast %162 : vector<1x32xf32> to vector<16x32xf32>
    %184 = arith.mulf %182, %183 : vector<16x32xf32>
    %185 = vector.broadcast %164 : vector<1x32xf32> to vector<16x32xf32>
    %186 = arith.addf %184, %185 : vector<16x32xf32>
    %c64 = arith.constant 64 : index
    %c0_47 = arith.constant 0 : index
    %187 = vector.load %arg2[%c64, %c0_47] : memref<160x128xf32, #tpu.memory_space<vmem>>, vector<32x128xf32>
    %cst_48 = arith.constant dense<0.000000e+00> : vector<16x128xf32>
    %188 = tpu.matmul %186, %187, %cst_48 {dimension_numbers = #tpu.dot_dimension_numbers<[1], [0], [0], [1], [0, 0, 1, 1], [], []>} : vector<16x32xf32>, vector<32x128xf32>, vector<16x128xf32> -> vector<16x128xf32>
    %189 = vector.extract_strided_slice %0 {offsets = [10, 0], sizes = [1, 128], strides = [1, 1]} : vector<20x128xf32> to vector<1x128xf32>
    %190 = vector.broadcast %189 : vector<1x128xf32> to vector<16x128xf32>
    %191 = arith.addf %188, %190 : vector<16x128xf32>
    %192 = vector.extract_strided_slice %191 {offsets = [0, 0], sizes = [16, 32], strides = [1, 1]} : vector<16x128xf32> to vector<16x32xf32>
    %193 = vector.shape_cast %192 : vector<16x32xf32> to vector<2x8x32xf32>
    %194 = vector.extract_strided_slice %191 {offsets = [0, 32], sizes = [16, 32], strides = [1, 1]} : vector<16x128xf32> to vector<16x32xf32>
    %195 = vector.shape_cast %194 : vector<16x32xf32> to vector<2x8x32xf32>
    %196 = vector.extract_strided_slice %191 {offsets = [0, 64], sizes = [16, 32], strides = [1, 1]} : vector<16x128xf32> to vector<16x32xf32>
    %197 = vector.shape_cast %196 : vector<16x32xf32> to vector<2x8x32xf32>
    %198 = vector.extract_strided_slice %193 {offsets = [0, 0, 0], sizes = [2, 8, 16], strides = [1, 1, 1]} : vector<2x8x32xf32> to vector<2x8x16xf32>
    %199 = vector.extract_strided_slice %195 {offsets = [0, 0, 0], sizes = [2, 8, 16], strides = [1, 1, 1]} : vector<2x8x32xf32> to vector<2x8x16xf32>
    "tpu.trace_start"() <{level = 10 : i32, message = "bqd,bkd->bqk"}> : () -> ()
    %cst_49 = arith.constant dense<0.000000e+00> : vector<2x8x8xf32>
    %200 = tpu.matmul %198, %199, %cst_49 {dimension_numbers = #tpu.dot_dimension_numbers<[2], [2], [1], [1], [0, 0, 0, 1, 1, 1], [0], [0]>} : vector<2x8x16xf32>, vector<2x8x16xf32>, vector<2x8x8xf32> -> vector<2x8x8xf32>
    "tpu.trace_stop"() : () -> ()
    %201 = arith.addf %200, %54 : vector<2x8x8xf32>
    %cst_50 = arith.constant dense<0xFF800000> : vector<2x8xf32>
    %202 = vector.multi_reduction <maximumf>, %201, %cst_50 [2] : vector<2x8x8xf32> to vector<2x8xf32>
    %203 = vector.shape_cast %202 : vector<2x8xf32> to vector<2x8x1xf32>
    %204 = vector.broadcast %203 : vector<2x8x1xf32> to vector<2x8x8xf32>
    %205 = arith.subf %201, %204 : vector<2x8x8xf32>
    %206 = math.exp %205 : vector<2x8x8xf32>
    %cst_51 = arith.constant dense<0.000000e+00> : vector<2x8xf32>
    %207 = vector.multi_reduction <add>, %206, %cst_51 [2] : vector<2x8x8xf32> to vector<2x8xf32>
    %208 = vector.shape_cast %207 : vector<2x8xf32> to vector<2x8x1xf32>
    %209 = tpu.reciprocal %208 {approx = true} : vector<2x8x1xf32> -> vector<2x8x1xf32>
    %210 = vector.broadcast %209 : vector<2x8x1xf32> to vector<2x8x8xf32>
    %211 = arith.mulf %206, %210 : vector<2x8x8xf32>
    %212 = vector.extract_strided_slice %197 {offsets = [0, 0, 0], sizes = [2, 8, 16], strides = [1, 1, 1]} : vector<2x8x32xf32> to vector<2x8x16xf32>
    "tpu.trace_start"() <{level = 10 : i32, message = "bqk,bkd->bqd"}> : () -> ()
    %cst_52 = arith.constant dense<0.000000e+00> : vector<2x8x16xf32>
    %213 = tpu.matmul %211, %212, %cst_52 {dimension_numbers = #tpu.dot_dimension_numbers<[2], [1], [1], [2], [0, 0, 0, 1, 1, 2], [0], [0]>} : vector<2x8x8xf32>, vector<2x8x16xf32>, vector<2x8x16xf32> -> vector<2x8x16xf32>
    "tpu.trace_stop"() : () -> ()
    %214 = vector.shape_cast %213 : vector<2x8x16xf32> to vector<16x16xf32>
    %c296 = arith.constant 296 : index
    %c0_53 = arith.constant 0 : index
    %215 = vector.load %arg1[%c296, %c0_53] : memref<488x32xf32, #tpu.memory_space<vmem>>, vector<16x32xf32>
    %cst_54 = arith.constant dense<0.000000e+00> : vector<16x32xf32>
    %216 = tpu.matmul %214, %215, %cst_54 {dimension_numbers = #tpu.dot_dimension_numbers<[1], [0], [0], [1], [0, 0, 1, 1], [], []>} : vector<16x16xf32>, vector<16x32xf32>, vector<16x32xf32> -> vector<16x32xf32>
    %217 = vector.extract_strided_slice %193 {offsets = [0, 0, 16], sizes = [2, 8, 16], strides = [1, 1, 1]} : vector<2x8x32xf32> to vector<2x8x16xf32>
    %218 = vector.extract_strided_slice %195 {offsets = [0, 0, 16], sizes = [2, 8, 16], strides = [1, 1, 1]} : vector<2x8x32xf32> to vector<2x8x16xf32>
    "tpu.trace_start"() <{level = 10 : i32, message = "bqd,bkd->bqk"}> : () -> ()
    %cst_55 = arith.constant dense<0.000000e+00> : vector<2x8x8xf32>
    %219 = tpu.matmul %217, %218, %cst_55 {dimension_numbers = #tpu.dot_dimension_numbers<[2], [2], [1], [1], [0, 0, 0, 1, 1, 1], [0], [0]>} : vector<2x8x16xf32>, vector<2x8x16xf32>, vector<2x8x8xf32> -> vector<2x8x8xf32>
    "tpu.trace_stop"() : () -> ()
    %220 = arith.addf %219, %54 : vector<2x8x8xf32>
    %cst_56 = arith.constant dense<0xFF800000> : vector<2x8xf32>
    %221 = vector.multi_reduction <maximumf>, %220, %cst_56 [2] : vector<2x8x8xf32> to vector<2x8xf32>
    %222 = vector.shape_cast %221 : vector<2x8xf32> to vector<2x8x1xf32>
    %223 = vector.broadcast %222 : vector<2x8x1xf32> to vector<2x8x8xf32>
    %224 = arith.subf %220, %223 : vector<2x8x8xf32>
    %225 = math.exp %224 : vector<2x8x8xf32>
    %cst_57 = arith.constant dense<0.000000e+00> : vector<2x8xf32>
    %226 = vector.multi_reduction <add>, %225, %cst_57 [2] : vector<2x8x8xf32> to vector<2x8xf32>
    %227 = vector.shape_cast %226 : vector<2x8xf32> to vector<2x8x1xf32>
    %228 = tpu.reciprocal %227 {approx = true} : vector<2x8x1xf32> -> vector<2x8x1xf32>
    %229 = vector.broadcast %228 : vector<2x8x1xf32> to vector<2x8x8xf32>
    %230 = arith.mulf %225, %229 : vector<2x8x8xf32>
    %231 = vector.extract_strided_slice %197 {offsets = [0, 0, 16], sizes = [2, 8, 16], strides = [1, 1, 1]} : vector<2x8x32xf32> to vector<2x8x16xf32>
    "tpu.trace_start"() <{level = 10 : i32, message = "bqk,bkd->bqd"}> : () -> ()
    %cst_58 = arith.constant dense<0.000000e+00> : vector<2x8x16xf32>
    %232 = tpu.matmul %230, %231, %cst_58 {dimension_numbers = #tpu.dot_dimension_numbers<[2], [1], [1], [2], [0, 0, 0, 1, 1, 2], [0], [0]>} : vector<2x8x8xf32>, vector<2x8x16xf32>, vector<2x8x16xf32> -> vector<2x8x16xf32>
    "tpu.trace_stop"() : () -> ()
    %233 = vector.shape_cast %232 : vector<2x8x16xf32> to vector<16x16xf32>
    %c312 = arith.constant 312 : index
    %c0_59 = arith.constant 0 : index
    %234 = vector.load %arg1[%c312, %c0_59] : memref<488x32xf32, #tpu.memory_space<vmem>>, vector<16x32xf32>
    %cst_60 = arith.constant dense<0.000000e+00> : vector<16x32xf32>
    %235 = tpu.matmul %233, %234, %cst_60 {dimension_numbers = #tpu.dot_dimension_numbers<[1], [0], [0], [1], [0, 0, 1, 1], [], []>} : vector<16x16xf32>, vector<16x32xf32>, vector<16x32xf32> -> vector<16x32xf32>
    %236 = arith.addf %216, %235 : vector<16x32xf32>
    %237 = vector.extract_strided_slice %0 {offsets = [11, 0], sizes = [1, 128], strides = [1, 1]} : vector<20x128xf32> to vector<1x128xf32>
    %238 = vector.extract_strided_slice %237 {offsets = [0, 0], sizes = [1, 32], strides = [1, 1]} : vector<1x128xf32> to vector<1x32xf32>
    %239 = vector.broadcast %238 : vector<1x32xf32> to vector<16x32xf32>
    %240 = arith.addf %236, %239 : vector<16x32xf32>
    %241 = arith.addf %186, %240 : vector<16x32xf32>
    %242 = vector.extract_strided_slice %0 {offsets = [12, 0], sizes = [1, 128], strides = [1, 1]} : vector<20x128xf32> to vector<1x128xf32>
    %243 = vector.extract_strided_slice %242 {offsets = [0, 0], sizes = [1, 32], strides = [1, 1]} : vector<1x128xf32> to vector<1x32xf32>
    %244 = vector.extract_strided_slice %0 {offsets = [13, 0], sizes = [1, 128], strides = [1, 1]} : vector<20x128xf32> to vector<1x128xf32>
    %245 = vector.extract_strided_slice %244 {offsets = [0, 0], sizes = [1, 32], strides = [1, 1]} : vector<1x128xf32> to vector<1x32xf32>
    %cst_61 = arith.constant dense<0.000000e+00> : vector<16xf32>
    %246 = vector.multi_reduction <add>, %241, %cst_61 [1] : vector<16x32xf32> to vector<16xf32>
    %247 = vector.shape_cast %246 : vector<16xf32> to vector<16x1xf32>
    %cst_62 = arith.constant 3.200000e+01 : f32
    %248 = vector.broadcast %cst_62 : f32 to vector<16x1xf32>
    %249 = arith.divf %247, %248 : vector<16x1xf32>
    %250 = vector.broadcast %249 : vector<16x1xf32> to vector<16x32xf32>
    %251 = arith.subf %241, %250 : vector<16x32xf32>
    %252 = arith.mulf %251, %251 : vector<16x32xf32>
    %cst_63 = arith.constant dense<0.000000e+00> : vector<16xf32>
    %253 = vector.multi_reduction <add>, %252, %cst_63 [1] : vector<16x32xf32> to vector<16xf32>
    %254 = vector.shape_cast %253 : vector<16xf32> to vector<16x1xf32>
    %cst_64 = arith.constant 3.200000e+01 : f32
    %255 = vector.broadcast %cst_64 : f32 to vector<16x1xf32>
    %256 = arith.divf %254, %255 : vector<16x1xf32>
    %257 = vector.broadcast %249 : vector<16x1xf32> to vector<16x32xf32>
    %258 = arith.subf %241, %257 : vector<16x32xf32>
    %cst_65 = arith.constant 9.99999996E-13 : f32
    %259 = vector.broadcast %cst_65 : f32 to vector<16x1xf32>
    %260 = arith.addf %256, %259 : vector<16x1xf32>
    %261 = math.rsqrt %260 : vector<16x1xf32>
    %262 = vector.broadcast %261 : vector<16x1xf32> to vector<16x32xf32>
    %263 = arith.mulf %258, %262 : vector<16x32xf32>
    %264 = vector.broadcast %243 : vector<1x32xf32> to vector<16x32xf32>
    %265 = arith.mulf %263, %264 : vector<16x32xf32>
    %266 = vector.broadcast %245 : vector<1x32xf32> to vector<16x32xf32>
    %267 = arith.addf %265, %266 : vector<16x32xf32>
    %c96 = arith.constant 96 : index
    %c0_66 = arith.constant 0 : index
    %268 = vector.load %arg2[%c96, %c0_66] : memref<160x128xf32, #tpu.memory_space<vmem>>, vector<32x128xf32>
    %cst_67 = arith.constant dense<0.000000e+00> : vector<16x128xf32>
    %269 = tpu.matmul %267, %268, %cst_67 {dimension_numbers = #tpu.dot_dimension_numbers<[1], [0], [0], [1], [0, 0, 1, 1], [], []>} : vector<16x32xf32>, vector<32x128xf32>, vector<16x128xf32> -> vector<16x128xf32>
    %270 = vector.extract_strided_slice %0 {offsets = [14, 0], sizes = [1, 128], strides = [1, 1]} : vector<20x128xf32> to vector<1x128xf32>
    %271 = vector.broadcast %270 : vector<1x128xf32> to vector<16x128xf32>
    %272 = arith.addf %269, %271 : vector<16x128xf32>
    %cst_68 = arith.constant 5.000000e-01 : f32
    %273 = vector.broadcast %cst_68 : f32 to vector<16x128xf32>
    %274 = arith.mulf %273, %272 : vector<16x128xf32>
    %cst_69 = arith.constant 4.471500e-02 : f32
    %275 = vector.broadcast %cst_69 : f32 to vector<16x128xf32>
    %276 = arith.mulf %275, %272 : vector<16x128xf32>
    %277 = arith.mulf %276, %272 : vector<16x128xf32>
    %278 = arith.mulf %277, %272 : vector<16x128xf32>
    %279 = arith.addf %272, %278 : vector<16x128xf32>
    %cst_70 = arith.constant 0.797884583 : f32
    %280 = vector.broadcast %cst_70 : f32 to vector<16x128xf32>
    %281 = arith.mulf %280, %279 : vector<16x128xf32>
    %282 = math.tanh %281 : vector<16x128xf32>
    %cst_71 = arith.constant 1.000000e+00 : f32
    %283 = vector.broadcast %cst_71 : f32 to vector<16x128xf32>
    %284 = arith.addf %283, %282 : vector<16x128xf32>
    %285 = arith.mulf %274, %284 : vector<16x128xf32>
    %c328 = arith.constant 328 : index
    %c0_72 = arith.constant 0 : index
    %286 = vector.load %arg1[%c328, %c0_72] : memref<488x32xf32, #tpu.memory_space<vmem>>, vector<128x32xf32>
    %cst_73 = arith.constant dense<0.000000e+00> : vector<16x32xf32>
    %287 = tpu.matmul %285, %286, %cst_73 {dimension_numbers = #tpu.dot_dimension_numbers<[1], [0], [0], [1], [0, 0, 1, 1], [], []>} : vector<16x128xf32>, vector<128x32xf32>, vector<16x32xf32> -> vector<16x32xf32>
    %288 = vector.extract_strided_slice %0 {offsets = [15, 0], sizes = [1, 128], strides = [1, 1]} : vector<20x128xf32> to vector<1x128xf32>
    %289 = vector.extract_strided_slice %288 {offsets = [0, 0], sizes = [1, 32], strides = [1, 1]} : vector<1x128xf32> to vector<1x32xf32>
    %290 = vector.broadcast %289 : vector<1x32xf32> to vector<16x32xf32>
    %291 = arith.addf %287, %290 : vector<16x32xf32>
    %292 = arith.addf %267, %291 : vector<16x32xf32>
    %293 = vector.extract_strided_slice %0 {offsets = [16, 0], sizes = [1, 128], strides = [1, 1]} : vector<20x128xf32> to vector<1x128xf32>
    %294 = vector.extract_strided_slice %293 {offsets = [0, 0], sizes = [1, 32], strides = [1, 1]} : vector<1x128xf32> to vector<1x32xf32>
    %295 = vector.extract_strided_slice %0 {offsets = [17, 0], sizes = [1, 128], strides = [1, 1]} : vector<20x128xf32> to vector<1x128xf32>
    %296 = vector.extract_strided_slice %295 {offsets = [0, 0], sizes = [1, 32], strides = [1, 1]} : vector<1x128xf32> to vector<1x32xf32>
    %cst_74 = arith.constant dense<0.000000e+00> : vector<16xf32>
    %297 = vector.multi_reduction <add>, %292, %cst_74 [1] : vector<16x32xf32> to vector<16xf32>
    %298 = vector.shape_cast %297 : vector<16xf32> to vector<16x1xf32>
    %cst_75 = arith.constant 3.200000e+01 : f32
    %299 = vector.broadcast %cst_75 : f32 to vector<16x1xf32>
    %300 = arith.divf %298, %299 : vector<16x1xf32>
    %301 = vector.broadcast %300 : vector<16x1xf32> to vector<16x32xf32>
    %302 = arith.subf %292, %301 : vector<16x32xf32>
    %303 = arith.mulf %302, %302 : vector<16x32xf32>
    %cst_76 = arith.constant dense<0.000000e+00> : vector<16xf32>
    %304 = vector.multi_reduction <add>, %303, %cst_76 [1] : vector<16x32xf32> to vector<16xf32>
    %305 = vector.shape_cast %304 : vector<16xf32> to vector<16x1xf32>
    %cst_77 = arith.constant 3.200000e+01 : f32
    %306 = vector.broadcast %cst_77 : f32 to vector<16x1xf32>
    %307 = arith.divf %305, %306 : vector<16x1xf32>
    %308 = vector.broadcast %300 : vector<16x1xf32> to vector<16x32xf32>
    %309 = arith.subf %292, %308 : vector<16x32xf32>
    %cst_78 = arith.constant 9.99999996E-13 : f32
    %310 = vector.broadcast %cst_78 : f32 to vector<16x1xf32>
    %311 = arith.addf %307, %310 : vector<16x1xf32>
    %312 = math.rsqrt %311 : vector<16x1xf32>
    %313 = vector.broadcast %312 : vector<16x1xf32> to vector<16x32xf32>
    %314 = arith.mulf %309, %313 : vector<16x32xf32>
    %315 = vector.broadcast %294 : vector<1x32xf32> to vector<16x32xf32>
    %316 = arith.mulf %314, %315 : vector<16x32xf32>
    %317 = vector.broadcast %296 : vector<1x32xf32> to vector<16x32xf32>
    %318 = arith.addf %316, %317 : vector<16x32xf32>
    %c456 = arith.constant 456 : index
    %c0_79 = arith.constant 0 : index
    %319 = vector.load %arg1[%c456, %c0_79] : memref<488x32xf32, #tpu.memory_space<vmem>>, vector<32x32xf32>
    %cst_80 = arith.constant dense<0.000000e+00> : vector<16x32xf32>
    %320 = tpu.matmul %318, %319, %cst_80 {dimension_numbers = #tpu.dot_dimension_numbers<[1], [0], [0], [1], [0, 0, 1, 1], [], []>} : vector<16x32xf32>, vector<32x32xf32>, vector<16x32xf32> -> vector<16x32xf32>
    %321 = vector.extract_strided_slice %0 {offsets = [18, 0], sizes = [1, 128], strides = [1, 1]} : vector<20x128xf32> to vector<1x128xf32>
    %322 = vector.extract_strided_slice %321 {offsets = [0, 0], sizes = [1, 32], strides = [1, 1]} : vector<1x128xf32> to vector<1x32xf32>
    %323 = vector.broadcast %322 : vector<1x32xf32> to vector<16x32xf32>
    %324 = arith.addf %320, %323 : vector<16x32xf32>
    %325 = math.tanh %324 : vector<16x32xf32>
    %c128_81 = arith.constant 128 : index
    %c0_82 = arith.constant 0 : index
    %326 = vector.load %arg2[%c128_81, %c0_82] : memref<160x128xf32, #tpu.memory_space<vmem>>, vector<32x128xf32>
    %cst_83 = arith.constant dense<0.000000e+00> : vector<16x128xf32>
    %327 = tpu.matmul %325, %326, %cst_83 {dimension_numbers = #tpu.dot_dimension_numbers<[1], [0], [0], [1], [0, 0, 1, 1], [], []>} : vector<16x32xf32>, vector<32x128xf32>, vector<16x128xf32> -> vector<16x128xf32>
    %328 = vector.extract_strided_slice %0 {offsets = [19, 0], sizes = [1, 128], strides = [1, 1]} : vector<20x128xf32> to vector<1x128xf32>
    %329 = vector.broadcast %328 : vector<1x128xf32> to vector<16x128xf32>
    %330 = arith.addf %327, %329 : vector<16x128xf32>
    %cst_84 = arith.constant dense<0xFF800000> : vector<16xf32>
    %331 = vector.multi_reduction <maximumf>, %330, %cst_84 [1] : vector<16x128xf32> to vector<16xf32>
    %332 = vector.shape_cast %331 : vector<16xf32> to vector<16x1xf32>
    %333 = vector.broadcast %332 : vector<16x1xf32> to vector<16x128xf32>
    %334 = arith.subf %330, %333 : vector<16x128xf32>
    %335 = math.exp %334 : vector<16x128xf32>
    %cst_85 = arith.constant dense<0.000000e+00> : vector<16xf32>
    %336 = vector.multi_reduction <add>, %335, %cst_85 [1] : vector<16x128xf32> to vector<16xf32>
    %337 = vector.shape_cast %336 : vector<16xf32> to vector<16x1xf32>
    %338 = tpu.reciprocal %337 : vector<16x1xf32> -> vector<16x1xf32>
    %339 = vector.broadcast %338 : vector<16x1xf32> to vector<16x128xf32>
    %340 = arith.mulf %335, %339 : vector<16x128xf32>
    %c0_86 = arith.constant 0 : index
    %c0_87 = arith.constant 0 : index
    %341 = vector.load %arg4[%c0_86, %c0_87] : memref<16x128xf32, #tpu.memory_space<vmem>>, vector<16x128xf32>
    tpu.vector_store %arg4[%c0_86, %c0_87], %340 {strides = array<i32>} : memref<16x128xf32, #tpu.memory_space<vmem>>, vector<16x128xf32>,
    return
  }
}

</mosaic_0001>

<llo_original>
// kernel: tpu_custom_call.1
$region0: #{tpu_custom_call.1}
  #allocation0 [shape = 'u32[]', space=smem, size = 0x4, offset = 0x4, fixed_abs, tag = 'smem constant byte address 0x4 - core index']
  #allocation1 [shape = 'u32[144,128]{1,0:T(1,128)}', space=vmem, size = 0x12000, scoped, tag = 'internal scratch']
  %s0 = inlined_call_operand.vmem [shape: s32[2,2,8], index: 0, kind: input, shape index: {}]
  %s1 = inlined_call_operand.vmem [shape: f32[488,32], index: 1, kind: input, shape index: {}]
  %s2 = inlined_call_operand.vmem [shape: f32[160,128], index: 2, kind: input, shape index: {}]
  %s3 = inlined_call_operand.vmem [shape: f32[20,128], index: 3, kind: input, shape index: {}]
  %s4 = inlined_call_operand.hbm [shape: f32[16,128], index: 4, kind: output, shape index: {}]
  %s5 = sld [smem:[#allocation0]]
  $region26: #{tpu_custom_call.1} parent=0
    _
  %s7 = ssub.s32 1, %s5
  %s8 = scalar_select 0, %s7, %s5
  $region1: #{tpu_custom_call.1} parent=0
    #allocation2 [shape = 'u8[8192]{0}', space=vmem, size = 0x2000, scoped, tag = 'output window, operand 0, single buffered']
    #allocation3 [shape = 's32[1]{0}', space=sflag, size = 0x4, scoped, tag = 'scoped memory for tpu_custom_call.1']
    %9 = vsyncpa [#allocation3], 0
    // Predicated region
    $region2: #{tpu_custom_call.1} parent=1 // pred_check
      _
    $region3: #{tpu_custom_call.1} parent=1 // pred_check_branch
      %11 = sbr.rel (0) target = $region5
    $region4: #{tpu_custom_call.1} parent=1 // pred_region
      _
    $region5: #{tpu_custom_call.1} parent=1 // pred_fallthru
      _
    // Predicated region
    $region6: #{tpu_custom_call.1} parent=1 // pred_check
      _
    $region7: #{tpu_custom_call.1} parent=1 // pred_check_branch
      %13 = sbr.rel (0) target = $region9
    $region8: #{tpu_custom_call.1} parent=1 // pred_region
      _
    $region9: #{tpu_custom_call.1} parent=1 // pred_fallthru
      _
    // Predicated region
    $region10: #{tpu_custom_call.1} parent=1 // pred_check
      _
    $region11: #{tpu_custom_call.1} parent=1 // pred_check_branch
      %15 = sbr.rel (0) target = $region13
    $region12: #{tpu_custom_call.1} parent=1 // pred_region
      _
    $region13: #{tpu_custom_call.1} parent=1 // pred_fallthru
      _
    // Predicated region
    $region14: #{tpu_custom_call.1} parent=1 // pred_check
      _
    $region15: #{tpu_custom_call.1} parent=1 // pred_check_branch
      %17 = sbr.rel (0) target = $region17
    $region16: #{tpu_custom_call.1} parent=1 // pred_region
      _
    $region17: #{tpu_custom_call.1} parent=1 // pred_fallthru
      _
    %v18 = vld [vmem:[%s3] sm:$0xff]
    %v19 = vld [vmem:[%s3 + $0x8] sm:$0xff]
    %v20 = vld [vmem:[%s3 + $0x10] sm:$0xf]
    %v21 = vld [vmem:[%s0] sm:$0x3]
    %v22 = vld [vmem:[%s0 + $0x2] sm:$0x3]
    %v23 = vcvt.s32.f32 %v22
    %v24 = vlaneseq
    %v25 = vand.u32 %v24, 127
    %v26 = vlaneseq
    %v27 = vshrl.u32 %v26, 7
    %v28 = vsub.s32 0, %v27
    %v29 = vrot.slane %v21, %v28
    %31 = vbcast.lane.b32.xlu0 %v29, 256
    %v32 = vpop.permute.xlu0 %31
    %v33 = vlaneseq
    %v34 = vshrl.u32 %v33, 7
    %v35 = vsub.s32 1, %v34
    %v36 = vrot.slane %v21, %v35
    %38 = vbcast.lane.b32.xlu0 %v36, 256
    %v39 = vpop.permute.xlu0 %38
    %vm40 = vcmp.eq.s32.totalorder %v25, %v32
    %vm41 = vcmp.eq.s32.totalorder %v25, %v39
    %v42 = vsel %vm40, 1, 0
    %v43 = vsel %vm41, 1, 0
    %v44 = vcvt.s32.f32 %v42
    %v45 = vcvt.s32.f32 %v43
    %v46 = vld [vmem:[%s1] sm:$0xff]
    %v47 = vld [vmem:[%s1 + $0x8] sm:$0xff]
    %v48 = vld [vmem:[%s1 + $0x10] sm:$0xff]
    %v49 = vld [vmem:[%s1 + $0x18] sm:$0xff]
    %v50 = vld [vmem:[%s1 + $0x20] sm:$0xff]
    %v51 = vld [vmem:[%s1 + $0x28] sm:$0xff]
    %v52 = vld [vmem:[%s1 + $0x30] sm:$0xff]
    %v53 = vld [vmem:[%s1 + $0x38] sm:$0xff]
    %v54 = vld [vmem:[%s1 + $0x40] sm:$0xff]
    %v55 = vld [vmem:[%s1 + $0x48] sm:$0xff]
    %v56 = vld [vmem:[%s1 + $0x50] sm:$0xff]
    %v57 = vld [vmem:[%s1 + $0x58] sm:$0xff]
    %v58 = vld [vmem:[%s1 + $0x60] sm:$0xff]
    %v59 = vld [vmem:[%s1 + $0x68] sm:$0xff]
    %v60 = vld [vmem:[%s1 + $0x70] sm:$0xff]
    %v61 = vld [vmem:[%s1 + $0x78] sm:$0xff]
    %62 = vmatprep.subr.mxu0 0.0
    %63 = vmatpush1.msra.mxu0 %v46
    %64 = vmatprep.subr.mxu0 0.0
    %65 = vmatpush1.msra.mxu0 %v47
    %66 = vmatprep.subr.mxu0 0.0
    %67 = vmatpush1.msra.mxu0 %v48
    %68 = vmatprep.subr.mxu0 0.0
    %69 = vmatpush1.msra.mxu0 %v49
    %70 = vmatprep.subr.mxu0 0.0
    %71 = vmatpush1.msra.mxu0 %v50
    %72 = vmatprep.subr.mxu0 0.0
    %73 = vmatpush1.msra.mxu0 %v51
    %74 = vmatprep.subr.mxu0 0.0
    %75 = vmatpush1.msra.mxu0 %v52
    %76 = vmatprep.subr.mxu0 0.0
    %77 = vmatpush1.msra.mxu0 %v53
    %78 = vmatprep.subr.mxu0 0.0
    %79 = vmatpush1.msra.mxu0 %v54
    %80 = vmatprep.subr.mxu0 0.0
    %81 = vmatpush1.msra.mxu0 %v55
    %82 = vmatprep.subr.mxu0 0.0
    %83 = vmatpush1.msra.mxu0 %v56
    %84 = vmatprep.subr.mxu0 0.0
    %85 = vmatpush1.msra.mxu0 %v57
    %86 = vmatprep.subr.mxu0 0.0
    %87 = vmatpush1.msra.mxu0 %v58
    %88 = vmatprep.subr.mxu0 0.0
    %89 = vmatpush1.msra.mxu0 %v59
    %90 = vmatprep.subr.mxu0 0.0
    %91 = vmatpush1.msra.mxu0 %v60
    %92 = vmatprep.subr.mxu0 0.0
    %93 = vmatpush1.msra.mxu0 %v61
    %94 = vmatprep.subr.mxu0 0.0
    %95 = vmatpush1.msra.mxu0 0.0
    %96 = vmatprep.subr.mxu0 0.0
    %97 = vmatpush1.msra.mxu0 0.0
    %98 = vmatprep.subr.mxu0 0.0
    %99 = vmatpush1.msra.mxu0 0.0
    %100 = vmatprep.subr.mxu0 0.0
    %101 = vmatpush1.msra.mxu0 0.0
    %102 = vmatprep.subr.mxu0 0.0
    %103 = vmatpush1.msra.mxu0 0.0
    %104 = vmatprep.subr.mxu0 0.0
    %105 = vmatpush1.msra.mxu0 0.0
    %106 = vmatprep.subr.mxu0 0.0
    %107 = vmatpush1.msra.mxu0 0.0
    %108 = vmatprep.subr.mxu0 0.0
    %109 = vmatpush1.msra.mxu0 0.0
    %110 = vmatprep.subr.mxu0 0.0
    %111 = vmatpush1.msra.mxu0 0.0
    %112 = vmatprep.subr.mxu0 0.0
    %113 = vmatpush1.msra.mxu0 0.0
    %114 = vmatprep.subr.mxu0 0.0
    %115 = vmatpush1.msra.mxu0 0.0
    %116 = vmatprep.subr.mxu0 0.0
    %117 = vmatpush1.msra.mxu0 0.0
    %118 = vmatprep.subr.mxu0 0.0
    %119 = vmatpush1.msra.mxu0 0.0
    %120 = vmatprep.subr.mxu0 0.0
    %121 = vmatpush1.msra.mxu0 0.0
    %122 = vmatprep.subr.mxu0 0.0
    %123 = vmatpush1.msra.mxu0 0.0
    %124 = vmatprep.subr.mxu0 0.0
    %125 = vmatpush1.msra.mxu0 0.0
    %126 = vmatprep.mubr.f32.mxu0 0.0
    %127 = vmatmul.mubr.f32.gmra.mrb[0].mxu0 %v44
    %v128 = vpop.f32.mrb[0].mxu0
    %v129 = vadd.f32 0.0, %v128
    %v130 = vpop.f32.mrb[0].mxu0
    %131 = vmatprep.mubr.f32.mxu0 0.0
    %132 = vmatmul.mubr.f32.gmra.mrb[0].mxu0 %v45
    %v133 = vpop.f32.mrb[0].mxu0
    %v134 = vadd.f32 0.0, %v133
    %v135 = vpop.f32.mrb[0].mxu0
    %136 = vdwg.mxu0
    %v137 = vld [vmem:[%s1 + $0x80] sm:$0xff]
    %v138 = vadd.f32 %v129, %v137
    %v139 = vadd.f32 %v134, %v137
    %vm140 = vcmask 261120
    %v141 = vsel %vm140, %v138, 0.0
    %142 = vadd.xlane.f32.xlu0 %v141
    %v143 = vpop.xlane.xlu0 %142
    %v144 = vsel %vm140, %v139, 0.0
    %145 = vadd.xlane.f32.xlu0 %v144
    %v146 = vpop.xlane.xlu0 %145
    %v147 = vrcp.pop 32.0
    %v148 = vmul.f32 %v143, %v147
    %v149 = vmul.f32 %v146, %v147
    %v150 = vsub.f32 %v138, %v148
    %v151 = vsub.f32 %v139, %v149
    %v152 = vmul.f32 %v150, %v150
    %v153 = vmul.f32 %v151, %v151
    %v154 = vsel %vm140, %v152, 0.0
    %155 = vadd.xlane.f32.xlu0 %v154
    %v156 = vpop.xlane.xlu0 %155
    %v157 = vsel %vm140, %v153, 0.0
    %158 = vadd.xlane.f32.xlu0 %v157
    %v159 = vpop.xlane.xlu0 %158
    %v160 = vmul.f32 %v156, %v147
    %v161 = vmul.f32 %v159, %v147
    %v162 = vadd.f32 %v160, 1e-12
    %v163 = vadd.f32 %v161, 1e-12
    %v164 = vrsqrt.pop %v162
    %v165 = vrsqrt.pop %v163
    %v166 = vmul.f32 %v150, %v164
    %v167 = vmul.f32 %v151, %v165
    %v168 = vlaneseq
    %v169 = vshrl.u32 %v168, 7
    %v170 = vsub.s32 0, %v169
    %v171 = vrot.slane %v18, %v170
    %v172 = vmul.f32 %v166, %v171
    %v173 = vmul.f32 %v167, %v171
    %v174 = vlaneseq
    %v175 = vshrl.u32 %v174, 7
    %v176 = vsub.s32 1, %v175
    %v177 = vrot.slane %v18, %v176
    %v178 = vadd.f32 %v172, %v177
    %v179 = vadd.f32 %v173, %v177
    %v180 = vsub.f32 1.0, %v23
    %v181 = vmul.f32 %v180, -1e+09
    %v184 = vunpack.c.l.s4 1966171168
    %v185 = vunpack.c.0.s8 %v184
    %v186 = vlaneseq
    %v187 = vshrl.u32 %v186, 7
    %v188 = vsub.s32 %v185, %v187
    %v189 = vrot.slane %v181, %v188
    %v190 = vcombine.high %v189, %v189
    %v192 = vunpack.c.l.s4 1966171168
    %v193 = vunpack.c.0.s8 %v192
    %v194 = vlaneseq
    %v195 = vshrl.u32 %v194, 7
    %v196 = vsub.s32 %v193, %v195
    %v197 = vrot.slane %v189, %v196
    %v199 = vunpack.c.l.s4 1966171168
    %v200 = vunpack.c.0.s8 %v199
    %v201 = vlaneseq
    %v202 = vshrl.u32 %v201, 7
    %v203 = vsub.s32 %v200, %v202
    %v204 = vrot.slane %v190, %v203
    %v205 = vlaneseq
    %v206 = vshrl.u32 %v205, 7
    %v207 = vsub.s32 0, %v206
    %v208 = vrot.slane %v197, %v207
    %v209 = vlaneseq
    %v210 = vshrl.u32 %v209, 7
    %v211 = vsub.s32 0, %v210
    %v212 = vrot.slane %v204, %v211
    %v215 = vld [vmem:[%s2] sm:$0xff]
    %v216 = vld [vmem:[%s2 + $0x8] sm:$0xff]
    %v217 = vld [vmem:[%s2 + $0x10] sm:$0xff]
    %v218 = vld [vmem:[%s2 + $0x18] sm:$0xff]
    %v219 = vlaneseq
    %v220 = vshrl.u32 %v219, 7
    %v221 = vsub.s32 2, %v220
    %v222 = vrot.slane %v18, %v221
    %v224 = vsel %vm140, %v178, 0
    %v227 = vsel %vm140, %v179, 0
    %229 = vmatprep.subr.mxu0 0.0
    %230 = vmatpush1.msra.mxu0 %v215
    %231 = vmatprep.subr.mxu0 0.0
    %232 = vmatpush1.msra.mxu0 %v216
    %233 = vmatprep.subr.mxu0 0.0
    %234 = vmatpush1.msra.mxu0 %v217
    %235 = vmatprep.subr.mxu0 0.0
    %236 = vmatpush1.msra.mxu0 %v218
    %237 = vmatprep.subr.mxu0 0.0
    %238 = vmatpush1.msra.mxu0 0.0
    %239 = vmatprep.subr.mxu0 0.0
    %240 = vmatpush1.msra.mxu0 0.0
    %241 = vmatprep.subr.mxu0 0.0
    %242 = vmatpush1.msra.mxu0 0.0
    %243 = vmatprep.subr.mxu0 0.0
    %244 = vmatpush1.msra.mxu0 0.0
    %245 = vmatprep.subr.mxu0 0.0
    %246 = vmatpush1.msra.mxu0 0.0
    %247 = vmatprep.subr.mxu0 0.0
    %248 = vmatpush1.msra.mxu0 0.0
    %249 = vmatprep.subr.mxu0 0.0
    %250 = vmatpush1.msra.mxu0 0.0
    %251 = vmatprep.subr.mxu0 0.0
    %252 = vmatpush1.msra.mxu0 0.0
    %253 = vmatprep.subr.mxu0 0.0
    %254 = vmatpush1.msra.mxu0 0.0
    %255 = vmatprep.subr.mxu0 0.0
    %256 = vmatpush1.msra.mxu0 0.0
    %257 = vmatprep.subr.mxu0 0.0
    %258 = vmatpush1.msra.mxu0 0.0
    %259 = vmatprep.subr.mxu0 0.0
    %260 = vmatpush1.msra.mxu0 0.0
    %261 = vmatprep.subr.mxu0 0.0
    %262 = vmatpush1.msra.mxu0 0.0
    %263 = vmatprep.subr.mxu0 0.0
    %264 = vmatpush1.msra.mxu0 0.0
    %265 = vmatprep.subr.mxu0 0.0
    %266 = vmatpush1.msra.mxu0 0.0
    %267 = vmatprep.subr.mxu0 0.0
    %268 = vmatpush1.msra.mxu0 0.0
    %269 = vmatprep.subr.mxu0 0.0
    %270 = vmatpush1.msra.mxu0 0.0
    %271 = vmatprep.subr.mxu0 0.0
    %272 = vmatpush1.msra.mxu0 0.0
    %273 = vmatprep.subr.mxu0 0.0
    %274 = vmatpush1.msra.mxu0 0.0
    %275 = vmatprep.subr.mxu0 0.0
    %276 = vmatpush1.msra.mxu0 0.0
    %277 = vmatprep.subr.mxu0 0.0
    %278 = vmatpush1.msra.mxu0 0.0
    %279 = vmatprep.subr.mxu0 0.0
    %280 = vmatpush1.msra.mxu0 0.0
    %281 = vmatprep.subr.mxu0 0.0
    %282 = vmatpush1.msra.mxu0 0.0
    %283 = vmatprep.subr.mxu0 0.0
    %284 = vmatpush1.msra.mxu0 0.0
    %285 = vmatprep.subr.mxu0 0.0
    %286 = vmatpush1.msra.mxu0 0.0
    %287 = vmatprep.subr.mxu0 0.0
    %288 = vmatpush1.msra.mxu0 0.0
    %289 = vmatprep.subr.mxu0 0.0
    %290 = vmatpush1.msra.mxu0 0.0
    %291 = vmatprep.subr.mxu0 0.0
    %292 = vmatpush1.msra.mxu0 0.0
    %293 = vmatprep.mubr.f32.mxu0 0.0
    %294 = vmatmul.mubr.f32.gmra.mrb[0].mxu0 %v224
    %v295 = vpop.f32.mrb[0].mxu0
    %v296 = vadd.f32 %v222, %v295
    %v297 = vpop.f32.mrb[0].mxu0
    %298 = vmatprep.mubr.f32.mxu0 0.0
    %299 = vmatmul.mubr.f32.gmra.mrb[0].mxu0 %v227
    %v300 = vpop.f32.mrb[0].mxu0
    %v301 = vadd.f32 %v222, %v300
    %v302 = vpop.f32.mrb[0].mxu0
    %303 = vdwg.mxu0
    %305 = vrot.lane.b32.xlu0 %v296, 96
    %v306 = vpop.permute.xlu0 %305
    %vm307 = vcmask 130048
    %v308 = vsel %vm307, %v296, 0
    %v310 = vsel %vm307, %v306, 0
    %312 = vmatprep.subr.mxu0 0.0
    %313 = vmatpush1.xpose.msra.mxu0 %v310
    %314 = vmatprep.subr.mxu0 0.0
    %315 = vmatpush1.xpose.msra.mxu0 0.0
    %316 = vmatprep.subr.mxu0 0.0
    %317 = vmatpush1.xpose.msra.mxu0 0.0
    %318 = vmatprep.subr.mxu0 0.0
    %319 = vmatpush1.xpose.msra.mxu0 0.0
    %320 = vmatprep.subr.mxu0 0.0
    %321 = vmatpush1.xpose.msra.mxu0 0.0
    %322 = vmatprep.subr.mxu0 0.0
    %323 = vmatpush1.xpose.msra.mxu0 0.0
    %324 = vmatprep.subr.mxu0 0.0
    %325 = vmatpush1.xpose.msra.mxu0 0.0
    %326 = vmatprep.subr.mxu0 0.0
    %327 = vmatpush1.xpose.msra.mxu0 0.0
    %328 = vmatprep.subr.mxu0 0.0
    %329 = vmatpush1.xpose.msra.mxu0 0.0
    %330 = vmatprep.subr.mxu0 0.0
    %331 = vmatpush1.xpose.msra.mxu0 0.0
    %332 = vmatprep.subr.mxu0 0.0
    %333 = vmatpush1.xpose.msra.mxu0 0.0
    %334 = vmatprep.subr.mxu0 0.0
    %335 = vmatpush1.xpose.msra.mxu0 0.0
    %336 = vmatprep.subr.mxu0 0.0
    %337 = vmatpush1.xpose.msra.mxu0 0.0
    %338 = vmatprep.subr.mxu0 0.0
    %339 = vmatpush1.xpose.msra.mxu0 0.0
    %340 = vmatprep.subr.mxu0 0.0
    %341 = vmatpush1.xpose.msra.mxu0 0.0
    %342 = vmatprep.subr.mxu0 0.0
    %343 = vmatpush1.xpose.msra.mxu0 0.0
    %344 = vmatprep.subr.mxu0 0.0
    %345 = vmatpush1.xpose.msra.mxu0 0.0
    %346 = vmatprep.subr.mxu0 0.0
    %347 = vmatpush1.xpose.msra.mxu0 0.0
    %348 = vmatprep.subr.mxu0 0.0
    %349 = vmatpush1.xpose.msra.mxu0 0.0
    %350 = vmatprep.subr.mxu0 0.0
    %351 = vmatpush1.xpose.msra.mxu0 0.0
    %352 = vmatprep.subr.mxu0 0.0
    %353 = vmatpush1.xpose.msra.mxu0 0.0
    %354 = vmatprep.subr.mxu0 0.0
    %355 = vmatpush1.xpose.msra.mxu0 0.0
    %356 = vmatprep.subr.mxu0 0.0
    %357 = vmatpush1.xpose.msra.mxu0 0.0
    %358 = vmatprep.subr.mxu0 0.0
    %359 = vmatpush1.xpose.msra.mxu0 0.0
    %360 = vmatprep.subr.mxu0 0.0
    %361 = vmatpush1.xpose.msra.mxu0 0.0
    %362 = vmatprep.subr.mxu0 0.0
    %363 = vmatpush1.xpose.msra.mxu0 0.0
    %364 = vmatprep.subr.mxu0 0.0
    %365 = vmatpush1.xpose.msra.mxu0 0.0
    %366 = vmatprep.subr.mxu0 0.0
    %367 = vmatpush1.xpose.msra.mxu0 0.0
    %368 = vmatprep.subr.mxu0 0.0
    %369 = vmatpush1.xpose.msra.mxu0 0.0
    %370 = vmatprep.subr.mxu0 0.0
    %371 = vmatpush1.xpose.msra.mxu0 0.0
    %372 = vmatprep.subr.mxu0 0.0
    %373 = vmatpush1.xpose.msra.mxu0 0.0
    %374 = vmatprep.subr.mxu0 0.0
    %375 = vmatpush1.xpose.msra.mxu0 0.0
    %376 = vmatprep.mubr.f32.mxu0 0.0
    %377 = vmatmul.mubr.f32.gmra.mrb[0].mxu0 %v308
    %v378 = vpop.f32.mrb[0].mxu0
    %v379 = vadd.f32 %v208, %v378
    %v380 = vpop.f32.mrb[0].mxu0
    %381 = vdwg.mxu0
    %383 = vrot.lane.b32.xlu0 %v301, 96
    %v384 = vpop.permute.xlu0 %383
    %v385 = vsel %vm307, %v301, 0
    %v387 = vsel %vm307, %v384, 0
    %389 = vmatprep.subr.mxu0 0.0
    %390 = vmatpush1.xpose.msra.mxu0 %v387
    %391 = vmatprep.subr.mxu0 0.0
    %392 = vmatpush1.xpose.msra.mxu0 0.0
    %393 = vmatprep.subr.mxu0 0.0
    %394 = vmatpush1.xpose.msra.mxu0 0.0
    %395 = vmatprep.subr.mxu0 0.0
    %396 = vmatpush1.xpose.msra.mxu0 0.0
    %397 = vmatprep.subr.mxu0 0.0
    %398 = vmatpush1.xpose.msra.mxu0 0.0
    %399 = vmatprep.subr.mxu0 0.0
    %400 = vmatpush1.xpose.msra.mxu0 0.0
    %401 = vmatprep.subr.mxu0 0.0
    %402 = vmatpush1.xpose.msra.mxu0 0.0
    %403 = vmatprep.subr.mxu0 0.0
    %404 = vmatpush1.xpose.msra.mxu0 0.0
    %405 = vmatprep.subr.mxu0 0.0
    %406 = vmatpush1.xpose.msra.mxu0 0.0
    %407 = vmatprep.subr.mxu0 0.0
    %408 = vmatpush1.xpose.msra.mxu0 0.0
    %409 = vmatprep.subr.mxu0 0.0
    %410 = vmatpush1.xpose.msra.mxu0 0.0
    %411 = vmatprep.subr.mxu0 0.0
    %412 = vmatpush1.xpose.msra.mxu0 0.0
    %413 = vmatprep.subr.mxu0 0.0
    %414 = vmatpush1.xpose.msra.mxu0 0.0
    %415 = vmatprep.subr.mxu0 0.0
    %416 = vmatpush1.xpose.msra.mxu0 0.0
    %417 = vmatprep.subr.mxu0 0.0
    %418 = vmatpush1.xpose.msra.mxu0 0.0
    %419 = vmatprep.subr.mxu0 0.0
    %420 = vmatpush1.xpose.msra.mxu0 0.0
    %421 = vmatprep.subr.mxu0 0.0
    %422 = vmatpush1.xpose.msra.mxu0 0.0
    %423 = vmatprep.subr.mxu0 0.0
    %424 = vmatpush1.xpose.msra.mxu0 0.0
    %425 = vmatprep.subr.mxu0 0.0
    %426 = vmatpush1.xpose.msra.mxu0 0.0
    %427 = vmatprep.subr.mxu0 0.0
    %428 = vmatpush1.xpose.msra.mxu0 0.0
    %429 = vmatprep.subr.mxu0 0.0
    %430 = vmatpush1.xpose.msra.mxu0 0.0
    %431 = vmatprep.subr.mxu0 0.0
    %432 = vmatpush1.xpose.msra.mxu0 0.0
    %433 = vmatprep.subr.mxu0 0.0
    %434 = vmatpush1.xpose.msra.mxu0 0.0
    %435 = vmatprep.subr.mxu0 0.0
    %436 = vmatpush1.xpose.msra.mxu0 0.0
    %437 = vmatprep.subr.mxu0 0.0
    %438 = vmatpush1.xpose.msra.mxu0 0.0
    %439 = vmatprep.subr.mxu0 0.0
    %440 = vmatpush1.xpose.msra.mxu0 0.0
    %441 = vmatprep.subr.mxu0 0.0
    %442 = vmatpush1.xpose.msra.mxu0 0.0
    %443 = vmatprep.subr.mxu0 0.0
    %444 = vmatpush1.xpose.msra.mxu0 0.0
    %445 = vmatprep.subr.mxu0 0.0
    %446 = vmatpush1.xpose.msra.mxu0 0.0
    %447 = vmatprep.subr.mxu0 0.0
    %448 = vmatpush1.xpose.msra.mxu0 0.0
    %449 = vmatprep.subr.mxu0 0.0
    %450 = vmatpush1.xpose.msra.mxu0 0.0
    %451 = vmatprep.subr.mxu0 0.0
    %452 = vmatpush1.xpose.msra.mxu0 0.0
    %453 = vmatprep.mubr.f32.mxu0 0.0
    %454 = vmatmul.mubr.f32.gmra.mrb[0].mxu0 %v385
    %v455 = vpop.f32.mrb[0].mxu0
    %v456 = vadd.f32 %v212, %v455
    %v457 = vpop.f32.mrb[0].mxu0
    %458 = vdwg.mxu0
    %vm459 = vcmask 64512
    %v460 = vsel %vm459, %v379, -inf
    %461 = vmax.xlane.f32.xlu0 %v460
    %v462 = vpop.xlane.xlu0 %461
    %v463 = vsel %vm459, %v456, -inf
    %464 = vmax.xlane.f32.xlu0 %v463
    %v465 = vpop.xlane.xlu0 %464
    %v466 = vsub.f32 %v379, %v462
    %v467 = vsub.f32 %v456, %v465
    %v468 = vmul.f32 %v466, 1.442695
    %v469 = vpow.pop %v468
    %v470 = vmul.f32 %v467, 1.442695
    %v471 = vpow.pop %v470
    %v472 = vsel %vm459, %v469, 0.0
    %473 = vadd.xlane.f32.xlu0 %v472
    %v474 = vpop.xlane.xlu0 %473
    %v475 = vsel %vm459, %v471, 0.0
    %476 = vadd.xlane.f32.xlu0 %v475
    %v477 = vpop.xlane.xlu0 %476
    %v478 = vrcp.pop %v474
    %v479 = vrcp.pop %v477
    %v480 = vmul.f32 %v469, %v478
    %v481 = vmul.f32 %v471, %v479
    %482 = vrot.lane.b32.xlu0 %v296, 64
    %v483 = vpop.permute.xlu0 %482
    %v486 = vsel %vm459, %v480, 0
    %488 = vmatprep.subr.mxu0 0.0
    %489 = vmatpush1.msra.mxu0 %v483
    %490 = vmatprep.subr.mxu0 0.0
    %491 = vmatpush1.msra.mxu0 0.0
    %492 = vmatprep.subr.mxu0 0.0
    %493 = vmatpush1.msra.mxu0 0.0
    %494 = vmatprep.subr.mxu0 0.0
    %495 = vmatpush1.msra.mxu0 0.0
    %496 = vmatprep.subr.mxu0 0.0
    %497 = vmatpush1.msra.mxu0 0.0
    %498 = vmatprep.subr.mxu0 0.0
    %499 = vmatpush1.msra.mxu0 0.0
    %500 = vmatprep.subr.mxu0 0.0
    %501 = vmatpush1.msra.mxu0 0.0
    %502 = vmatprep.subr.mxu0 0.0
    %503 = vmatpush1.msra.mxu0 0.0
    %504 = vmatprep.subr.mxu0 0.0
    %505 = vmatpush1.msra.mxu0 0.0
    %506 = vmatprep.subr.mxu0 0.0
    %507 = vmatpush1.msra.mxu0 0.0
    %508 = vmatprep.subr.mxu0 0.0
    %509 = vmatpush1.msra.mxu0 0.0
    %510 = vmatprep.subr.mxu0 0.0
    %511 = vmatpush1.msra.mxu0 0.0
    %512 = vmatprep.subr.mxu0 0.0
    %513 = vmatpush1.msra.mxu0 0.0
    %514 = vmatprep.subr.mxu0 0.0
    %515 = vmatpush1.msra.mxu0 0.0
    %516 = vmatprep.subr.mxu0 0.0
    %517 = vmatpush1.msra.mxu0 0.0
    %518 = vmatprep.subr.mxu0 0.0
    %519 = vmatpush1.msra.mxu0 0.0
    %520 = vmatprep.subr.mxu0 0.0
    %521 = vmatpush1.msra.mxu0 0.0
    %522 = vmatprep.subr.mxu0 0.0
    %523 = vmatpush1.msra.mxu0 0.0
    %524 = vmatprep.subr.mxu0 0.0
    %525 = vmatpush1.msra.mxu0 0.0
    %526 = vmatprep.subr.mxu0 0.0
    %527 = vmatpush1.msra.mxu0 0.0
    %528 = vmatprep.subr.mxu0 0.0
    %529 = vmatpush1.msra.mxu0 0.0
    %530 = vmatprep.subr.mxu0 0.0
    %531 = vmatpush1.msra.mxu0 0.0
    %532 = vmatprep.subr.mxu0 0.0
    %533 = vmatpush1.msra.mxu0 0.0
    %534 = vmatprep.subr.mxu0 0.0
    %535 = vmatpush1.msra.mxu0 0.0
    %536 = vmatprep.subr.mxu0 0.0
    %537 = vmatpush1.msra.mxu0 0.0
    %538 = vmatprep.subr.mxu0 0.0
    %539 = vmatpush1.msra.mxu0 0.0
    %540 = vmatprep.subr.mxu0 0.0
    %541 = vmatpush1.msra.mxu0 0.0
    %542 = vmatprep.subr.mxu0 0.0
    %543 = vmatpush1.msra.mxu0 0.0
    %544 = vmatprep.subr.mxu0 0.0
    %545 = vmatpush1.msra.mxu0 0.0
    %546 = vmatprep.subr.mxu0 0.0
    %547 = vmatpush1.msra.mxu0 0.0
    %548 = vmatprep.subr.mxu0 0.0
    %549 = vmatpush1.msra.mxu0 0.0
    %550 = vmatprep.subr.mxu0 0.0
    %551 = vmatpush1.msra.mxu0 0.0
    %552 = vmatprep.mubr.f32.mxu0 0.0
    %553 = vmatmul.mubr.f32.gmra.mrb[0].mxu0 %v486
    %v554 = vpop.f32.mrb[0].mxu0
    %v555 = vadd.f32 0.0, %v554
    %v556 = vpop.f32.mrb[0].mxu0
    %557 = vdwg.mxu0
    %558 = vrot.lane.b32.xlu0 %v301, 64
    %v559 = vpop.permute.xlu0 %558
    %v562 = vsel %vm459, %v481, 0
    %564 = vmatprep.subr.mxu0 0.0
    %565 = vmatpush1.msra.mxu0 %v559
    %566 = vmatprep.subr.mxu0 0.0
    %567 = vmatpush1.msra.mxu0 0.0
    %568 = vmatprep.subr.mxu0 0.0
    %569 = vmatpush1.msra.mxu0 0.0
    %570 = vmatprep.subr.mxu0 0.0
    %571 = vmatpush1.msra.mxu0 0.0
    %572 = vmatprep.subr.mxu0 0.0
    %573 = vmatpush1.msra.mxu0 0.0
    %574 = vmatprep.subr.mxu0 0.0
    %575 = vmatpush1.msra.mxu0 0.0
    %576 = vmatprep.subr.mxu0 0.0
    %577 = vmatpush1.msra.mxu0 0.0
    %578 = vmatprep.subr.mxu0 0.0
    %579 = vmatpush1.msra.mxu0 0.0
    %580 = vmatprep.subr.mxu0 0.0
    %581 = vmatpush1.msra.mxu0 0.0
    %582 = vmatprep.subr.mxu0 0.0
    %583 = vmatpush1.msra.mxu0 0.0
    %584 = vmatprep.subr.mxu0 0.0
    %585 = vmatpush1.msra.mxu0 0.0
    %586 = vmatprep.subr.mxu0 0.0
    %587 = vmatpush1.msra.mxu0 0.0
    %588 = vmatprep.subr.mxu0 0.0
    %589 = vmatpush1.msra.mxu0 0.0
    %590 = vmatprep.subr.mxu0 0.0
    %591 = vmatpush1.msra.mxu0 0.0
    %592 = vmatprep.subr.mxu0 0.0
    %593 = vmatpush1.msra.mxu0 0.0
    %594 = vmatprep.subr.mxu0 0.0
    %595 = vmatpush1.msra.mxu0 0.0
    %596 = vmatprep.subr.mxu0 0.0
    %597 = vmatpush1.msra.mxu0 0.0
    %598 = vmatprep.subr.mxu0 0.0
    %599 = vmatpush1.msra.mxu0 0.0
    %600 = vmatprep.subr.mxu0 0.0
    %601 = vmatpush1.msra.mxu0 0.0
    %602 = vmatprep.subr.mxu0 0.0
    %603 = vmatpush1.msra.mxu0 0.0
    %604 = vmatprep.subr.mxu0 0.0
    %605 = vmatpush1.msra.mxu0 0.0
    %606 = vmatprep.subr.mxu0 0.0
    %607 = vmatpush1.msra.mxu0 0.0
    %608 = vmatprep.subr.mxu0 0.0
    %609 = vmatpush1.msra.mxu0 0.0
    %610 = vmatprep.subr.mxu0 0.0
    %611 = vmatpush1.msra.mxu0 0.0
    %612 = vmatprep.subr.mxu0 0.0
    %613 = vmatpush1.msra.mxu0 0.0
    %614 = vmatprep.subr.mxu0 0.0
    %615 = vmatpush1.msra.mxu0 0.0
    %616 = vmatprep.subr.mxu0 0.0
    %617 = vmatpush1.msra.mxu0 0.0
    %618 = vmatprep.subr.mxu0 0.0
    %619 = vmatpush1.msra.mxu0 0.0
    %620 = vmatprep.subr.mxu0 0.0
    %621 = vmatpush1.msra.mxu0 0.0
    %622 = vmatprep.subr.mxu0 0.0
    %623 = vmatpush1.msra.mxu0 0.0
    %624 = vmatprep.subr.mxu0 0.0
    %625 = vmatpush1.msra.mxu0 0.0
    %626 = vmatprep.subr.mxu0 0.0
    %627 = vmatpush1.msra.mxu0 0.0
    %628 = vmatprep.mubr.f32.mxu0 0.0
    %629 = vmatmul.mubr.f32.gmra.mrb[0].mxu0 %v562
    %v630 = vpop.f32.mrb[0].mxu0
    %v631 = vadd.f32 0.0, %v630
    %v632 = vpop.f32.mrb[0].mxu0
    %633 = vdwg.mxu0
    %v634 = vld [vmem:[%s1 + $0x88] sm:$0xff]
    %v635 = vld [vmem:[%s1 + $0x90] sm:$0xff]
    %636 = vrot.lane.b32.xlu0 %v296, 112
    %v637 = vpop.permute.xlu0 %636
    %638 = vrot.lane.b32.xlu0 %v296, 80
    %v639 = vpop.permute.xlu0 %638
    %v640 = vsel %vm307, %v637, 0
    %v642 = vsel %vm307, %v639, 0
    %644 = vmatprep.subr.mxu0 0.0
    %645 = vmatpush1.xpose.msra.mxu0 %v642
    %646 = vmatprep.subr.mxu0 0.0
    %647 = vmatpush1.xpose.msra.mxu0 0.0
    %648 = vmatprep.subr.mxu0 0.0
    %649 = vmatpush1.xpose.msra.mxu0 0.0
    %650 = vmatprep.subr.mxu0 0.0
    %651 = vmatpush1.xpose.msra.mxu0 0.0
    %652 = vmatprep.subr.mxu0 0.0
    %653 = vmatpush1.xpose.msra.mxu0 0.0
    %654 = vmatprep.subr.mxu0 0.0
    %655 = vmatpush1.xpose.msra.mxu0 0.0
    %656 = vmatprep.subr.mxu0 0.0
    %657 = vmatpush1.xpose.msra.mxu0 0.0
    %658 = vmatprep.subr.mxu0 0.0
    %659 = vmatpush1.xpose.msra.mxu0 0.0
    %660 = vmatprep.subr.mxu0 0.0
    %661 = vmatpush1.xpose.msra.mxu0 0.0
    %662 = vmatprep.subr.mxu0 0.0
    %663 = vmatpush1.xpose.msra.mxu0 0.0
    %664 = vmatprep.subr.mxu0 0.0
    %665 = vmatpush1.xpose.msra.mxu0 0.0
    %666 = vmatprep.subr.mxu0 0.0
    %667 = vmatpush1.xpose.msra.mxu0 0.0
    %668 = vmatprep.subr.mxu0 0.0
    %669 = vmatpush1.xpose.msra.mxu0 0.0
    %670 = vmatprep.subr.mxu0 0.0
    %671 = vmatpush1.xpose.msra.mxu0 0.0
    %672 = vmatprep.subr.mxu0 0.0
    %673 = vmatpush1.xpose.msra.mxu0 0.0
    %674 = vmatprep.subr.mxu0 0.0
    %675 = vmatpush1.xpose.msra.mxu0 0.0
    %676 = vmatprep.subr.mxu0 0.0
    %677 = vmatpush1.xpose.msra.mxu0 0.0
    %678 = vmatprep.subr.mxu0 0.0
    %679 = vmatpush1.xpose.msra.mxu0 0.0
    %680 = vmatprep.subr.mxu0 0.0
    %681 = vmatpush1.xpose.msra.mxu0 0.0
    %682 = vmatprep.subr.mxu0 0.0
    %683 = vmatpush1.xpose.msra.mxu0 0.0
    %684 = vmatprep.subr.mxu0 0.0
    %685 = vmatpush1.xpose.msra.mxu0 0.0
    %686 = vmatprep.subr.mxu0 0.0
    %687 = vmatpush1.xpose.msra.mxu0 0.0
    %688 = vmatprep.subr.mxu0 0.0
    %689 = vmatpush1.xpose.msra.mxu0 0.0
    %690 = vmatprep.subr.mxu0 0.0
    %691 = vmatpush1.xpose.msra.mxu0 0.0
    %692 = vmatprep.subr.mxu0 0.0
    %693 = vmatpush1.xpose.msra.mxu0 0.0
    %694 = vmatprep.subr.mxu0 0.0
    %695 = vmatpush1.xpose.msra.mxu0 0.0
    %696 = vmatprep.subr.mxu0 0.0
    %697 = vmatpush1.xpose.msra.mxu0 0.0
    %698 = vmatprep.subr.mxu0 0.0
    %699 = vmatpush1.xpose.msra.mxu0 0.0
    %700 = vmatprep.subr.mxu0 0.0
    %701 = vmatpush1.xpose.msra.mxu0 0.0
    %702 = vmatprep.subr.mxu0 0.0
    %703 = vmatpush1.xpose.msra.mxu0 0.0
    %704 = vmatprep.subr.mxu0 0.0
    %705 = vmatpush1.xpose.msra.mxu0 0.0
    %706 = vmatprep.subr.mxu0 0.0
    %707 = vmatpush1.xpose.msra.mxu0 0.0
    %708 = vmatprep.mubr.f32.mxu0 0.0
    %709 = vmatmul.mubr.f32.gmra.mrb[0].mxu0 %v640
    %v710 = vpop.f32.mrb[0].mxu0
    %v711 = vadd.f32 %v208, %v710
    %v712 = vpop.f32.mrb[0].mxu0
    %713 = vdwg.mxu0
    %714 = vrot.lane.b32.xlu0 %v301, 112
    %v715 = vpop.permute.xlu0 %714
    %716 = vrot.lane.b32.xlu0 %v301, 80
    %v717 = vpop.permute.xlu0 %716
    %v718 = vsel %vm307, %v715, 0
    %v720 = vsel %vm307, %v717, 0
    %722 = vmatprep.subr.mxu0 0.0
    %723 = vmatpush1.xpose.msra.mxu0 %v720
    %724 = vmatprep.subr.mxu0 0.0
    %725 = vmatpush1.xpose.msra.mxu0 0.0
    %726 = vmatprep.subr.mxu0 0.0
    %727 = vmatpush1.xpose.msra.mxu0 0.0
    %728 = vmatprep.subr.mxu0 0.0
    %729 = vmatpush1.xpose.msra.mxu0 0.0
    %730 = vmatprep.subr.mxu0 0.0
    %731 = vmatpush1.xpose.msra.mxu0 0.0
    %732 = vmatprep.subr.mxu0 0.0
    %733 = vmatpush1.xpose.msra.mxu0 0.0
    %734 = vmatprep.subr.mxu0 0.0
    %735 = vmatpush1.xpose.msra.mxu0 0.0
    %736 = vmatprep.subr.mxu0 0.0
    %737 = vmatpush1.xpose.msra.mxu0 0.0
    %738 = vmatprep.subr.mxu0 0.0
    %739 = vmatpush1.xpose.msra.mxu0 0.0
    %740 = vmatprep.subr.mxu0 0.0
    %741 = vmatpush1.xpose.msra.mxu0 0.0
    %742 = vmatprep.subr.mxu0 0.0
    %743 = vmatpush1.xpose.msra.mxu0 0.0
    %744 = vmatprep.subr.mxu0 0.0
    %745 = vmatpush1.xpose.msra.mxu0 0.0
    %746 = vmatprep.subr.mxu0 0.0
    %747 = vmatpush1.xpose.msra.mxu0 0.0
    %748 = vmatprep.subr.mxu0 0.0
    %749 = vmatpush1.xpose.msra.mxu0 0.0
    %750 = vmatprep.subr.mxu0 0.0
    %751 = vmatpush1.xpose.msra.mxu0 0.0
    %752 = vmatprep.subr.mxu0 0.0
    %753 = vmatpush1.xpose.msra.mxu0 0.0
    %754 = vmatprep.subr.mxu0 0.0
    %755 = vmatpush1.xpose.msra.mxu0 0.0
    %756 = vmatprep.subr.mxu0 0.0
    %757 = vmatpush1.xpose.msra.mxu0 0.0
    %758 = vmatprep.subr.mxu0 0.0
    %759 = vmatpush1.xpose.msra.mxu0 0.0
    %760 = vmatprep.subr.mxu0 0.0
    %761 = vmatpush1.xpose.msra.mxu0 0.0
    %762 = vmatprep.subr.mxu0 0.0
    %763 = vmatpush1.xpose.msra.mxu0 0.0
    %764 = vmatprep.subr.mxu0 0.0
    %765 = vmatpush1.xpose.msra.mxu0 0.0
    %766 = vmatprep.subr.mxu0 0.0
    %767 = vmatpush1.xpose.msra.mxu0 0.0
    %768 = vmatprep.subr.mxu0 0.0
    %769 = vmatpush1.xpose.msra.mxu0 0.0
    %770 = vmatprep.subr.mxu0 0.0
    %771 = vmatpush1.xpose.msra.mxu0 0.0
    %772 = vmatprep.subr.mxu0 0.0
    %773 = vmatpush1.xpose.msra.mxu0 0.0
    %774 = vmatprep.subr.mxu0 0.0
    %775 = vmatpush1.xpose.msra.mxu0 0.0
    %776 = vmatprep.subr.mxu0 0.0
    %777 = vmatpush1.xpose.msra.mxu0 0.0
    %778 = vmatprep.subr.mxu0 0.0
    %779 = vmatpush1.xpose.msra.mxu0 0.0
    %780 = vmatprep.subr.mxu0 0.0
    %781 = vmatpush1.xpose.msra.mxu0 0.0
    %782 = vmatprep.subr.mxu0 0.0
    %783 = vmatpush1.xpose.msra.mxu0 0.0
    %784 = vmatprep.subr.mxu0 0.0
    %785 = vmatpush1.xpose.msra.mxu0 0.0
    %786 = vmatprep.mubr.f32.mxu0 0.0
    %787 = vmatmul.mubr.f32.gmra.mrb[0].mxu0 %v718
    %v788 = vpop.f32.mrb[0].mxu0
    %v789 = vadd.f32 %v212, %v788
    %v790 = vpop.f32.mrb[0].mxu0
    %791 = vdwg.mxu0
    %v792 = vsel %vm459, %v711, -inf
    %793 = vmax.xlane.f32.xlu0 %v792
    %v794 = vpop.xlane.xlu0 %793
    %v795 = vsel %vm459, %v789, -inf
    %796 = vmax.xlane.f32.xlu0 %v795
    %v797 = vpop.xlane.xlu0 %796
    %v798 = vsub.f32 %v711, %v794
    %v799 = vsub.f32 %v789, %v797
    %v800 = vmul.f32 %v798, 1.442695
    %v801 = vpow.pop %v800
    %v802 = vmul.f32 %v799, 1.442695
    %v803 = vpow.pop %v802
    %v804 = vsel %vm459, %v801, 0.0
    %805 = vadd.xlane.f32.xlu0 %v804
    %v806 = vpop.xlane.xlu0 %805
    %v807 = vsel %vm459, %v803, 0.0
    %808 = vadd.xlane.f32.xlu0 %v807
    %v809 = vpop.xlane.xlu0 %808
    %v810 = vrcp.pop %v806
    %v811 = vrcp.pop %v809
    %v812 = vmul.f32 %v801, %v810
    %v813 = vmul.f32 %v803, %v811
    %814 = vrot.lane.b32.xlu0 %v296, 48
    %v815 = vpop.permute.xlu0 %814
    %v818 = vsel %vm459, %v812, 0
    %820 = vmatprep.subr.mxu0 0.0
    %821 = vmatpush1.msra.mxu0 %v815
    %822 = vmatprep.subr.mxu0 0.0
    %823 = vmatpush1.msra.mxu0 0.0
    %824 = vmatprep.subr.mxu0 0.0
    %825 = vmatpush1.msra.mxu0 0.0
    %826 = vmatprep.subr.mxu0 0.0
    %827 = vmatpush1.msra.mxu0 0.0
    %828 = vmatprep.subr.mxu0 0.0
    %829 = vmatpush1.msra.mxu0 0.0
    %830 = vmatprep.subr.mxu0 0.0
    %831 = vmatpush1.msra.mxu0 0.0
    %832 = vmatprep.subr.mxu0 0.0
    %833 = vmatpush1.msra.mxu0 0.0
    %834 = vmatprep.subr.mxu0 0.0
    %835 = vmatpush1.msra.mxu0 0.0
    %836 = vmatprep.subr.mxu0 0.0
    %837 = vmatpush1.msra.mxu0 0.0
    %838 = vmatprep.subr.mxu0 0.0
    %839 = vmatpush1.msra.mxu0 0.0
    %840 = vmatprep.subr.mxu0 0.0
    %841 = vmatpush1.msra.mxu0 0.0
    %842 = vmatprep.subr.mxu0 0.0
    %843 = vmatpush1.msra.mxu0 0.0
    %844 = vmatprep.subr.mxu0 0.0
    %845 = vmatpush1.msra.mxu0 0.0
    %846 = vmatprep.subr.mxu0 0.0
    %847 = vmatpush1.msra.mxu0 0.0
    %848 = vmatprep.subr.mxu0 0.0
    %849 = vmatpush1.msra.mxu0 0.0
    %850 = vmatprep.subr.mxu0 0.0
    %851 = vmatpush1.msra.mxu0 0.0
    %852 = vmatprep.subr.mxu0 0.0
    %853 = vmatpush1.msra.mxu0 0.0
    %854 = vmatprep.subr.mxu0 0.0
    %855 = vmatpush1.msra.mxu0 0.0
    %856 = vmatprep.subr.mxu0 0.0
    %857 = vmatpush1.msra.mxu0 0.0
    %858 = vmatprep.subr.mxu0 0.0
    %859 = vmatpush1.msra.mxu0 0.0
    %860 = vmatprep.subr.mxu0 0.0
    %861 = vmatpush1.msra.mxu0 0.0
    %862 = vmatprep.subr.mxu0 0.0
    %863 = vmatpush1.msra.mxu0 0.0
    %864 = vmatprep.subr.mxu0 0.0
    %865 = vmatpush1.msra.mxu0 0.0
    %866 = vmatprep.subr.mxu0 0.0
    %867 = vmatpush1.msra.mxu0 0.0
    %868 = vmatprep.subr.mxu0 0.0
    %869 = vmatpush1.msra.mxu0 0.0
    %870 = vmatprep.subr.mxu0 0.0
    %871 = vmatpush1.msra.mxu0 0.0
    %872 = vmatprep.subr.mxu0 0.0
    %873 = vmatpush1.msra.mxu0 0.0
    %874 = vmatprep.subr.mxu0 0.0
    %875 = vmatpush1.msra.mxu0 0.0
    %876 = vmatprep.subr.mxu0 0.0
    %877 = vmatpush1.msra.mxu0 0.0
    %878 = vmatprep.subr.mxu0 0.0
    %879 = vmatpush1.msra.mxu0 0.0
    %880 = vmatprep.subr.mxu0 0.0
    %881 = vmatpush1.msra.mxu0 0.0
    %882 = vmatprep.subr.mxu0 0.0
    %883 = vmatpush1.msra.mxu0 0.0
    %884 = vmatprep.mubr.f32.mxu0 0.0
    %885 = vmatmul.mubr.f32.gmra.mrb[0].mxu0 %v818
    %v886 = vpop.f32.mrb[0].mxu0
    %v887 = vadd.f32 0.0, %v886
    %v888 = vpop.f32.mrb[0].mxu0
    %889 = vdwg.mxu0
    %890 = vrot.lane.b32.xlu0 %v301, 48
    %v891 = vpop.permute.xlu0 %890
    %v894 = vsel %vm459, %v813, 0
    %896 = vmatprep.subr.mxu0 0.0
    %897 = vmatpush1.msra.mxu0 %v891
    %898 = vmatprep.subr.mxu0 0.0
    %899 = vmatpush1.msra.mxu0 0.0
    %900 = vmatprep.subr.mxu0 0.0
    %901 = vmatpush1.msra.mxu0 0.0
    %902 = vmatprep.subr.mxu0 0.0
    %903 = vmatpush1.msra.mxu0 0.0
    %904 = vmatprep.subr.mxu0 0.0
    %905 = vmatpush1.msra.mxu0 0.0
    %906 = vmatprep.subr.mxu0 0.0
    %907 = vmatpush1.msra.mxu0 0.0
    %908 = vmatprep.subr.mxu0 0.0
    %909 = vmatpush1.msra.mxu0 0.0
    %910 = vmatprep.subr.mxu0 0.0
    %911 = vmatpush1.msra.mxu0 0.0
    %912 = vmatprep.subr.mxu0 0.0
    %913 = vmatpush1.msra.mxu0 0.0
    %914 = vmatprep.subr.mxu0 0.0
    %915 = vmatpush1.msra.mxu0 0.0
    %916 = vmatprep.subr.mxu0 0.0
    %917 = vmatpush1.msra.mxu0 0.0
    %918 = vmatprep.subr.mxu0 0.0
    %919 = vmatpush1.msra.mxu0 0.0
    %920 = vmatprep.subr.mxu0 0.0
    %921 = vmatpush1.msra.mxu0 0.0
    %922 = vmatprep.subr.mxu0 0.0
    %923 = vmatpush1.msra.mxu0 0.0
    %924 = vmatprep.subr.mxu0 0.0
    %925 = vmatpush1.msra.mxu0 0.0
    %926 = vmatprep.subr.mxu0 0.0
    %927 = vmatpush1.msra.mxu0 0.0
    %928 = vmatprep.subr.mxu0 0.0
    %929 = vmatpush1.msra.mxu0 0.0
    %930 = vmatprep.subr.mxu0 0.0
    %931 = vmatpush1.msra.mxu0 0.0
    %932 = vmatprep.subr.mxu0 0.0
    %933 = vmatpush1.msra.mxu0 0.0
    %934 = vmatprep.subr.mxu0 0.0
    %935 = vmatpush1.msra.mxu0 0.0
    %936 = vmatprep.subr.mxu0 0.0
    %937 = vmatpush1.msra.mxu0 0.0
    %938 = vmatprep.subr.mxu0 0.0
    %939 = vmatpush1.msra.mxu0 0.0
    %940 = vmatprep.subr.mxu0 0.0
    %941 = vmatpush1.msra.mxu0 0.0
    %942 = vmatprep.subr.mxu0 0.0
    %943 = vmatpush1.msra.mxu0 0.0
    %944 = vmatprep.subr.mxu0 0.0
    %945 = vmatpush1.msra.mxu0 0.0
    %946 = vmatprep.subr.mxu0 0.0
    %947 = vmatpush1.msra.mxu0 0.0
    %948 = vmatprep.subr.mxu0 0.0
    %949 = vmatpush1.msra.mxu0 0.0
    %950 = vmatprep.subr.mxu0 0.0
    %951 = vmatpush1.msra.mxu0 0.0
    %952 = vmatprep.subr.mxu0 0.0
    %953 = vmatpush1.msra.mxu0 0.0
    %954 = vmatprep.subr.mxu0 0.0
    %955 = vmatpush1.msra.mxu0 0.0
    %956 = vmatprep.subr.mxu0 0.0
    %957 = vmatpush1.msra.mxu0 0.0
    %958 = vmatprep.subr.mxu0 0.0
    %959 = vmatpush1.msra.mxu0 0.0
    %960 = vmatprep.mubr.f32.mxu0 0.0
    %961 = vmatmul.mubr.f32.gmra.mrb[0].mxu0 %v894
    %v962 = vpop.f32.mrb[0].mxu0
    %v963 = vadd.f32 0.0, %v962
    %v964 = vpop.f32.mrb[0].mxu0
    %965 = vdwg.mxu0
    %v966 = vld [vmem:[%s1 + $0x98] sm:$0xff]
    %v967 = vld [vmem:[%s1 + $0xa0] sm:$0xff]
    %v969 = vsel %vm307, %v887, 0
    %v972 = vsel %vm307, %v963, 0
    %974 = vmatprep.subr.mxu0 0.0
    %975 = vmatpush1.msra.mxu0 %v966
    %976 = vmatprep.subr.mxu0 0.0
    %977 = vmatpush1.msra.mxu0 %v967
    %978 = vmatprep.subr.mxu0 0.0
    %979 = vmatpush1.msra.mxu0 0.0
    %980 = vmatprep.subr.mxu0 0.0
    %981 = vmatpush1.msra.mxu0 0.0
    %982 = vmatprep.subr.mxu0 0.0
    %983 = vmatpush1.msra.mxu0 0.0
    %984 = vmatprep.subr.mxu0 0.0
    %985 = vmatpush1.msra.mxu0 0.0
    %986 = vmatprep.subr.mxu0 0.0
    %987 = vmatpush1.msra.mxu0 0.0
    %988 = vmatprep.subr.mxu0 0.0
    %989 = vmatpush1.msra.mxu0 0.0
    %990 = vmatprep.subr.mxu0 0.0
    %991 = vmatpush1.msra.mxu0 0.0
    %992 = vmatprep.subr.mxu0 0.0
    %993 = vmatpush1.msra.mxu0 0.0
    %994 = vmatprep.subr.mxu0 0.0
    %995 = vmatpush1.msra.mxu0 0.0
    %996 = vmatprep.subr.mxu0 0.0
    %997 = vmatpush1.msra.mxu0 0.0
    %998 = vmatprep.subr.mxu0 0.0
    %999 = vmatpush1.msra.mxu0 0.0
    %1000 = vmatprep.subr.mxu0 0.0
    %1001 = vmatpush1.msra.mxu0 0.0
    %1002 = vmatprep.subr.mxu0 0.0
    %1003 = vmatpush1.msra.mxu0 0.0
    %1004 = vmatprep.subr.mxu0 0.0
    %1005 = vmatpush1.msra.mxu0 0.0
    %1006 = vmatprep.subr.mxu0 0.0
    %1007 = vmatpush1.msra.mxu0 0.0
    %1008 = vmatprep.subr.mxu0 0.0
    %1009 = vmatpush1.msra.mxu0 0.0
    %1010 = vmatprep.subr.mxu0 0.0
    %1011 = vmatpush1.msra.mxu0 0.0
    %1012 = vmatprep.subr.mxu0 0.0
    %1013 = vmatpush1.msra.mxu0 0.0
    %1014 = vmatprep.subr.mxu0 0.0
    %1015 = vmatpush1.msra.mxu0 0.0
    %1016 = vmatprep.subr.mxu0 0.0
    %1017 = vmatpush1.msra.mxu0 0.0
    %1018 = vmatprep.subr.mxu0 0.0
    %1019 = vmatpush1.msra.mxu0 0.0
    %1020 = vmatprep.subr.mxu0 0.0
    %1021 = vmatpush1.msra.mxu0 0.0
    %1022 = vmatprep.subr.mxu0 0.0
    %1023 = vmatpush1.msra.mxu0 0.0
    %1024 = vmatprep.subr.mxu0 0.0
    %1025 = vmatpush1.msra.mxu0 0.0
    %1026 = vmatprep.subr.mxu0 0.0
    %1027 = vmatpush1.msra.mxu0 0.0
    %1028 = vmatprep.subr.mxu0 0.0
    %1029 = vmatpush1.msra.mxu0 0.0
    %1030 = vmatprep.subr.mxu0 0.0
    %1031 = vmatpush1.msra.mxu0 0.0
    %1032 = vmatprep.subr.mxu0 0.0
    %1033 = vmatpush1.msra.mxu0 0.0
    %1034 = vmatprep.subr.mxu0 0.0
    %1035 = vmatpush1.msra.mxu0 0.0
    %1036 = vmatprep.subr.mxu0 0.0
    %1037 = vmatpush1.msra.mxu0 0.0
    %1038 = vmatprep.mubr.f32.mxu0 0.0
    %1039 = vmatmul.mubr.f32.gmra.mrb[0].mxu0 %v969
    %v1040 = vpop.f32.mrb[0].mxu0
    %v1041 = vadd.f32 0.0, %v1040
    %v1042 = vpop.f32.mrb[0].mxu0
    %1043 = vmatprep.mubr.f32.mxu0 0.0
    %1044 = vmatmul.mubr.f32.gmra.mrb[0].mxu0 %v972
    %v1045 = vpop.f32.mrb[0].mxu0
    %v1046 = vadd.f32 0.0, %v1045
    %v1047 = vpop.f32.mrb[0].mxu0
    %1048 = vdwg.mxu0
    %v1050 = vsel %vm307, %v555, 0
    %v1053 = vsel %vm307, %v631, 0
    %1055 = vmatprep.subr.mxu0 0.0
    %1056 = vmatpush1.msra.mxu0 %v634
    %1057 = vmatprep.subr.mxu0 0.0
    %1058 = vmatpush1.msra.mxu0 %v635
    %1059 = vmatprep.subr.mxu0 0.0
    %1060 = vmatpush1.msra.mxu0 0.0
    %1061 = vmatprep.subr.mxu0 0.0
    %1062 = vmatpush1.msra.mxu0 0.0
    %1063 = vmatprep.subr.mxu0 0.0
    %1064 = vmatpush1.msra.mxu0 0.0
    %1065 = vmatprep.subr.mxu0 0.0
    %1066 = vmatpush1.msra.mxu0 0.0
    %1067 = vmatprep.subr.mxu0 0.0
    %1068 = vmatpush1.msra.mxu0 0.0
    %1069 = vmatprep.subr.mxu0 0.0
    %1070 = vmatpush1.msra.mxu0 0.0
    %1071 = vmatprep.subr.mxu0 0.0
    %1072 = vmatpush1.msra.mxu0 0.0
    %1073 = vmatprep.subr.mxu0 0.0
    %1074 = vmatpush1.msra.mxu0 0.0
    %1075 = vmatprep.subr.mxu0 0.0
    %1076 = vmatpush1.msra.mxu0 0.0
    %1077 = vmatprep.subr.mxu0 0.0
    %1078 = vmatpush1.msra.mxu0 0.0
    %1079 = vmatprep.subr.mxu0 0.0
    %1080 = vmatpush1.msra.mxu0 0.0
    %1081 = vmatprep.subr.mxu0 0.0
    %1082 = vmatpush1.msra.mxu0 0.0
    %1083 = vmatprep.subr.mxu0 0.0
    %1084 = vmatpush1.msra.mxu0 0.0
    %1085 = vmatprep.subr.mxu0 0.0
    %1086 = vmatpush1.msra.mxu0 0.0
    %1087 = vmatprep.subr.mxu0 0.0
    %1088 = vmatpush1.msra.mxu0 0.0
    %1089 = vmatprep.subr.mxu0 0.0
    %1090 = vmatpush1.msra.mxu0 0.0
    %1091 = vmatprep.subr.mxu0 0.0
    %1092 = vmatpush1.msra.mxu0 0.0
    %1093 = vmatprep.subr.mxu0 0.0
    %1094 = vmatpush1.msra.mxu0 0.0
    %1095 = vmatprep.subr.mxu0 0.0
    %1096 = vmatpush1.msra.mxu0 0.0
    %1097 = vmatprep.subr.mxu0 0.0
    %1098 = vmatpush1.msra.mxu0 0.0
    %1099 = vmatprep.subr.mxu0 0.0
    %1100 = vmatpush1.msra.mxu0 0.0
    %1101 = vmatprep.subr.mxu0 0.0
    %1102 = vmatpush1.msra.mxu0 0.0
    %1103 = vmatprep.subr.mxu0 0.0
    %1104 = vmatpush1.msra.mxu0 0.0
    %1105 = vmatprep.subr.mxu0 0.0
    %1106 = vmatpush1.msra.mxu0 0.0
    %1107 = vmatprep.subr.mxu0 0.0
    %1108 = vmatpush1.msra.mxu0 0.0
    %1109 = vmatprep.subr.mxu0 0.0
    %1110 = vmatpush1.msra.mxu0 0.0
    %1111 = vmatprep.subr.mxu0 0.0
    %1112 = vmatpush1.msra.mxu0 0.0
    %1113 = vmatprep.subr.mxu0 0.0
    %1114 = vmatpush1.msra.mxu0 0.0
    %1115 = vmatprep.subr.mxu0 0.0
    %1116 = vmatpush1.msra.mxu0 0.0
    %1117 = vmatprep.subr.mxu0 0.0
    %1118 = vmatpush1.msra.mxu0 0.0
    %1119 = vmatprep.mubr.f32.mxu0 0.0
    %1120 = vmatmul.mubr.f32.gmra.mrb[0].mxu0 %v1050
    %v1121 = vpop.f32.mrb[0].mxu0
    %v1122 = vadd.f32 %v1041, %v1121
    %v1123 = vpop.f32.mrb[0].mxu0
    %1124 = vmatprep.mubr.f32.mxu0 0.0
    %1125 = vmatmul.mubr.f32.gmra.mrb[0].mxu0 %v1053
    %v1126 = vpop.f32.mrb[0].mxu0
    %v1127 = vadd.f32 %v1046, %v1126
    %v1128 = vpop.f32.mrb[0].mxu0
    %1129 = vdwg.mxu0
    %v1130 = vlaneseq
    %v1131 = vshrl.u32 %v1130, 7
    %v1132 = vsub.s32 3, %v1131
    %v1133 = vrot.slane %v18, %v1132
    %v1134 = vadd.f32 %v1122, %v1133
    %v1135 = vadd.f32 %v1127, %v1133
    %v1136 = vadd.f32 %v178, %v1134
    %v1137 = vadd.f32 %v179, %v1135
    %v1138 = vsel %vm140, %v1136, 0.0
    %1139 = vadd.xlane.f32.xlu0 %v1138
    %v1140 = vpop.xlane.xlu0 %1139
    %v1141 = vsel %vm140, %v1137, 0.0
    %1142 = vadd.xlane.f32.xlu0 %v1141
    %v1143 = vpop.xlane.xlu0 %1142
    %v1144 = vmul.f32 %v1140, %v147
    %v1145 = vmul.f32 %v1143, %v147
    %v1146 = vsub.f32 %v1136, %v1144
    %v1147 = vsub.f32 %v1137, %v1145
    %v1148 = vmul.f32 %v1146, %v1146
    %v1149 = vmul.f32 %v1147, %v1147
    %v1150 = vsel %vm140, %v1148, 0.0
    %1151 = vadd.xlane.f32.xlu0 %v1150
    %v1152 = vpop.xlane.xlu0 %1151
    %v1153 = vsel %vm140, %v1149, 0.0
    %1154 = vadd.xlane.f32.xlu0 %v1153
    %v1155 = vpop.xlane.xlu0 %1154
    %v1156 = vmul.f32 %v1152, %v147
    %v1157 = vmul.f32 %v1155, %v147
    %v1158 = vadd.f32 %v1156, 1e-12
    %v1159 = vadd.f32 %v1157, 1e-12
    %v1160 = vrsqrt.pop %v1158
    %v1161 = vrsqrt.pop %v1159
    %v1162 = vmul.f32 %v1146, %v1160
    %v1163 = vmul.f32 %v1147, %v1161
    %v1164 = vlaneseq
    %v1165 = vshrl.u32 %v1164, 7
    %v1166 = vsub.s32 4, %v1165
    %v1167 = vrot.slane %v18, %v1166
    %v1168 = vmul.f32 %v1162, %v1167
    %v1169 = vmul.f32 %v1163, %v1167
    %v1170 = vlaneseq
    %v1171 = vshrl.u32 %v1170, 7
    %v1172 = vsub.s32 5, %v1171
    %v1173 = vrot.slane %v18, %v1172
    %v1174 = vadd.f32 %v1168, %v1173
    %v1175 = vadd.f32 %v1169, %v1173
    %v1176 = vld [vmem:[%s2 + $0x20] sm:$0xff]
    %v1177 = vld [vmem:[%s2 + $0x28] sm:$0xff]
    %v1178 = vld [vmem:[%s2 + $0x30] sm:$0xff]
    %v1179 = vld [vmem:[%s2 + $0x38] sm:$0xff]
    %v1180 = vlaneseq
    %v1181 = vshrl.u32 %v1180, 7
    %v1182 = vsub.s32 6, %v1181
    %v1183 = vrot.slane %v18, %v1182
    %v1185 = vsel %vm140, %v1174, 0
    %v1188 = vsel %vm140, %v1175, 0
    %1190 = vmatprep.subr.mxu0 0.0
    %1191 = vmatpush1.msra.mxu0 %v1176
    %1192 = vmatprep.subr.mxu0 0.0
    %1193 = vmatpush1.msra.mxu0 %v1177
    %1194 = vmatprep.subr.mxu0 0.0
    %1195 = vmatpush1.msra.mxu0 %v1178
    %1196 = vmatprep.subr.mxu0 0.0
    %1197 = vmatpush1.msra.mxu0 %v1179
    %1198 = vmatprep.subr.mxu0 0.0
    %1199 = vmatpush1.msra.mxu0 0.0
    %1200 = vmatprep.subr.mxu0 0.0
    %1201 = vmatpush1.msra.mxu0 0.0
    %1202 = vmatprep.subr.mxu0 0.0
    %1203 = vmatpush1.msra.mxu0 0.0
    %1204 = vmatprep.subr.mxu0 0.0
    %1205 = vmatpush1.msra.mxu0 0.0
    %1206 = vmatprep.subr.mxu0 0.0
    %1207 = vmatpush1.msra.mxu0 0.0
    %1208 = vmatprep.subr.mxu0 0.0
    %1209 = vmatpush1.msra.mxu0 0.0
    %1210 = vmatprep.subr.mxu0 0.0
    %1211 = vmatpush1.msra.mxu0 0.0
    %1212 = vmatprep.subr.mxu0 0.0
    %1213 = vmatpush1.msra.mxu0 0.0
    %1214 = vmatprep.subr.mxu0 0.0
    %1215 = vmatpush1.msra.mxu0 0.0
    %1216 = vmatprep.subr.mxu0 0.0
    %1217 = vmatpush1.msra.mxu0 0.0
    %1218 = vmatprep.subr.mxu0 0.0
    %1219 = vmatpush1.msra.mxu0 0.0
    %1220 = vmatprep.subr.mxu0 0.0
    %1221 = vmatpush1.msra.mxu0 0.0
    %1222 = vmatprep.subr.mxu0 0.0
    %1223 = vmatpush1.msra.mxu0 0.0
    %1224 = vmatprep.subr.mxu0 0.0
    %1225 = vmatpush1.msra.mxu0 0.0
    %1226 = vmatprep.subr.mxu0 0.0
    %1227 = vmatpush1.msra.mxu0 0.0
    %1228 = vmatprep.subr.mxu0 0.0
    %1229 = vmatpush1.msra.mxu0 0.0
    %1230 = vmatprep.subr.mxu0 0.0
    %1231 = vmatpush1.msra.mxu0 0.0
    %1232 = vmatprep.subr.mxu0 0.0
    %1233 = vmatpush1.msra.mxu0 0.0
    %1234 = vmatprep.subr.mxu0 0.0
    %1235 = vmatpush1.msra.mxu0 0.0
    %1236 = vmatprep.subr.mxu0 0.0
    %1237 = vmatpush1.msra.mxu0 0.0
    %1238 = vmatprep.subr.mxu0 0.0
    %1239 = vmatpush1.msra.mxu0 0.0
    %1240 = vmatprep.subr.mxu0 0.0
    %1241 = vmatpush1.msra.mxu0 0.0
    %1242 = vmatprep.subr.mxu0 0.0
    %1243 = vmatpush1.msra.mxu0 0.0
    %1244 = vmatprep.subr.mxu0 0.0
    %1245 = vmatpush1.msra.mxu0 0.0
    %1246 = vmatprep.subr.mxu0 0.0
    %1247 = vmatpush1.msra.mxu0 0.0
    %1248 = vmatprep.subr.mxu0 0.0
    %1249 = vmatpush1.msra.mxu0 0.0
    %1250 = vmatprep.subr.mxu0 0.0
    %1251 = vmatpush1.msra.mxu0 0.0
    %1252 = vmatprep.subr.mxu0 0.0
    %1253 = vmatpush1.msra.mxu0 0.0
    %1254 = vmatprep.mubr.f32.mxu0 0.0
    %1255 = vmatmul.mubr.f32.gmra.mrb[0].mxu0 %v1185
    %v1256 = vpop.f32.mrb[0].mxu0
    %v1257 = vadd.f32 %v1183, %v1256
    %v1258 = vpop.f32.mrb[0].mxu0
    %1259 = vmatprep.mubr.f32.mxu0 0.0
    %1260 = vmatmul.mubr.f32.gmra.mrb[0].mxu0 %v1188
    %v1261 = vpop.f32.mrb[0].mxu0
    %v1262 = vadd.f32 %v1183, %v1261
    %v1263 = vpop.f32.mrb[0].mxu0
    %1264 = vdwg.mxu0
    %v1265 = vmul.f32 %v1257, 0.5
    %v1266 = vmul.f32 %v1262, 0.5
    %v1267 = vmul.f32 %v1257, 0.044715
    %v1268 = vmul.f32 %v1262, 0.044715
    %v1269 = vmul.f32 %v1267, %v1257
    %v1270 = vmul.f32 %v1268, %v1262
    %v1271 = vmul.f32 %v1269, %v1257
    %v1272 = vmul.f32 %v1270, %v1262
    %v1273 = vadd.f32 %v1257, %v1271
    %v1274 = vadd.f32 %v1262, %v1272
    %v1275 = vmul.f32 %v1273, 0.7978846
    %v1276 = vmul.f32 %v1274, 0.7978846
    %v1277 = vtanh.pop %v1275
    %v1278 = vtanh.pop %v1276
    %v1279 = vadd.f32 %v1277, 1.0
    %v1280 = vadd.f32 %v1278, 1.0
    %v1281 = vmul.f32 %v1265, %v1279
    %v1282 = vmul.f32 %v1266, %v1280
    %v1283 = vld [vmem:[%s1 + $0xa8] sm:$0xff]
    %v1284 = vld [vmem:[%s1 + $0xb0] sm:$0xff]
    %v1285 = vld [vmem:[%s1 + $0xb8] sm:$0xff]
    %v1286 = vld [vmem:[%s1 + $0xc0] sm:$0xff]
    %v1287 = vld [vmem:[%s1 + $0xc8] sm:$0xff]
    %v1288 = vld [vmem:[%s1 + $0xd0] sm:$0xff]
    %v1289 = vld [vmem:[%s1 + $0xd8] sm:$0xff]
    %v1290 = vld [vmem:[%s1 + $0xe0] sm:$0xff]
    %v1291 = vld [vmem:[%s1 + $0xe8] sm:$0xff]
    %v1292 = vld [vmem:[%s1 + $0xf0] sm:$0xff]
    %v1293 = vld [vmem:[%s1 + $0xf8] sm:$0xff]
    %v1294 = vld [vmem:[%s1 + $0x100] sm:$0xff]
    %v1295 = vld [vmem:[%s1 + $0x108] sm:$0xff]
    %v1296 = vld [vmem:[%s1 + $0x110] sm:$0xff]
    %v1297 = vld [vmem:[%s1 + $0x118] sm:$0xff]
    %v1298 = vld [vmem:[%s1 + $0x120] sm:$0xff]
    %v1299 = vlaneseq
    %v1300 = vshrl.u32 %v1299, 7
    %v1301 = vsub.s32 7, %v1300
    %v1302 = vrot.slane %v18, %v1301
    %1303 = vmatprep.subr.mxu0 0.0
    %1304 = vmatpush1.msra.mxu0 %v1283
    %1305 = vmatprep.subr.mxu0 0.0
    %1306 = vmatpush1.msra.mxu0 %v1284
    %1307 = vmatprep.subr.mxu0 0.0
    %1308 = vmatpush1.msra.mxu0 %v1285
    %1309 = vmatprep.subr.mxu0 0.0
    %1310 = vmatpush1.msra.mxu0 %v1286
    %1311 = vmatprep.subr.mxu0 0.0
    %1312 = vmatpush1.msra.mxu0 %v1287
    %1313 = vmatprep.subr.mxu0 0.0
    %1314 = vmatpush1.msra.mxu0 %v1288
    %1315 = vmatprep.subr.mxu0 0.0
    %1316 = vmatpush1.msra.mxu0 %v1289
    %1317 = vmatprep.subr.mxu0 0.0
    %1318 = vmatpush1.msra.mxu0 %v1290
    %1319 = vmatprep.subr.mxu0 0.0
    %1320 = vmatpush1.msra.mxu0 %v1291
    %1321 = vmatprep.subr.mxu0 0.0
    %1322 = vmatpush1.msra.mxu0 %v1292
    %1323 = vmatprep.subr.mxu0 0.0
    %1324 = vmatpush1.msra.mxu0 %v1293
    %1325 = vmatprep.subr.mxu0 0.0
    %1326 = vmatpush1.msra.mxu0 %v1294
    %1327 = vmatprep.subr.mxu0 0.0
    %1328 = vmatpush1.msra.mxu0 %v1295
    %1329 = vmatprep.subr.mxu0 0.0
    %1330 = vmatpush1.msra.mxu0 %v1296
    %1331 = vmatprep.subr.mxu0 0.0
    %1332 = vmatpush1.msra.mxu0 %v1297
    %1333 = vmatprep.subr.mxu0 0.0
    %1334 = vmatpush1.msra.mxu0 %v1298
    %1335 = vmatprep.subr.mxu0 0.0
    %1336 = vmatpush1.msra.mxu0 0.0
    %1337 = vmatprep.subr.mxu0 0.0
    %1338 = vmatpush1.msra.mxu0 0.0
    %1339 = vmatprep.subr.mxu0 0.0
    %1340 = vmatpush1.msra.mxu0 0.0
    %1341 = vmatprep.subr.mxu0 0.0
    %1342 = vmatpush1.msra.mxu0 0.0
    %1343 = vmatprep.subr.mxu0 0.0
    %1344 = vmatpush1.msra.mxu0 0.0
    %1345 = vmatprep.subr.mxu0 0.0
    %1346 = vmatpush1.msra.mxu0 0.0
    %1347 = vmatprep.subr.mxu0 0.0
    %1348 = vmatpush1.msra.mxu0 0.0
    %1349 = vmatprep.subr.mxu0 0.0
    %1350 = vmatpush1.msra.mxu0 0.0
    %1351 = vmatprep.subr.mxu0 0.0
    %1352 = vmatpush1.msra.mxu0 0.0
    %1353 = vmatprep.subr.mxu0 0.0
    %1354 = vmatpush1.msra.mxu0 0.0
    %1355 = vmatprep.subr.mxu0 0.0
    %1356 = vmatpush1.msra.mxu0 0.0
    %1357 = vmatprep.subr.mxu0 0.0
    %1358 = vmatpush1.msra.mxu0 0.0
    %1359 = vmatprep.subr.mxu0 0.0
    %1360 = vmatpush1.msra.mxu0 0.0
    %1361 = vmatprep.subr.mxu0 0.0
    %1362 = vmatpush1.msra.mxu0 0.0
    %1363 = vmatprep.subr.mxu0 0.0
    %1364 = vmatpush1.msra.mxu0 0.0
    %1365 = vmatprep.subr.mxu0 0.0
    %1366 = vmatpush1.msra.mxu0 0.0
    %1367 = vmatprep.mubr.f32.mxu0 0.0
    %1368 = vmatmul.mubr.f32.gmra.mrb[0].mxu0 %v1281
    %v1369 = vpop.f32.mrb[0].mxu0
    %v1370 = vadd.f32 %v1302, %v1369
    %v1371 = vpop.f32.mrb[0].mxu0
    %1372 = vmatprep.mubr.f32.mxu0 0.0
    %1373 = vmatmul.mubr.f32.gmra.mrb[0].mxu0 %v1282
    %v1374 = vpop.f32.mrb[0].mxu0
    %v1375 = vadd.f32 %v1302, %v1374
    %v1376 = vpop.f32.mrb[0].mxu0
    %1377 = vdwg.mxu0
    %v1378 = vadd.f32 %v1174, %v1370
    %v1379 = vadd.f32 %v1175, %v1375
    %v1380 = vsel %vm140, %v1378, 0.0
    %1381 = vadd.xlane.f32.xlu0 %v1380
    %v1382 = vpop.xlane.xlu0 %1381
    %v1383 = vsel %vm140, %v1379, 0.0
    %1384 = vadd.xlane.f32.xlu0 %v1383
    %v1385 = vpop.xlane.xlu0 %1384
    %v1386 = vmul.f32 %v1382, %v147
    %v1387 = vmul.f32 %v1385, %v147
    %v1388 = vsub.f32 %v1378, %v1386
    %v1389 = vsub.f32 %v1379, %v1387
    %v1390 = vmul.f32 %v1388, %v1388
    %v1391 = vmul.f32 %v1389, %v1389
    %v1392 = vsel %vm140, %v1390, 0.0
    %1393 = vadd.xlane.f32.xlu0 %v1392
    %v1394 = vpop.xlane.xlu0 %1393
    %v1395 = vsel %vm140, %v1391, 0.0
    %1396 = vadd.xlane.f32.xlu0 %v1395
    %v1397 = vpop.xlane.xlu0 %1396
    %v1398 = vmul.f32 %v1394, %v147
    %v1399 = vmul.f32 %v1397, %v147
    %v1400 = vadd.f32 %v1398, 1e-12
    %v1401 = vadd.f32 %v1399, 1e-12
    %v1402 = vrsqrt.pop %v1400
    %v1403 = vrsqrt.pop %v1401
    %v1404 = vmul.f32 %v1388, %v1402
    %v1405 = vmul.f32 %v1389, %v1403
    %v1406 = vlaneseq
    %v1407 = vshrl.u32 %v1406, 7
    %v1408 = vsub.s32 0, %v1407
    %v1409 = vrot.slane %v19, %v1408
    %v1410 = vmul.f32 %v1404, %v1409
    %v1411 = vmul.f32 %v1405, %v1409
    %v1412 = vlaneseq
    %v1413 = vshrl.u32 %v1412, 7
    %v1414 = vsub.s32 1, %v1413
    %v1415 = vrot.slane %v19, %v1414
    %v1416 = vadd.f32 %v1410, %v1415
    %v1417 = vadd.f32 %v1411, %v1415
    %v1418 = vld [vmem:[%s2 + $0x40] sm:$0xff]
    %v1419 = vld [vmem:[%s2 + $0x48] sm:$0xff]
    %v1420 = vld [vmem:[%s2 + $0x50] sm:$0xff]
    %v1421 = vld [vmem:[%s2 + $0x58] sm:$0xff]
    %v1422 = vlaneseq
    %v1423 = vshrl.u32 %v1422, 7
    %v1424 = vsub.s32 2, %v1423
    %v1425 = vrot.slane %v19, %v1424
    %v1427 = vsel %vm140, %v1416, 0
    %v1430 = vsel %vm140, %v1417, 0
    %1432 = vmatprep.subr.mxu0 0.0
    %1433 = vmatpush1.msra.mxu0 %v1418
    %1434 = vmatprep.subr.mxu0 0.0
    %1435 = vmatpush1.msra.mxu0 %v1419
    %1436 = vmatprep.subr.mxu0 0.0
    %1437 = vmatpush1.msra.mxu0 %v1420
    %1438 = vmatprep.subr.mxu0 0.0
    %1439 = vmatpush1.msra.mxu0 %v1421
    %1440 = vmatprep.subr.mxu0 0.0
    %1441 = vmatpush1.msra.mxu0 0.0
    %1442 = vmatprep.subr.mxu0 0.0
    %1443 = vmatpush1.msra.mxu0 0.0
    %1444 = vmatprep.subr.mxu0 0.0
    %1445 = vmatpush1.msra.mxu0 0.0
    %1446 = vmatprep.subr.mxu0 0.0
    %1447 = vmatpush1.msra.mxu0 0.0
    %1448 = vmatprep.subr.mxu0 0.0
    %1449 = vmatpush1.msra.mxu0 0.0
    %1450 = vmatprep.subr.mxu0 0.0
    %1451 = vmatpush1.msra.mxu0 0.0
    %1452 = vmatprep.subr.mxu0 0.0
    %1453 = vmatpush1.msra.mxu0 0.0
    %1454 = vmatprep.subr.mxu0 0.0
    %1455 = vmatpush1.msra.mxu0 0.0
    %1456 = vmatprep.subr.mxu0 0.0
    %1457 = vmatpush1.msra.mxu0 0.0
    %1458 = vmatprep.subr.mxu0 0.0
    %1459 = vmatpush1.msra.mxu0 0.0
    %1460 = vmatprep.subr.mxu0 0.0
    %1461 = vmatpush1.msra.mxu0 0.0
    %1462 = vmatprep.subr.mxu0 0.0
    %1463 = vmatpush1.msra.mxu0 0.0
    %1464 = vmatprep.subr.mxu0 0.0
    %1465 = vmatpush1.msra.mxu0 0.0
    %1466 = vmatprep.subr.mxu0 0.0
    %1467 = vmatpush1.msra.mxu0 0.0
    %1468 = vmatprep.subr.mxu0 0.0
    %1469 = vmatpush1.msra.mxu0 0.0
    %1470 = vmatprep.subr.mxu0 0.0
    %1471 = vmatpush1.msra.mxu0 0.0
    %1472 = vmatprep.subr.mxu0 0.0
    %1473 = vmatpush1.msra.mxu0 0.0
    %1474 = vmatprep.subr.mxu0 0.0
    %1475 = vmatpush1.msra.mxu0 0.0
    %1476 = vmatprep.subr.mxu0 0.0
    %1477 = vmatpush1.msra.mxu0 0.0
    %1478 = vmatprep.subr.mxu0 0.0
    %1479 = vmatpush1.msra.mxu0 0.0
    %1480 = vmatprep.subr.mxu0 0.0
    %1481 = vmatpush1.msra.mxu0 0.0
    %1482 = vmatprep.subr.mxu0 0.0
    %1483 = vmatpush1.msra.mxu0 0.0
    %1484 = vmatprep.subr.mxu0 0.0
    %1485 = vmatpush1.msra.mxu0 0.0
    %1486 = vmatprep.subr.mxu0 0.0
    %1487 = vmatpush1.msra.mxu0 0.0
    %1488 = vmatprep.subr.mxu0 0.0
    %1489 = vmatpush1.msra.mxu0 0.0
    %1490 = vmatprep.subr.mxu0 0.0
    %1491 = vmatpush1.msra.mxu0 0.0
    %1492 = vmatprep.subr.mxu0 0.0
    %1493 = vmatpush1.msra.mxu0 0.0
    %1494 = vmatprep.subr.mxu0 0.0
    %1495 = vmatpush1.msra.mxu0 0.0
    %1496 = vmatprep.mubr.f32.mxu0 0.0
    %1497 = vmatmul.mubr.f32.gmra.mrb[0].mxu0 %v1427
    %v1498 = vpop.f32.mrb[0].mxu0
    %v1499 = vadd.f32 %v1425, %v1498
    %v1500 = vpop.f32.mrb[0].mxu0
    %1501 = vmatprep.mubr.f32.mxu0 0.0
    %1502 = vmatmul.mubr.f32.gmra.mrb[0].mxu0 %v1430
    %v1503 = vpop.f32.mrb[0].mxu0
    %v1504 = vadd.f32 %v1425, %v1503
    %v1505 = vpop.f32.mrb[0].mxu0
    %1506 = vdwg.mxu0
    %1508 = vrot.lane.b32.xlu0 %v1499, 96
    %v1509 = vpop.permute.xlu0 %1508
    %v1510 = vsel %vm307, %v1499, 0
    %v1512 = vsel %vm307, %v1509, 0
    %1514 = vmatprep.subr.mxu0 0.0
    %1515 = vmatpush1.xpose.msra.mxu0 %v1512
    %1516 = vmatprep.subr.mxu0 0.0
    %1517 = vmatpush1.xpose.msra.mxu0 0.0
    %1518 = vmatprep.subr.mxu0 0.0
    %1519 = vmatpush1.xpose.msra.mxu0 0.0
    %1520 = vmatprep.subr.mxu0 0.0
    %1521 = vmatpush1.xpose.msra.mxu0 0.0
    %1522 = vmatprep.subr.mxu0 0.0
    %1523 = vmatpush1.xpose.msra.mxu0 0.0
    %1524 = vmatprep.subr.mxu0 0.0
    %1525 = vmatpush1.xpose.msra.mxu0 0.0
    %1526 = vmatprep.subr.mxu0 0.0
    %1527 = vmatpush1.xpose.msra.mxu0 0.0
    %1528 = vmatprep.subr.mxu0 0.0
    %1529 = vmatpush1.xpose.msra.mxu0 0.0
    %1530 = vmatprep.subr.mxu0 0.0
    %1531 = vmatpush1.xpose.msra.mxu0 0.0
    %1532 = vmatprep.subr.mxu0 0.0
    %1533 = vmatpush1.xpose.msra.mxu0 0.0
    %1534 = vmatprep.subr.mxu0 0.0
    %1535 = vmatpush1.xpose.msra.mxu0 0.0
    %1536 = vmatprep.subr.mxu0 0.0
    %1537 = vmatpush1.xpose.msra.mxu0 0.0
    %1538 = vmatprep.subr.mxu0 0.0
    %1539 = vmatpush1.xpose.msra.mxu0 0.0
    %1540 = vmatprep.subr.mxu0 0.0
    %1541 = vmatpush1.xpose.msra.mxu0 0.0
    %1542 = vmatprep.subr.mxu0 0.0
    %1543 = vmatpush1.xpose.msra.mxu0 0.0
    %1544 = vmatprep.subr.mxu0 0.0
    %1545 = vmatpush1.xpose.msra.mxu0 0.0
    %1546 = vmatprep.subr.mxu0 0.0
    %1547 = vmatpush1.xpose.msra.mxu0 0.0
    %1548 = vmatprep.subr.mxu0 0.0
    %1549 = vmatpush1.xpose.msra.mxu0 0.0
    %1550 = vmatprep.subr.mxu0 0.0
    %1551 = vmatpush1.xpose.msra.mxu0 0.0
    %1552 = vmatprep.subr.mxu0 0.0
    %1553 = vmatpush1.xpose.msra.mxu0 0.0
    %1554 = vmatprep.subr.mxu0 0.0
    %1555 = vmatpush1.xpose.msra.mxu0 0.0
    %1556 = vmatprep.subr.mxu0 0.0
    %1557 = vmatpush1.xpose.msra.mxu0 0.0
    %1558 = vmatprep.subr.mxu0 0.0
    %1559 = vmatpush1.xpose.msra.mxu0 0.0
    %1560 = vmatprep.subr.mxu0 0.0
    %1561 = vmatpush1.xpose.msra.mxu0 0.0
    %1562 = vmatprep.subr.mxu0 0.0
    %1563 = vmatpush1.xpose.msra.mxu0 0.0
    %1564 = vmatprep.subr.mxu0 0.0
    %1565 = vmatpush1.xpose.msra.mxu0 0.0
    %1566 = vmatprep.subr.mxu0 0.0
    %1567 = vmatpush1.xpose.msra.mxu0 0.0
    %1568 = vmatprep.subr.mxu0 0.0
    %1569 = vmatpush1.xpose.msra.mxu0 0.0
    %1570 = vmatprep.subr.mxu0 0.0
    %1571 = vmatpush1.xpose.msra.mxu0 0.0
    %1572 = vmatprep.subr.mxu0 0.0
    %1573 = vmatpush1.xpose.msra.mxu0 0.0
    %1574 = vmatprep.subr.mxu0 0.0
    %1575 = vmatpush1.xpose.msra.mxu0 0.0
    %1576 = vmatprep.subr.mxu0 0.0
    %1577 = vmatpush1.xpose.msra.mxu0 0.0
    %1578 = vmatprep.mubr.f32.mxu0 0.0
    %1579 = vmatmul.mubr.f32.gmra.mrb[0].mxu0 %v1510
    %v1580 = vpop.f32.mrb[0].mxu0
    %v1581 = vadd.f32 %v208, %v1580
    %v1582 = vpop.f32.mrb[0].mxu0
    %1583 = vdwg.mxu0
    %1585 = vrot.lane.b32.xlu0 %v1504, 96
    %v1586 = vpop.permute.xlu0 %1585
    %v1587 = vsel %vm307, %v1504, 0
    %v1589 = vsel %vm307, %v1586, 0
    %1591 = vmatprep.subr.mxu0 0.0
    %1592 = vmatpush1.xpose.msra.mxu0 %v1589
    %1593 = vmatprep.subr.mxu0 0.0
    %1594 = vmatpush1.xpose.msra.mxu0 0.0
    %1595 = vmatprep.subr.mxu0 0.0
    %1596 = vmatpush1.xpose.msra.mxu0 0.0
    %1597 = vmatprep.subr.mxu0 0.0
    %1598 = vmatpush1.xpose.msra.mxu0 0.0
    %1599 = vmatprep.subr.mxu0 0.0
    %1600 = vmatpush1.xpose.msra.mxu0 0.0
    %1601 = vmatprep.subr.mxu0 0.0
    %1602 = vmatpush1.xpose.msra.mxu0 0.0
    %1603 = vmatprep.subr.mxu0 0.0
    %1604 = vmatpush1.xpose.msra.mxu0 0.0
    %1605 = vmatprep.subr.mxu0 0.0
    %1606 = vmatpush1.xpose.msra.mxu0 0.0
    %1607 = vmatprep.subr.mxu0 0.0
    %1608 = vmatpush1.xpose.msra.mxu0 0.0
    %1609 = vmatprep.subr.mxu0 0.0
    %1610 = vmatpush1.xpose.msra.mxu0 0.0
    %1611 = vmatprep.subr.mxu0 0.0
    %1612 = vmatpush1.xpose.msra.mxu0 0.0
    %1613 = vmatprep.subr.mxu0 0.0
    %1614 = vmatpush1.xpose.msra.mxu0 0.0
    %1615 = vmatprep.subr.mxu0 0.0
    %1616 = vmatpush1.xpose.msra.mxu0 0.0
    %1617 = vmatprep.subr.mxu0 0.0
    %1618 = vmatpush1.xpose.msra.mxu0 0.0
    %1619 = vmatprep.subr.mxu0 0.0
    %1620 = vmatpush1.xpose.msra.mxu0 0.0
    %1621 = vmatprep.subr.mxu0 0.0
    %1622 = vmatpush1.xpose.msra.mxu0 0.0
    %1623 = vmatprep.subr.mxu0 0.0
    %1624 = vmatpush1.xpose.msra.mxu0 0.0
    %1625 = vmatprep.subr.mxu0 0.0
    %1626 = vmatpush1.xpose.msra.mxu0 0.0
    %1627 = vmatprep.subr.mxu0 0.0
    %1628 = vmatpush1.xpose.msra.mxu0 0.0
    %1629 = vmatprep.subr.mxu0 0.0
    %1630 = vmatpush1.xpose.msra.mxu0 0.0
    %1631 = vmatprep.subr.mxu0 0.0
    %1632 = vmatpush1.xpose.msra.mxu0 0.0
    %1633 = vmatprep.subr.mxu0 0.0
    %1634 = vmatpush1.xpose.msra.mxu0 0.0
    %1635 = vmatprep.subr.mxu0 0.0
    %1636 = vmatpush1.xpose.msra.mxu0 0.0
    %1637 = vmatprep.subr.mxu0 0.0
    %1638 = vmatpush1.xpose.msra.mxu0 0.0
    %1639 = vmatprep.subr.mxu0 0.0
    %1640 = vmatpush1.xpose.msra.mxu0 0.0
    %1641 = vmatprep.subr.mxu0 0.0
    %1642 = vmatpush1.xpose.msra.mxu0 0.0
    %1643 = vmatprep.subr.mxu0 0.0
    %1644 = vmatpush1.xpose.msra.mxu0 0.0
    %1645 = vmatprep.subr.mxu0 0.0
    %1646 = vmatpush1.xpose.msra.mxu0 0.0
    %1647 = vmatprep.subr.mxu0 0.0
    %1648 = vmatpush1.xpose.msra.mxu0 0.0
    %1649 = vmatprep.subr.mxu0 0.0
    %1650 = vmatpush1.xpose.msra.mxu0 0.0
    %1651 = vmatprep.subr.mxu0 0.0
    %1652 = vmatpush1.xpose.msra.mxu0 0.0
    %1653 = vmatprep.subr.mxu0 0.0
    %1654 = vmatpush1.xpose.msra.mxu0 0.0
    %1655 = vmatprep.mubr.f32.mxu0 0.0
    %1656 = vmatmul.mubr.f32.gmra.mrb[0].mxu0 %v1587
    %v1657 = vpop.f32.mrb[0].mxu0
    %v1658 = vadd.f32 %v212, %v1657
    %v1659 = vpop.f32.mrb[0].mxu0
    %1660 = vdwg.mxu0
    %v1661 = vsel %vm459, %v1581, -inf
    %1662 = vmax.xlane.f32.xlu0 %v1661
    %v1663 = vpop.xlane.xlu0 %1662
    %v1664 = vsel %vm459, %v1658, -inf
    %1665 = vmax.xlane.f32.xlu0 %v1664
    %v1666 = vpop.xlane.xlu0 %1665
    %v1667 = vsub.f32 %v1581, %v1663
    %v1668 = vsub.f32 %v1658, %v1666
    %v1669 = vmul.f32 %v1667, 1.442695
    %v1670 = vpow.pop %v1669
    %v1671 = vmul.f32 %v1668, 1.442695
    %v1672 = vpow.pop %v1671
    %v1673 = vsel %vm459, %v1670, 0.0
    %1674 = vadd.xlane.f32.xlu0 %v1673
    %v1675 = vpop.xlane.xlu0 %1674
    %v1676 = vsel %vm459, %v1672, 0.0
    %1677 = vadd.xlane.f32.xlu0 %v1676
    %v1678 = vpop.xlane.xlu0 %1677
    %v1679 = vrcp.pop %v1675
    %v1680 = vrcp.pop %v1678
    %v1681 = vmul.f32 %v1670, %v1679
    %v1682 = vmul.f32 %v1672, %v1680
    %1683 = vrot.lane.b32.xlu0 %v1499, 64
    %v1684 = vpop.permute.xlu0 %1683
    %v1687 = vsel %vm459, %v1681, 0
    %1689 = vmatprep.subr.mxu0 0.0
    %1690 = vmatpush1.msra.mxu0 %v1684
    %1691 = vmatprep.subr.mxu0 0.0
    %1692 = vmatpush1.msra.mxu0 0.0
    %1693 = vmatprep.subr.mxu0 0.0
    %1694 = vmatpush1.msra.mxu0 0.0
    %1695 = vmatprep.subr.mxu0 0.0
    %1696 = vmatpush1.msra.mxu0 0.0
    %1697 = vmatprep.subr.mxu0 0.0
    %1698 = vmatpush1.msra.mxu0 0.0
    %1699 = vmatprep.subr.mxu0 0.0
    %1700 = vmatpush1.msra.mxu0 0.0
    %1701 = vmatprep.subr.mxu0 0.0
    %1702 = vmatpush1.msra.mxu0 0.0
    %1703 = vmatprep.subr.mxu0 0.0
    %1704 = vmatpush1.msra.mxu0 0.0
    %1705 = vmatprep.subr.mxu0 0.0
    %1706 = vmatpush1.msra.mxu0 0.0
    %1707 = vmatprep.subr.mxu0 0.0
    %1708 = vmatpush1.msra.mxu0 0.0
    %1709 = vmatprep.subr.mxu0 0.0
    %1710 = vmatpush1.msra.mxu0 0.0
    %1711 = vmatprep.subr.mxu0 0.0
    %1712 = vmatpush1.msra.mxu0 0.0
    %1713 = vmatprep.subr.mxu0 0.0
    %1714 = vmatpush1.msra.mxu0 0.0
    %1715 = vmatprep.subr.mxu0 0.0
    %1716 = vmatpush1.msra.mxu0 0.0
    %1717 = vmatprep.subr.mxu0 0.0
    %1718 = vmatpush1.msra.mxu0 0.0
    %1719 = vmatprep.subr.mxu0 0.0
    %1720 = vmatpush1.msra.mxu0 0.0
    %1721 = vmatprep.subr.mxu0 0.0
    %1722 = vmatpush1.msra.mxu0 0.0
    %1723 = vmatprep.subr.mxu0 0.0
    %1724 = vmatpush1.msra.mxu0 0.0
    %1725 = vmatprep.subr.mxu0 0.0
    %1726 = vmatpush1.msra.mxu0 0.0
    %1727 = vmatprep.subr.mxu0 0.0
    %1728 = vmatpush1.msra.mxu0 0.0
    %1729 = vmatprep.subr.mxu0 0.0
    %1730 = vmatpush1.msra.mxu0 0.0
    %1731 = vmatprep.subr.mxu0 0.0
    %1732 = vmatpush1.msra.mxu0 0.0
    %1733 = vmatprep.subr.mxu0 0.0
    %1734 = vmatpush1.msra.mxu0 0.0
    %1735 = vmatprep.subr.mxu0 0.0
    %1736 = vmatpush1.msra.mxu0 0.0
    %1737 = vmatprep.subr.mxu0 0.0
    %1738 = vmatpush1.msra.mxu0 0.0
    %1739 = vmatprep.subr.mxu0 0.0
    %1740 = vmatpush1.msra.mxu0 0.0
    %1741 = vmatprep.subr.mxu0 0.0
    %1742 = vmatpush1.msra.mxu0 0.0
    %1743 = vmatprep.subr.mxu0 0.0
    %1744 = vmatpush1.msra.mxu0 0.0
    %1745 = vmatprep.subr.mxu0 0.0
    %1746 = vmatpush1.msra.mxu0 0.0
    %1747 = vmatprep.subr.mxu0 0.0
    %1748 = vmatpush1.msra.mxu0 0.0
    %1749 = vmatprep.subr.mxu0 0.0
    %1750 = vmatpush1.msra.mxu0 0.0
    %1751 = vmatprep.subr.mxu0 0.0
    %1752 = vmatpush1.msra.mxu0 0.0
    %1753 = vmatprep.mubr.f32.mxu0 0.0
    %1754 = vmatmul.mubr.f32.gmra.mrb[0].mxu0 %v1687
    %v1755 = vpop.f32.mrb[0].mxu0
    %v1756 = vadd.f32 0.0, %v1755
    %v1757 = vpop.f32.mrb[0].mxu0
    %1758 = vdwg.mxu0
    %1759 = vrot.lane.b32.xlu0 %v1504, 64
    %v1760 = vpop.permute.xlu0 %1759
    %v1763 = vsel %vm459, %v1682, 0
    %1765 = vmatprep.subr.mxu0 0.0
    %1766 = vmatpush1.msra.mxu0 %v1760
    %1767 = vmatprep.subr.mxu0 0.0
    %1768 = vmatpush1.msra.mxu0 0.0
    %1769 = vmatprep.subr.mxu0 0.0
    %1770 = vmatpush1.msra.mxu0 0.0
    %1771 = vmatprep.subr.mxu0 0.0
    %1772 = vmatpush1.msra.mxu0 0.0
    %1773 = vmatprep.subr.mxu0 0.0
    %1774 = vmatpush1.msra.mxu0 0.0
    %1775 = vmatprep.subr.mxu0 0.0
    %1776 = vmatpush1.msra.mxu0 0.0
    %1777 = vmatprep.subr.mxu0 0.0
    %1778 = vmatpush1.msra.mxu0 0.0
    %1779 = vmatprep.subr.mxu0 0.0
    %1780 = vmatpush1.msra.mxu0 0.0
    %1781 = vmatprep.subr.mxu0 0.0
    %1782 = vmatpush1.msra.mxu0 0.0
    %1783 = vmatprep.subr.mxu0 0.0
    %1784 = vmatpush1.msra.mxu0 0.0
    %1785 = vmatprep.subr.mxu0 0.0
    %1786 = vmatpush1.msra.mxu0 0.0
    %1787 = vmatprep.subr.mxu0 0.0
    %1788 = vmatpush1.msra.mxu0 0.0
    %1789 = vmatprep.subr.mxu0 0.0
    %1790 = vmatpush1.msra.mxu0 0.0
    %1791 = vmatprep.subr.mxu0 0.0
    %1792 = vmatpush1.msra.mxu0 0.0
    %1793 = vmatprep.subr.mxu0 0.0
    %1794 = vmatpush1.msra.mxu0 0.0
    %1795 = vmatprep.subr.mxu0 0.0
    %1796 = vmatpush1.msra.mxu0 0.0
    %1797 = vmatprep.subr.mxu0 0.0
    %1798 = vmatpush1.msra.mxu0 0.0
    %1799 = vmatprep.subr.mxu0 0.0
    %1800 = vmatpush1.msra.mxu0 0.0
    %1801 = vmatprep.subr.mxu0 0.0
    %1802 = vmatpush1.msra.mxu0 0.0
    %1803 = vmatprep.subr.mxu0 0.0
    %1804 = vmatpush1.msra.mxu0 0.0
    %1805 = vmatprep.subr.mxu0 0.0
    %1806 = vmatpush1.msra.mxu0 0.0
    %1807 = vmatprep.subr.mxu0 0.0
    %1808 = vmatpush1.msra.mxu0 0.0
    %1809 = vmatprep.subr.mxu0 0.0
    %1810 = vmatpush1.msra.mxu0 0.0
    %1811 = vmatprep.subr.mxu0 0.0
    %1812 = vmatpush1.msra.mxu0 0.0
    %1813 = vmatprep.subr.mxu0 0.0
    %1814 = vmatpush1.msra.mxu0 0.0
    %1815 = vmatprep.subr.mxu0 0.0
    %1816 = vmatpush1.msra.mxu0 0.0
    %1817 = vmatprep.subr.mxu0 0.0
    %1818 = vmatpush1.msra.mxu0 0.0
    %1819 = vmatprep.subr.mxu0 0.0
    %1820 = vmatpush1.msra.mxu0 0.0
    %1821 = vmatprep.subr.mxu0 0.0
    %1822 = vmatpush1.msra.mxu0 0.0
    %1823 = vmatprep.subr.mxu0 0.0
    %1824 = vmatpush1.msra.mxu0 0.0
    %1825 = vmatprep.subr.mxu0 0.0
    %1826 = vmatpush1.msra.mxu0 0.0
    %1827 = vmatprep.subr.mxu0 0.0
    %1828 = vmatpush1.msra.mxu0 0.0
    %1829 = vmatprep.mubr.f32.mxu0 0.0
    %1830 = vmatmul.mubr.f32.gmra.mrb[0].mxu0 %v1763
    %v1831 = vpop.f32.mrb[0].mxu0
    %v1832 = vadd.f32 0.0, %v1831
    %v1833 = vpop.f32.mrb[0].mxu0
    %1834 = vdwg.mxu0
    %v1835 = vld [vmem:[%s1 + $0x128] sm:$0xff]
    %v1836 = vld [vmem:[%s1 + $0x130] sm:$0xff]
    %1837 = vrot.lane.b32.xlu0 %v1499, 112
    %v1838 = vpop.permute.xlu0 %1837
    %1839 = vrot.lane.b32.xlu0 %v1499, 80
    %v1840 = vpop.permute.xlu0 %1839
    %v1841 = vsel %vm307, %v1838, 0
    %v1843 = vsel %vm307, %v1840, 0
    %1845 = vmatprep.subr.mxu0 0.0
    %1846 = vmatpush1.xpose.msra.mxu0 %v1843
    %1847 = vmatprep.subr.mxu0 0.0
    %1848 = vmatpush1.xpose.msra.mxu0 0.0
    %1849 = vmatprep.subr.mxu0 0.0
    %1850 = vmatpush1.xpose.msra.mxu0 0.0
    %1851 = vmatprep.subr.mxu0 0.0
    %1852 = vmatpush1.xpose.msra.mxu0 0.0
    %1853 = vmatprep.subr.mxu0 0.0
    %1854 = vmatpush1.xpose.msra.mxu0 0.0
    %1855 = vmatprep.subr.mxu0 0.0
    %1856 = vmatpush1.xpose.msra.mxu0 0.0
    %1857 = vmatprep.subr.mxu0 0.0
    %1858 = vmatpush1.xpose.msra.mxu0 0.0
    %1859 = vmatprep.subr.mxu0 0.0
    %1860 = vmatpush1.xpose.msra.mxu0 0.0
    %1861 = vmatprep.subr.mxu0 0.0
    %1862 = vmatpush1.xpose.msra.mxu0 0.0
    %1863 = vmatprep.subr.mxu0 0.0
    %1864 = vmatpush1.xpose.msra.mxu0 0.0
    %1865 = vmatprep.subr.mxu0 0.0
    %1866 = vmatpush1.xpose.msra.mxu0 0.0
    %1867 = vmatprep.subr.mxu0 0.0
    %1868 = vmatpush1.xpose.msra.mxu0 0.0
    %1869 = vmatprep.subr.mxu0 0.0
    %1870 = vmatpush1.xpose.msra.mxu0 0.0
    %1871 = vmatprep.subr.mxu0 0.0
    %1872 = vmatpush1.xpose.msra.mxu0 0.0
    %1873 = vmatprep.subr.mxu0 0.0
    %1874 = vmatpush1.xpose.msra.mxu0 0.0
    %1875 = vmatprep.subr.mxu0 0.0
    %1876 = vmatpush1.xpose.msra.mxu0 0.0
    %1877 = vmatprep.subr.mxu0 0.0
    %1878 = vmatpush1.xpose.msra.mxu0 0.0
    %1879 = vmatprep.subr.mxu0 0.0
    %1880 = vmatpush1.xpose.msra.mxu0 0.0
    %1881 = vmatprep.subr.mxu0 0.0
    %1882 = vmatpush1.xpose.msra.mxu0 0.0
    %1883 = vmatprep.subr.mxu0 0.0
    %1884 = vmatpush1.xpose.msra.mxu0 0.0
    %1885 = vmatprep.subr.mxu0 0.0
    %1886 = vmatpush1.xpose.msra.mxu0 0.0
    %1887 = vmatprep.subr.mxu0 0.0
    %1888 = vmatpush1.xpose.msra.mxu0 0.0
    %1889 = vmatprep.subr.mxu0 0.0
    %1890 = vmatpush1.xpose.msra.mxu0 0.0
    %1891 = vmatprep.subr.mxu0 0.0
    %1892 = vmatpush1.xpose.msra.mxu0 0.0
    %1893 = vmatprep.subr.mxu0 0.0
    %1894 = vmatpush1.xpose.msra.mxu0 0.0
    %1895 = vmatprep.subr.mxu0 0.0
    %1896 = vmatpush1.xpose.msra.mxu0 0.0
    %1897 = vmatprep.subr.mxu0 0.0
    %1898 = vmatpush1.xpose.msra.mxu0 0.0
    %1899 = vmatprep.subr.mxu0 0.0
    %1900 = vmatpush1.xpose.msra.mxu0 0.0
    %1901 = vmatprep.subr.mxu0 0.0
    %1902 = vmatpush1.xpose.msra.mxu0 0.0
    %1903 = vmatprep.subr.mxu0 0.0
    %1904 = vmatpush1.xpose.msra.mxu0 0.0
    %1905 = vmatprep.subr.mxu0 0.0
    %1906 = vmatpush1.xpose.msra.mxu0 0.0
    %1907 = vmatprep.subr.mxu0 0.0
    %1908 = vmatpush1.xpose.msra.mxu0 0.0
    %1909 = vmatprep.mubr.f32.mxu0 0.0
    %1910 = vmatmul.mubr.f32.gmra.mrb[0].mxu0 %v1841
    %v1911 = vpop.f32.mrb[0].mxu0
    %v1912 = vadd.f32 %v208, %v1911
    %v1913 = vpop.f32.mrb[0].mxu0
    %1914 = vdwg.mxu0
    %1915 = vrot.lane.b32.xlu0 %v1504, 112
    %v1916 = vpop.permute.xlu0 %1915
    %1917 = vrot.lane.b32.xlu0 %v1504, 80
    %v1918 = vpop.permute.xlu0 %1917
    %v1919 = vsel %vm307, %v1916, 0
    %v1921 = vsel %vm307, %v1918, 0
    %1923 = vmatprep.subr.mxu0 0.0
    %1924 = vmatpush1.xpose.msra.mxu0 %v1921
    %1925 = vmatprep.subr.mxu0 0.0
    %1926 = vmatpush1.xpose.msra.mxu0 0.0
    %1927 = vmatprep.subr.mxu0 0.0
    %1928 = vmatpush1.xpose.msra.mxu0 0.0
    %1929 = vmatprep.subr.mxu0 0.0
    %1930 = vmatpush1.xpose.msra.mxu0 0.0
    %1931 = vmatprep.subr.mxu0 0.0
    %1932 = vmatpush1.xpose.msra.mxu0 0.0
    %1933 = vmatprep.subr.mxu0 0.0
    %1934 = vmatpush1.xpose.msra.mxu0 0.0
    %1935 = vmatprep.subr.mxu0 0.0
    %1936 = vmatpush1.xpose.msra.mxu0 0.0
    %1937 = vmatprep.subr.mxu0 0.0
    %1938 = vmatpush1.xpose.msra.mxu0 0.0
    %1939 = vmatprep.subr.mxu0 0.0
    %1940 = vmatpush1.xpose.msra.mxu0 0.0
    %1941 = vmatprep.subr.mxu0 0.0
    %1942 = vmatpush1.xpose.msra.mxu0 0.0
    %1943 = vmatprep.subr.mxu0 0.0
    %1944 = vmatpush1.xpose.msra.mxu0 0.0
    %1945 = vmatprep.subr.mxu0 0.0
    %1946 = vmatpush1.xpose.msra.mxu0 0.0
    %1947 = vmatprep.subr.mxu0 0.0
    %1948 = vmatpush1.xpose.msra.mxu0 0.0
    %1949 = vmatprep.subr.mxu0 0.0
    %1950 = vmatpush1.xpose.msra.mxu0 0.0
    %1951 = vmatprep.subr.mxu0 0.0
    %1952 = vmatpush1.xpose.msra.mxu0 0.0
    %1953 = vmatprep.subr.mxu0 0.0
    %1954 = vmatpush1.xpose.msra.mxu0 0.0
    %1955 = vmatprep.subr.mxu0 0.0
    %1956 = vmatpush1.xpose.msra.mxu0 0.0
    %1957 = vmatprep.subr.mxu0 0.0
    %1958 = vmatpush1.xpose.msra.mxu0 0.0
    %1959 = vmatprep.subr.mxu0 0.0
    %1960 = vmatpush1.xpose.msra.mxu0 0.0
    %1961 = vmatprep.subr.mxu0 0.0
    %1962 = vmatpush1.xpose.msra.mxu0 0.0
    %1963 = vmatprep.subr.mxu0 0.0
    %1964 = vmatpush1.xpose.msra.mxu0 0.0
    %1965 = vmatprep.subr.mxu0 0.0
    %1966 = vmatpush1.xpose.msra.mxu0 0.0
    %1967 = vmatprep.subr.mxu0 0.0
    %1968 = vmatpush1.xpose.msra.mxu0 0.0
    %1969 = vmatprep.subr.mxu0 0.0
    %1970 = vmatpush1.xpose.msra.mxu0 0.0
    %1971 = vmatprep.subr.mxu0 0.0
    %1972 = vmatpush1.xpose.msra.mxu0 0.0
    %1973 = vmatprep.subr.mxu0 0.0
    %1974 = vmatpush1.xpose.msra.mxu0 0.0
    %1975 = vmatprep.subr.mxu0 0.0
    %1976 = vmatpush1.xpose.msra.mxu0 0.0
    %1977 = vmatprep.subr.mxu0 0.0
    %1978 = vmatpush1.xpose.msra.mxu0 0.0
    %1979 = vmatprep.subr.mxu0 0.0
    %1980 = vmatpush1.xpose.msra.mxu0 0.0
    %1981 = vmatprep.subr.mxu0 0.0
    %1982 = vmatpush1.xpose.msra.mxu0 0.0
    %1983 = vmatprep.subr.mxu0 0.0
    %1984 = vmatpush1.xpose.msra.mxu0 0.0
    %1985 = vmatprep.subr.mxu0 0.0
    %1986 = vmatpush1.xpose.msra.mxu0 0.0
    %1987 = vmatprep.mubr.f32.mxu0 0.0
    %1988 = vmatmul.mubr.f32.gmra.mrb[0].mxu0 %v1919
    %v1989 = vpop.f32.mrb[0].mxu0
    %v1990 = vadd.f32 %v212, %v1989
    %v1991 = vpop.f32.mrb[0].mxu0
    %1992 = vdwg.mxu0
    %v1993 = vsel %vm459, %v1912, -inf
    %1994 = vmax.xlane.f32.xlu0 %v1993
    %v1995 = vpop.xlane.xlu0 %1994
    %v1996 = vsel %vm459, %v1990, -inf
    %1997 = vmax.xlane.f32.xlu0 %v1996
    %v1998 = vpop.xlane.xlu0 %1997
    %v1999 = vsub.f32 %v1912, %v1995
    %v2000 = vsub.f32 %v1990, %v1998
    %v2001 = vmul.f32 %v1999, 1.442695
    %v2002 = vpow.pop %v2001
    %v2003 = vmul.f32 %v2000, 1.442695
    %v2004 = vpow.pop %v2003
    %v2005 = vsel %vm459, %v2002, 0.0
    %2006 = vadd.xlane.f32.xlu0 %v2005
    %v2007 = vpop.xlane.xlu0 %2006
    %v2008 = vsel %vm459, %v2004, 0.0
    %2009 = vadd.xlane.f32.xlu0 %v2008
    %v2010 = vpop.xlane.xlu0 %2009
    %v2011 = vrcp.pop %v2007
    %v2012 = vrcp.pop %v2010
    %v2013 = vmul.f32 %v2002, %v2011
    %v2014 = vmul.f32 %v2004, %v2012
    %2015 = vrot.lane.b32.xlu0 %v1499, 48
    %v2016 = vpop.permute.xlu0 %2015
    %v2019 = vsel %vm459, %v2013, 0
    %2021 = vmatprep.subr.mxu0 0.0
    %2022 = vmatpush1.msra.mxu0 %v2016
    %2023 = vmatprep.subr.mxu0 0.0
    %2024 = vmatpush1.msra.mxu0 0.0
    %2025 = vmatprep.subr.mxu0 0.0
    %2026 = vmatpush1.msra.mxu0 0.0
    %2027 = vmatprep.subr.mxu0 0.0
    %2028 = vmatpush1.msra.mxu0 0.0
    %2029 = vmatprep.subr.mxu0 0.0
    %2030 = vmatpush1.msra.mxu0 0.0
    %2031 = vmatprep.subr.mxu0 0.0
    %2032 = vmatpush1.msra.mxu0 0.0
    %2033 = vmatprep.subr.mxu0 0.0
    %2034 = vmatpush1.msra.mxu0 0.0
    %2035 = vmatprep.subr.mxu0 0.0
    %2036 = vmatpush1.msra.mxu0 0.0
    %2037 = vmatprep.subr.mxu0 0.0
    %2038 = vmatpush1.msra.mxu0 0.0
    %2039 = vmatprep.subr.mxu0 0.0
    %2040 = vmatpush1.msra.mxu0 0.0
    %2041 = vmatprep.subr.mxu0 0.0
    %2042 = vmatpush1.msra.mxu0 0.0
    %2043 = vmatprep.subr.mxu0 0.0
    %2044 = vmatpush1.msra.mxu0 0.0
    %2045 = vmatprep.subr.mxu0 0.0
    %2046 = vmatpush1.msra.mxu0 0.0
    %2047 = vmatprep.subr.mxu0 0.0
    %2048 = vmatpush1.msra.mxu0 0.0
    %2049 = vmatprep.subr.mxu0 0.0
    %2050 = vmatpush1.msra.mxu0 0.0
    %2051 = vmatprep.subr.mxu0 0.0
    %2052 = vmatpush1.msra.mxu0 0.0
    %2053 = vmatprep.subr.mxu0 0.0
    %2054 = vmatpush1.msra.mxu0 0.0
    %2055 = vmatprep.subr.mxu0 0.0
    %2056 = vmatpush1.msra.mxu0 0.0
    %2057 = vmatprep.subr.mxu0 0.0
    %2058 = vmatpush1.msra.mxu0 0.0
    %2059 = vmatprep.subr.mxu0 0.0
    %2060 = vmatpush1.msra.mxu0 0.0
    %2061 = vmatprep.subr.mxu0 0.0
    %2062 = vmatpush1.msra.mxu0 0.0
    %2063 = vmatprep.subr.mxu0 0.0
    %2064 = vmatpush1.msra.mxu0 0.0
    %2065 = vmatprep.subr.mxu0 0.0
    %2066 = vmatpush1.msra.mxu0 0.0
    %2067 = vmatprep.subr.mxu0 0.0
    %2068 = vmatpush1.msra.mxu0 0.0
    %2069 = vmatprep.subr.mxu0 0.0
    %2070 = vmatpush1.msra.mxu0 0.0
    %2071 = vmatprep.subr.mxu0 0.0
    %2072 = vmatpush1.msra.mxu0 0.0
    %2073 = vmatprep.subr.mxu0 0.0
    %2074 = vmatpush1.msra.mxu0 0.0
    %2075 = vmatprep.subr.mxu0 0.0
    %2076 = vmatpush1.msra.mxu0 0.0
    %2077 = vmatprep.subr.mxu0 0.0
    %2078 = vmatpush1.msra.mxu0 0.0
    %2079 = vmatprep.subr.mxu0 0.0
    %2080 = vmatpush1.msra.mxu0 0.0
    %2081 = vmatprep.subr.mxu0 0.0
    %2082 = vmatpush1.msra.mxu0 0.0
    %2083 = vmatprep.subr.mxu0 0.0
    %2084 = vmatpush1.msra.mxu0 0.0
    %2085 = vmatprep.mubr.f32.mxu0 0.0
    %2086 = vmatmul.mubr.f32.gmra.mrb[0].mxu0 %v2019
    %v2087 = vpop.f32.mrb[0].mxu0
    %v2088 = vadd.f32 0.0, %v2087
    %v2089 = vpop.f32.mrb[0].mxu0
    %2090 = vdwg.mxu0
    %2091 = vrot.lane.b32.xlu0 %v1504, 48
    %v2092 = vpop.permute.xlu0 %2091
    %v2095 = vsel %vm459, %v2014, 0
    %2097 = vmatprep.subr.mxu0 0.0
    %2098 = vmatpush1.msra.mxu0 %v2092
    %2099 = vmatprep.subr.mxu0 0.0
    %2100 = vmatpush1.msra.mxu0 0.0
    %2101 = vmatprep.subr.mxu0 0.0
    %2102 = vmatpush1.msra.mxu0 0.0
    %2103 = vmatprep.subr.mxu0 0.0
    %2104 = vmatpush1.msra.mxu0 0.0
    %2105 = vmatprep.subr.mxu0 0.0
    %2106 = vmatpush1.msra.mxu0 0.0
    %2107 = vmatprep.subr.mxu0 0.0
    %2108 = vmatpush1.msra.mxu0 0.0
    %2109 = vmatprep.subr.mxu0 0.0
    %2110 = vmatpush1.msra.mxu0 0.0
    %2111 = vmatprep.subr.mxu0 0.0
    %2112 = vmatpush1.msra.mxu0 0.0
    %2113 = vmatprep.subr.mxu0 0.0
    %2114 = vmatpush1.msra.mxu0 0.0
    %2115 = vmatprep.subr.mxu0 0.0
    %2116 = vmatpush1.msra.mxu0 0.0
    %2117 = vmatprep.subr.mxu0 0.0
    %2118 = vmatpush1.msra.mxu0 0.0
    %2119 = vmatprep.subr.mxu0 0.0
    %2120 = vmatpush1.msra.mxu0 0.0
    %2121 = vmatprep.subr.mxu0 0.0
    %2122 = vmatpush1.msra.mxu0 0.0
    %2123 = vmatprep.subr.mxu0 0.0
    %2124 = vmatpush1.msra.mxu0 0.0
    %2125 = vmatprep.subr.mxu0 0.0
    %2126 = vmatpush1.msra.mxu0 0.0
    %2127 = vmatprep.subr.mxu0 0.0
    %2128 = vmatpush1.msra.mxu0 0.0
    %2129 = vmatprep.subr.mxu0 0.0
    %2130 = vmatpush1.msra.mxu0 0.0
    %2131 = vmatprep.subr.mxu0 0.0
    %2132 = vmatpush1.msra.mxu0 0.0
    %2133 = vmatprep.subr.mxu0 0.0
    %2134 = vmatpush1.msra.mxu0 0.0
    %2135 = vmatprep.subr.mxu0 0.0
    %2136 = vmatpush1.msra.mxu0 0.0
    %2137 = vmatprep.subr.mxu0 0.0
    %2138 = vmatpush1.msra.mxu0 0.0
    %2139 = vmatprep.subr.mxu0 0.0
    %2140 = vmatpush1.msra.mxu0 0.0
    %2141 = vmatprep.subr.mxu0 0.0
    %2142 = vmatpush1.msra.mxu0 0.0
    %2143 = vmatprep.subr.mxu0 0.0
    %2144 = vmatpush1.msra.mxu0 0.0
    %2145 = vmatprep.subr.mxu0 0.0
    %2146 = vmatpush1.msra.mxu0 0.0
    %2147 = vmatprep.subr.mxu0 0.0
    %2148 = vmatpush1.msra.mxu0 0.0
    %2149 = vmatprep.subr.mxu0 0.0
    %2150 = vmatpush1.msra.mxu0 0.0
    %2151 = vmatprep.subr.mxu0 0.0
    %2152 = vmatpush1.msra.mxu0 0.0
    %2153 = vmatprep.subr.mxu0 0.0
    %2154 = vmatpush1.msra.mxu0 0.0
    %2155 = vmatprep.subr.mxu0 0.0
    %2156 = vmatpush1.msra.mxu0 0.0
    %2157 = vmatprep.subr.mxu0 0.0
    %2158 = vmatpush1.msra.mxu0 0.0
    %2159 = vmatprep.subr.mxu0 0.0
    %2160 = vmatpush1.msra.mxu0 0.0
    %2161 = vmatprep.mubr.f32.mxu0 0.0
    %2162 = vmatmul.mubr.f32.gmra.mrb[0].mxu0 %v2095
    %v2163 = vpop.f32.mrb[0].mxu0
    %v2164 = vadd.f32 0.0, %v2163
    %v2165 = vpop.f32.mrb[0].mxu0
    %2166 = vdwg.mxu0
    %v2167 = vld [vmem:[%s1 + $0x138] sm:$0xff]
    %v2168 = vld [vmem:[%s1 + $0x140] sm:$0xff]
    %v2170 = vsel %vm307, %v2088, 0
    %v2173 = vsel %vm307, %v2164, 0
    %2175 = vmatprep.subr.mxu0 0.0
    %2176 = vmatpush1.msra.mxu0 %v2167
    %2177 = vmatprep.subr.mxu0 0.0
    %2178 = vmatpush1.msra.mxu0 %v2168
    %2179 = vmatprep.subr.mxu0 0.0
    %2180 = vmatpush1.msra.mxu0 0.0
    %2181 = vmatprep.subr.mxu0 0.0
    %2182 = vmatpush1.msra.mxu0 0.0
    %2183 = vmatprep.subr.mxu0 0.0
    %2184 = vmatpush1.msra.mxu0 0.0
    %2185 = vmatprep.subr.mxu0 0.0
    %2186 = vmatpush1.msra.mxu0 0.0
    %2187 = vmatprep.subr.mxu0 0.0
    %2188 = vmatpush1.msra.mxu0 0.0
    %2189 = vmatprep.subr.mxu0 0.0
    %2190 = vmatpush1.msra.mxu0 0.0
    %2191 = vmatprep.subr.mxu0 0.0
    %2192 = vmatpush1.msra.mxu0 0.0
    %2193 = vmatprep.subr.mxu0 0.0
    %2194 = vmatpush1.msra.mxu0 0.0
    %2195 = vmatprep.subr.mxu0 0.0
    %2196 = vmatpush1.msra.mxu0 0.0
    %2197 = vmatprep.subr.mxu0 0.0
    %2198 = vmatpush1.msra.mxu0 0.0
    %2199 = vmatprep.subr.mxu0 0.0
    %2200 = vmatpush1.msra.mxu0 0.0
    %2201 = vmatprep.subr.mxu0 0.0
    %2202 = vmatpush1.msra.mxu0 0.0
    %2203 = vmatprep.subr.mxu0 0.0
    %2204 = vmatpush1.msra.mxu0 0.0
    %2205 = vmatprep.subr.mxu0 0.0
    %2206 = vmatpush1.msra.mxu0 0.0
    %2207 = vmatprep.subr.mxu0 0.0
    %2208 = vmatpush1.msra.mxu0 0.0
    %2209 = vmatprep.subr.mxu0 0.0
    %2210 = vmatpush1.msra.mxu0 0.0
    %2211 = vmatprep.subr.mxu0 0.0
    %2212 = vmatpush1.msra.mxu0 0.0
    %2213 = vmatprep.subr.mxu0 0.0
    %2214 = vmatpush1.msra.mxu0 0.0
    %2215 = vmatprep.subr.mxu0 0.0
    %2216 = vmatpush1.msra.mxu0 0.0
    %2217 = vmatprep.subr.mxu0 0.0
    %2218 = vmatpush1.msra.mxu0 0.0
    %2219 = vmatprep.subr.mxu0 0.0
    %2220 = vmatpush1.msra.mxu0 0.0
    %2221 = vmatprep.subr.mxu0 0.0
    %2222 = vmatpush1.msra.mxu0 0.0
    %2223 = vmatprep.subr.mxu0 0.0
    %2224 = vmatpush1.msra.mxu0 0.0
    %2225 = vmatprep.subr.mxu0 0.0
    %2226 = vmatpush1.msra.mxu0 0.0
    %2227 = vmatprep.subr.mxu0 0.0
    %2228 = vmatpush1.msra.mxu0 0.0
    %2229 = vmatprep.subr.mxu0 0.0
    %2230 = vmatpush1.msra.mxu0 0.0
    %2231 = vmatprep.subr.mxu0 0.0
    %2232 = vmatpush1.msra.mxu0 0.0
    %2233 = vmatprep.subr.mxu0 0.0
    %2234 = vmatpush1.msra.mxu0 0.0
    %2235 = vmatprep.subr.mxu0 0.0
    %2236 = vmatpush1.msra.mxu0 0.0
    %2237 = vmatprep.subr.mxu0 0.0
    %2238 = vmatpush1.msra.mxu0 0.0
    %2239 = vmatprep.mubr.f32.mxu0 0.0
    %2240 = vmatmul.mubr.f32.gmra.mrb[0].mxu0 %v2170
    %v2241 = vpop.f32.mrb[0].mxu0
    %v2242 = vadd.f32 0.0, %v2241
    %v2243 = vpop.f32.mrb[0].mxu0
    %2244 = vmatprep.mubr.f32.mxu0 0.0
    %2245 = vmatmul.mubr.f32.gmra.mrb[0].mxu0 %v2173
    %v2246 = vpop.f32.mrb[0].mxu0
    %v2247 = vadd.f32 0.0, %v2246
    %v2248 = vpop.f32.mrb[0].mxu0
    %2249 = vdwg.mxu0
    %v2251 = vsel %vm307, %v1756, 0
    %v2254 = vsel %vm307, %v1832, 0
    %2256 = vmatprep.subr.mxu0 0.0
    %2257 = vmatpush1.msra.mxu0 %v1835
    %2258 = vmatprep.subr.mxu0 0.0
    %2259 = vmatpush1.msra.mxu0 %v1836
    %2260 = vmatprep.subr.mxu0 0.0
    %2261 = vmatpush1.msra.mxu0 0.0
    %2262 = vmatprep.subr.mxu0 0.0
    %2263 = vmatpush1.msra.mxu0 0.0
    %2264 = vmatprep.subr.mxu0 0.0
    %2265 = vmatpush1.msra.mxu0 0.0
    %2266 = vmatprep.subr.mxu0 0.0
    %2267 = vmatpush1.msra.mxu0 0.0
    %2268 = vmatprep.subr.mxu0 0.0
    %2269 = vmatpush1.msra.mxu0 0.0
    %2270 = vmatprep.subr.mxu0 0.0
    %2271 = vmatpush1.msra.mxu0 0.0
    %2272 = vmatprep.subr.mxu0 0.0
    %2273 = vmatpush1.msra.mxu0 0.0
    %2274 = vmatprep.subr.mxu0 0.0
    %2275 = vmatpush1.msra.mxu0 0.0
    %2276 = vmatprep.subr.mxu0 0.0
    %2277 = vmatpush1.msra.mxu0 0.0
    %2278 = vmatprep.subr.mxu0 0.0
    %2279 = vmatpush1.msra.mxu0 0.0
    %2280 = vmatprep.subr.mxu0 0.0
    %2281 = vmatpush1.msra.mxu0 0.0
    %2282 = vmatprep.subr.mxu0 0.0
    %2283 = vmatpush1.msra.mxu0 0.0
    %2284 = vmatprep.subr.mxu0 0.0
    %2285 = vmatpush1.msra.mxu0 0.0
    %2286 = vmatprep.subr.mxu0 0.0
    %2287 = vmatpush1.msra.mxu0 0.0
    %2288 = vmatprep.subr.mxu0 0.0
    %2289 = vmatpush1.msra.mxu0 0.0
    %2290 = vmatprep.subr.mxu0 0.0
    %2291 = vmatpush1.msra.mxu0 0.0
    %2292 = vmatprep.subr.mxu0 0.0
    %2293 = vmatpush1.msra.mxu0 0.0
    %2294 = vmatprep.subr.mxu0 0.0
    %2295 = vmatpush1.msra.mxu0 0.0
    %2296 = vmatprep.subr.mxu0 0.0
    %2297 = vmatpush1.msra.mxu0 0.0
    %2298 = vmatprep.subr.mxu0 0.0
    %2299 = vmatpush1.msra.mxu0 0.0
    %2300 = vmatprep.subr.mxu0 0.0
    %2301 = vmatpush1.msra.mxu0 0.0
    %2302 = vmatprep.subr.mxu0 0.0
    %2303 = vmatpush1.msra.mxu0 0.0
    %2304 = vmatprep.subr.mxu0 0.0
    %2305 = vmatpush1.msra.mxu0 0.0
    %2306 = vmatprep.subr.mxu0 0.0
    %2307 = vmatpush1.msra.mxu0 0.0
    %2308 = vmatprep.subr.mxu0 0.0
    %2309 = vmatpush1.msra.mxu0 0.0
    %2310 = vmatprep.subr.mxu0 0.0
    %2311 = vmatpush1.msra.mxu0 0.0
    %2312 = vmatprep.subr.mxu0 0.0
    %2313 = vmatpush1.msra.mxu0 0.0
    %2314 = vmatprep.subr.mxu0 0.0
    %2315 = vmatpush1.msra.mxu0 0.0
    %2316 = vmatprep.subr.mxu0 0.0
    %2317 = vmatpush1.msra.mxu0 0.0
    %2318 = vmatprep.subr.mxu0 0.0
    %2319 = vmatpush1.msra.mxu0 0.0
    %2320 = vmatprep.mubr.f32.mxu0 0.0
    %2321 = vmatmul.mubr.f32.gmra.mrb[0].mxu0 %v2251
    %v2322 = vpop.f32.mrb[0].mxu0
    %v2323 = vadd.f32 %v2242, %v2322
    %v2324 = vpop.f32.mrb[0].mxu0
    %2325 = vmatprep.mubr.f32.mxu0 0.0
    %2326 = vmatmul.mubr.f32.gmra.mrb[0].mxu0 %v2254
    %v2327 = vpop.f32.mrb[0].mxu0
    %v2328 = vadd.f32 %v2247, %v2327
    %v2329 = vpop.f32.mrb[0].mxu0
    %2330 = vdwg.mxu0
    %v2331 = vlaneseq
    %v2332 = vshrl.u32 %v2331, 7
    %v2333 = vsub.s32 3, %v2332
    %v2334 = vrot.slane %v19, %v2333
    %v2335 = vadd.f32 %v2323, %v2334
    %v2336 = vadd.f32 %v2328, %v2334
    %v2337 = vadd.f32 %v1416, %v2335
    %v2338 = vadd.f32 %v1417, %v2336
    %v2339 = vsel %vm140, %v2337, 0.0
    %2340 = vadd.xlane.f32.xlu0 %v2339
    %v2341 = vpop.xlane.xlu0 %2340
    %v2342 = vsel %vm140, %v2338, 0.0
    %2343 = vadd.xlane.f32.xlu0 %v2342
    %v2344 = vpop.xlane.xlu0 %2343
    %v2345 = vmul.f32 %v2341, %v147
    %v2346 = vmul.f32 %v2344, %v147
    %v2347 = vsub.f32 %v2337, %v2345
    %v2348 = vsub.f32 %v2338, %v2346
    %v2349 = vmul.f32 %v2347, %v2347
    %v2350 = vmul.f32 %v2348, %v2348
    %v2351 = vsel %vm140, %v2349, 0.0
    %2352 = vadd.xlane.f32.xlu0 %v2351
    %v2353 = vpop.xlane.xlu0 %2352
    %v2354 = vsel %vm140, %v2350, 0.0
    %2355 = vadd.xlane.f32.xlu0 %v2354
    %v2356 = vpop.xlane.xlu0 %2355
    %v2357 = vmul.f32 %v2353, %v147
    %v2358 = vmul.f32 %v2356, %v147
    %v2359 = vadd.f32 %v2357, 1e-12
    %v2360 = vadd.f32 %v2358, 1e-12
    %v2361 = vrsqrt.pop %v2359
    %v2362 = vrsqrt.pop %v2360
    %v2363 = vmul.f32 %v2347, %v2361
    %v2364 = vmul.f32 %v2348, %v2362
    %v2365 = vlaneseq
    %v2366 = vshrl.u32 %v2365, 7
    %v2367 = vsub.s32 4, %v2366
    %v2368 = vrot.slane %v19, %v2367
    %v2369 = vmul.f32 %v2363, %v2368
    %v2370 = vmul.f32 %v2364, %v2368
    %v2371 = vlaneseq
    %v2372 = vshrl.u32 %v2371, 7
    %v2373 = vsub.s32 5, %v2372
    %v2374 = vrot.slane %v19, %v2373
    %v2375 = vadd.f32 %v2369, %v2374
    %v2376 = vadd.f32 %v2370, %v2374
    %v2377 = vld [vmem:[%s2 + $0x60] sm:$0xff]
    %v2378 = vld [vmem:[%s2 + $0x68] sm:$0xff]
    %v2379 = vld [vmem:[%s2 + $0x70] sm:$0xff]
    %v2380 = vld [vmem:[%s2 + $0x78] sm:$0xff]
    %v2381 = vlaneseq
    %v2382 = vshrl.u32 %v2381, 7
    %v2383 = vsub.s32 6, %v2382
    %v2384 = vrot.slane %v19, %v2383
    %v2386 = vsel %vm140, %v2375, 0
    %v2389 = vsel %vm140, %v2376, 0
    %2391 = vmatprep.subr.mxu0 0.0
    %2392 = vmatpush1.msra.mxu0 %v2377
    %2393 = vmatprep.subr.mxu0 0.0
    %2394 = vmatpush1.msra.mxu0 %v2378
    %2395 = vmatprep.subr.mxu0 0.0
    %2396 = vmatpush1.msra.mxu0 %v2379
    %2397 = vmatprep.subr.mxu0 0.0
    %2398 = vmatpush1.msra.mxu0 %v2380
    %2399 = vmatprep.subr.mxu0 0.0
    %2400 = vmatpush1.msra.mxu0 0.0
    %2401 = vmatprep.subr.mxu0 0.0
    %2402 = vmatpush1.msra.mxu0 0.0
    %2403 = vmatprep.subr.mxu0 0.0
    %2404 = vmatpush1.msra.mxu0 0.0
    %2405 = vmatprep.subr.mxu0 0.0
    %2406 = vmatpush1.msra.mxu0 0.0
    %2407 = vmatprep.subr.mxu0 0.0
    %2408 = vmatpush1.msra.mxu0 0.0
    %2409 = vmatprep.subr.mxu0 0.0
    %2410 = vmatpush1.msra.mxu0 0.0
    %2411 = vmatprep.subr.mxu0 0.0
    %2412 = vmatpush1.msra.mxu0 0.0
    %2413 = vmatprep.subr.mxu0 0.0
    %2414 = vmatpush1.msra.mxu0 0.0
    %2415 = vmatprep.subr.mxu0 0.0
    %2416 = vmatpush1.msra.mxu0 0.0
    %2417 = vmatprep.subr.mxu0 0.0
    %2418 = vmatpush1.msra.mxu0 0.0
    %2419 = vmatprep.subr.mxu0 0.0
    %2420 = vmatpush1.msra.mxu0 0.0
    %2421 = vmatprep.subr.mxu0 0.0
    %2422 = vmatpush1.msra.mxu0 0.0
    %2423 = vmatprep.subr.mxu0 0.0
    %2424 = vmatpush1.msra.mxu0 0.0
    %2425 = vmatprep.subr.mxu0 0.0
    %2426 = vmatpush1.msra.mxu0 0.0
    %2427 = vmatprep.subr.mxu0 0.0
    %2428 = vmatpush1.msra.mxu0 0.0
    %2429 = vmatprep.subr.mxu0 0.0
    %2430 = vmatpush1.msra.mxu0 0.0
    %2431 = vmatprep.subr.mxu0 0.0
    %2432 = vmatpush1.msra.mxu0 0.0
    %2433 = vmatprep.subr.mxu0 0.0
    %2434 = vmatpush1.msra.mxu0 0.0
    %2435 = vmatprep.subr.mxu0 0.0
    %2436 = vmatpush1.msra.mxu0 0.0
    %2437 = vmatprep.subr.mxu0 0.0
    %2438 = vmatpush1.msra.mxu0 0.0
    %2439 = vmatprep.subr.mxu0 0.0
    %2440 = vmatpush1.msra.mxu0 0.0
    %2441 = vmatprep.subr.mxu0 0.0
    %2442 = vmatpush1.msra.mxu0 0.0
    %2443 = vmatprep.subr.mxu0 0.0
    %2444 = vmatpush1.msra.mxu0 0.0
    %2445 = vmatprep.subr.mxu0 0.0
    %2446 = vmatpush1.msra.mxu0 0.0
    %2447 = vmatprep.subr.mxu0 0.0
    %2448 = vmatpush1.msra.mxu0 0.0
    %2449 = vmatprep.subr.mxu0 0.0
    %2450 = vmatpush1.msra.mxu0 0.0
    %2451 = vmatprep.subr.mxu0 0.0
    %2452 = vmatpush1.msra.mxu0 0.0
    %2453 = vmatprep.subr.mxu0 0.0
    %2454 = vmatpush1.msra.mxu0 0.0
    %2455 = vmatprep.mubr.f32.mxu0 0.0
    %2456 = vmatmul.mubr.f32.gmra.mrb[0].mxu0 %v2386
    %v2457 = vpop.f32.mrb[0].mxu0
    %v2458 = vadd.f32 %v2384, %v2457
    %v2459 = vpop.f32.mrb[0].mxu0
    %2460 = vmatprep.mubr.f32.mxu0 0.0
    %2461 = vmatmul.mubr.f32.gmra.mrb[0].mxu0 %v2389
    %v2462 = vpop.f32.mrb[0].mxu0
    %v2463 = vadd.f32 %v2384, %v2462
    %v2464 = vpop.f32.mrb[0].mxu0
    %2465 = vdwg.mxu0
    %v2466 = vmul.f32 %v2458, 0.5
    %v2467 = vmul.f32 %v2463, 0.5
    %v2468 = vmul.f32 %v2458, 0.044715
    %v2469 = vmul.f32 %v2463, 0.044715
    %v2470 = vmul.f32 %v2468, %v2458
    %v2471 = vmul.f32 %v2469, %v2463
    %v2472 = vmul.f32 %v2470, %v2458
    %v2473 = vmul.f32 %v2471, %v2463
    %v2474 = vadd.f32 %v2458, %v2472
    %v2475 = vadd.f32 %v2463, %v2473
    %v2476 = vmul.f32 %v2474, 0.7978846
    %v2477 = vmul.f32 %v2475, 0.7978846
    %v2478 = vtanh.pop %v2476
    %v2479 = vtanh.pop %v2477
    %v2480 = vadd.f32 %v2478, 1.0
    %v2481 = vadd.f32 %v2479, 1.0
    %v2482 = vmul.f32 %v2466, %v2480
    %v2483 = vmul.f32 %v2467, %v2481
    %v2484 = vld [vmem:[%s1 + $0x148] sm:$0xff]
    %v2485 = vld [vmem:[%s1 + $0x150] sm:$0xff]
    %v2486 = vld [vmem:[%s1 + $0x158] sm:$0xff]
    %v2487 = vld [vmem:[%s1 + $0x160] sm:$0xff]
    %v2488 = vld [vmem:[%s1 + $0x168] sm:$0xff]
    %v2489 = vld [vmem:[%s1 + $0x170] sm:$0xff]
    %v2490 = vld [vmem:[%s1 + $0x178] sm:$0xff]
    %v2491 = vld [vmem:[%s1 + $0x180] sm:$0xff]
    %v2492 = vld [vmem:[%s1 + $0x188] sm:$0xff]
    %v2493 = vld [vmem:[%s1 + $0x190] sm:$0xff]
    %v2494 = vld [vmem:[%s1 + $0x198] sm:$0xff]
    %v2495 = vld [vmem:[%s1 + $0x1a0] sm:$0xff]
    %v2496 = vld [vmem:[%s1 + $0x1a8] sm:$0xff]
    %v2497 = vld [vmem:[%s1 + $0x1b0] sm:$0xff]
    %v2498 = vld [vmem:[%s1 + $0x1b8] sm:$0xff]
    %v2499 = vld [vmem:[%s1 + $0x1c0] sm:$0xff]
    %v2500 = vlaneseq
    %v2501 = vshrl.u32 %v2500, 7
    %v2502 = vsub.s32 7, %v2501
    %v2503 = vrot.slane %v19, %v2502
    %2504 = vmatprep.subr.mxu0 0.0
    %2505 = vmatpush1.msra.mxu0 %v2484
    %2506 = vmatprep.subr.mxu0 0.0
    %2507 = vmatpush1.msra.mxu0 %v2485
    %2508 = vmatprep.subr.mxu0 0.0
    %2509 = vmatpush1.msra.mxu0 %v2486
    %2510 = vmatprep.subr.mxu0 0.0
    %2511 = vmatpush1.msra.mxu0 %v2487
    %2512 = vmatprep.subr.mxu0 0.0
    %2513 = vmatpush1.msra.mxu0 %v2488
    %2514 = vmatprep.subr.mxu0 0.0
    %2515 = vmatpush1.msra.mxu0 %v2489
    %2516 = vmatprep.subr.mxu0 0.0
    %2517 = vmatpush1.msra.mxu0 %v2490
    %2518 = vmatprep.subr.mxu0 0.0
    %2519 = vmatpush1.msra.mxu0 %v2491
    %2520 = vmatprep.subr.mxu0 0.0
    %2521 = vmatpush1.msra.mxu0 %v2492
    %2522 = vmatprep.subr.mxu0 0.0
    %2523 = vmatpush1.msra.mxu0 %v2493
    %2524 = vmatprep.subr.mxu0 0.0
    %2525 = vmatpush1.msra.mxu0 %v2494
    %2526 = vmatprep.subr.mxu0 0.0
    %2527 = vmatpush1.msra.mxu0 %v2495
    %2528 = vmatprep.subr.mxu0 0.0
    %2529 = vmatpush1.msra.mxu0 %v2496
    %2530 = vmatprep.subr.mxu0 0.0
    %2531 = vmatpush1.msra.mxu0 %v2497
    %2532 = vmatprep.subr.mxu0 0.0
    %2533 = vmatpush1.msra.mxu0 %v2498
    %2534 = vmatprep.subr.mxu0 0.0
    %2535 = vmatpush1.msra.mxu0 %v2499
    %2536 = vmatprep.subr.mxu0 0.0
    %2537 = vmatpush1.msra.mxu0 0.0
    %2538 = vmatprep.subr.mxu0 0.0
    %2539 = vmatpush1.msra.mxu0 0.0
    %2540 = vmatprep.subr.mxu0 0.0
    %2541 = vmatpush1.msra.mxu0 0.0
    %2542 = vmatprep.subr.mxu0 0.0
    %2543 = vmatpush1.msra.mxu0 0.0
    %2544 = vmatprep.subr.mxu0 0.0
    %2545 = vmatpush1.msra.mxu0 0.0
    %2546 = vmatprep.subr.mxu0 0.0
    %2547 = vmatpush1.msra.mxu0 0.0
    %2548 = vmatprep.subr.mxu0 0.0
    %2549 = vmatpush1.msra.mxu0 0.0
    %2550 = vmatprep.subr.mxu0 0.0
    %2551 = vmatpush1.msra.mxu0 0.0
    %2552 = vmatprep.subr.mxu0 0.0
    %2553 = vmatpush1.msra.mxu0 0.0
    %2554 = vmatprep.subr.mxu0 0.0
    %2555 = vmatpush1.msra.mxu0 0.0
    %2556 = vmatprep.subr.mxu0 0.0
    %2557 = vmatpush1.msra.mxu0 0.0
    %2558 = vmatprep.subr.mxu0 0.0
    %2559 = vmatpush1.msra.mxu0 0.0
    %2560 = vmatprep.subr.mxu0 0.0
    %2561 = vmatpush1.msra.mxu0 0.0
    %2562 = vmatprep.subr.mxu0 0.0
    %2563 = vmatpush1.msra.mxu0 0.0
    %2564 = vmatprep.subr.mxu0 0.0
    %2565 = vmatpush1.msra.mxu0 0.0
    %2566 = vmatprep.subr.mxu0 0.0
    %2567 = vmatpush1.msra.mxu0 0.0
    %2568 = vmatprep.mubr.f32.mxu0 0.0
    %2569 = vmatmul.mubr.f32.gmra.mrb[0].mxu0 %v2482
    %v2570 = vpop.f32.mrb[0].mxu0
    %v2571 = vadd.f32 %v2503, %v2570
    %v2572 = vpop.f32.mrb[0].mxu0
    %2573 = vmatprep.mubr.f32.mxu0 0.0
    %2574 = vmatmul.mubr.f32.gmra.mrb[0].mxu0 %v2483
    %v2575 = vpop.f32.mrb[0].mxu0
    %v2576 = vadd.f32 %v2503, %v2575
    %v2577 = vpop.f32.mrb[0].mxu0
    %2578 = vdwg.mxu0
    %v2579 = vadd.f32 %v2375, %v2571
    %v2580 = vadd.f32 %v2376, %v2576
    %v2581 = vsel %vm140, %v2579, 0.0
    %2582 = vadd.xlane.f32.xlu0 %v2581
    %v2583 = vpop.xlane.xlu0 %2582
    %v2584 = vsel %vm140, %v2580, 0.0
    %2585 = vadd.xlane.f32.xlu0 %v2584
    %v2586 = vpop.xlane.xlu0 %2585
    %v2587 = vmul.f32 %v2583, %v147
    %v2588 = vmul.f32 %v2586, %v147
    %v2589 = vsub.f32 %v2579, %v2587
    %v2590 = vsub.f32 %v2580, %v2588
    %v2591 = vmul.f32 %v2589, %v2589
    %v2592 = vmul.f32 %v2590, %v2590
    %v2593 = vsel %vm140, %v2591, 0.0
    %2594 = vadd.xlane.f32.xlu0 %v2593
    %v2595 = vpop.xlane.xlu0 %2594
    %v2596 = vsel %vm140, %v2592, 0.0
    %2597 = vadd.xlane.f32.xlu0 %v2596
    %v2598 = vpop.xlane.xlu0 %2597
    %v2599 = vmul.f32 %v2595, %v147
    %v2600 = vmul.f32 %v2598, %v147
    %v2601 = vadd.f32 %v2599, 1e-12
    %v2602 = vadd.f32 %v2600, 1e-12
    %v2603 = vrsqrt.pop %v2601
    %v2604 = vrsqrt.pop %v2602
    %v2605 = vmul.f32 %v2589, %v2603
    %v2606 = vmul.f32 %v2590, %v2604
    %v2607 = vlaneseq
    %v2608 = vshrl.u32 %v2607, 7
    %v2609 = vsub.s32 0, %v2608
    %v2610 = vrot.slane %v20, %v2609
    %v2611 = vmul.f32 %v2605, %v2610
    %v2612 = vmul.f32 %v2606, %v2610
    %v2613 = vlaneseq
    %v2614 = vshrl.u32 %v2613, 7
    %v2615 = vsub.s32 1, %v2614
    %v2616 = vrot.slane %v20, %v2615
    %v2617 = vadd.f32 %v2611, %v2616
    %v2618 = vadd.f32 %v2612, %v2616
    %v2619 = vld [vmem:[%s1 + $0x1c8] sm:$0xff]
    %v2620 = vld [vmem:[%s1 + $0x1d0] sm:$0xff]
    %v2621 = vld [vmem:[%s1 + $0x1d8] sm:$0xff]
    %v2622 = vld [vmem:[%s1 + $0x1e0] sm:$0xff]
    %v2623 = vlaneseq
    %v2624 = vshrl.u32 %v2623, 7
    %v2625 = vsub.s32 2, %v2624
    %v2626 = vrot.slane %v20, %v2625
    %v2628 = vsel %vm140, %v2617, 0
    %v2631 = vsel %vm140, %v2618, 0
    %2633 = vmatprep.subr.mxu0 0.0
    %2634 = vmatpush1.msra.mxu0 %v2619
    %2635 = vmatprep.subr.mxu0 0.0
    %2636 = vmatpush1.msra.mxu0 %v2620
    %2637 = vmatprep.subr.mxu0 0.0
    %2638 = vmatpush1.msra.mxu0 %v2621
    %2639 = vmatprep.subr.mxu0 0.0
    %2640 = vmatpush1.msra.mxu0 %v2622
    %2641 = vmatprep.subr.mxu0 0.0
    %2642 = vmatpush1.msra.mxu0 0.0
    %2643 = vmatprep.subr.mxu0 0.0
    %2644 = vmatpush1.msra.mxu0 0.0
    %2645 = vmatprep.subr.mxu0 0.0
    %2646 = vmatpush1.msra.mxu0 0.0
    %2647 = vmatprep.subr.mxu0 0.0
    %2648 = vmatpush1.msra.mxu0 0.0
    %2649 = vmatprep.subr.mxu0 0.0
    %2650 = vmatpush1.msra.mxu0 0.0
    %2651 = vmatprep.subr.mxu0 0.0
    %2652 = vmatpush1.msra.mxu0 0.0
    %2653 = vmatprep.subr.mxu0 0.0
    %2654 = vmatpush1.msra.mxu0 0.0
    %2655 = vmatprep.subr.mxu0 0.0
    %2656 = vmatpush1.msra.mxu0 0.0
    %2657 = vmatprep.subr.mxu0 0.0
    %2658 = vmatpush1.msra.mxu0 0.0
    %2659 = vmatprep.subr.mxu0 0.0
    %2660 = vmatpush1.msra.mxu0 0.0
    %2661 = vmatprep.subr.mxu0 0.0
    %2662 = vmatpush1.msra.mxu0 0.0
    %2663 = vmatprep.subr.mxu0 0.0
    %2664 = vmatpush1.msra.mxu0 0.0
    %2665 = vmatprep.subr.mxu0 0.0
    %2666 = vmatpush1.msra.mxu0 0.0
    %2667 = vmatprep.subr.mxu0 0.0
    %2668 = vmatpush1.msra.mxu0 0.0
    %2669 = vmatprep.subr.mxu0 0.0
    %2670 = vmatpush1.msra.mxu0 0.0
    %2671 = vmatprep.subr.mxu0 0.0
    %2672 = vmatpush1.msra.mxu0 0.0
    %2673 = vmatprep.subr.mxu0 0.0
    %2674 = vmatpush1.msra.mxu0 0.0
    %2675 = vmatprep.subr.mxu0 0.0
    %2676 = vmatpush1.msra.mxu0 0.0
    %2677 = vmatprep.subr.mxu0 0.0
    %2678 = vmatpush1.msra.mxu0 0.0
    %2679 = vmatprep.subr.mxu0 0.0
    %2680 = vmatpush1.msra.mxu0 0.0
    %2681 = vmatprep.subr.mxu0 0.0
    %2682 = vmatpush1.msra.mxu0 0.0
    %2683 = vmatprep.subr.mxu0 0.0
    %2684 = vmatpush1.msra.mxu0 0.0
    %2685 = vmatprep.subr.mxu0 0.0
    %2686 = vmatpush1.msra.mxu0 0.0
    %2687 = vmatprep.subr.mxu0 0.0
    %2688 = vmatpush1.msra.mxu0 0.0
    %2689 = vmatprep.subr.mxu0 0.0
    %2690 = vmatpush1.msra.mxu0 0.0
    %2691 = vmatprep.subr.mxu0 0.0
    %2692 = vmatpush1.msra.mxu0 0.0
    %2693 = vmatprep.subr.mxu0 0.0
    %2694 = vmatpush1.msra.mxu0 0.0
    %2695 = vmatprep.subr.mxu0 0.0
    %2696 = vmatpush1.msra.mxu0 0.0
    %2697 = vmatprep.mubr.f32.mxu0 0.0
    %2698 = vmatmul.mubr.f32.gmra.mrb[0].mxu0 %v2628
    %v2699 = vpop.f32.mrb[0].mxu0
    %v2700 = vadd.f32 %v2626, %v2699
    %v2701 = vpop.f32.mrb[0].mxu0
    %2702 = vmatprep.mubr.f32.mxu0 0.0
    %2703 = vmatmul.mubr.f32.gmra.mrb[0].mxu0 %v2631
    %v2704 = vpop.f32.mrb[0].mxu0
    %v2705 = vadd.f32 %v2626, %v2704
    %v2706 = vpop.f32.mrb[0].mxu0
    %2707 = vdwg.mxu0
    %v2708 = vtanh.pop %v2700
    %v2709 = vtanh.pop %v2705
    %v2710 = vld [vmem:[%s2 + $0x80] sm:$0xff]
    %v2711 = vld [vmem:[%s2 + $0x88] sm:$0xff]
    %v2712 = vld [vmem:[%s2 + $0x90] sm:$0xff]
    %v2713 = vld [vmem:[%s2 + $0x98] sm:$0xff]
    %v2714 = vlaneseq
    %v2715 = vshrl.u32 %v2714, 7
    %v2716 = vsub.s32 3, %v2715
    %v2717 = vrot.slane %v20, %v2716
    %v2719 = vsel %vm140, %v2708, 0
    %v2722 = vsel %vm140, %v2709, 0
    %2724 = vmatprep.subr.mxu0 0.0
    %2725 = vmatpush1.msra.mxu0 %v2710
    %2726 = vmatprep.subr.mxu0 0.0
    %2727 = vmatpush1.msra.mxu0 %v2711
    %2728 = vmatprep.subr.mxu0 0.0
    %2729 = vmatpush1.msra.mxu0 %v2712
    %2730 = vmatprep.subr.mxu0 0.0
    %2731 = vmatpush1.msra.mxu0 %v2713
    %2732 = vmatprep.subr.mxu0 0.0
    %2733 = vmatpush1.msra.mxu0 0.0
    %2734 = vmatprep.subr.mxu0 0.0
    %2735 = vmatpush1.msra.mxu0 0.0
    %2736 = vmatprep.subr.mxu0 0.0
    %2737 = vmatpush1.msra.mxu0 0.0
    %2738 = vmatprep.subr.mxu0 0.0
    %2739 = vmatpush1.msra.mxu0 0.0
    %2740 = vmatprep.subr.mxu0 0.0
    %2741 = vmatpush1.msra.mxu0 0.0
    %2742 = vmatprep.subr.mxu0 0.0
    %2743 = vmatpush1.msra.mxu0 0.0
    %2744 = vmatprep.subr.mxu0 0.0
    %2745 = vmatpush1.msra.mxu0 0.0
    %2746 = vmatprep.subr.mxu0 0.0
    %2747 = vmatpush1.msra.mxu0 0.0
    %2748 = vmatprep.subr.mxu0 0.0
    %2749 = vmatpush1.msra.mxu0 0.0
    %2750 = vmatprep.subr.mxu0 0.0
    %2751 = vmatpush1.msra.mxu0 0.0
    %2752 = vmatprep.subr.mxu0 0.0
    %2753 = vmatpush1.msra.mxu0 0.0
    %2754 = vmatprep.subr.mxu0 0.0
    %2755 = vmatpush1.msra.mxu0 0.0
    %2756 = vmatprep.subr.mxu0 0.0
    %2757 = vmatpush1.msra.mxu0 0.0
    %2758 = vmatprep.subr.mxu0 0.0
    %2759 = vmatpush1.msra.mxu0 0.0
    %2760 = vmatprep.subr.mxu0 0.0
    %2761 = vmatpush1.msra.mxu0 0.0
    %2762 = vmatprep.subr.mxu0 0.0
    %2763 = vmatpush1.msra.mxu0 0.0
    %2764 = vmatprep.subr.mxu0 0.0
    %2765 = vmatpush1.msra.mxu0 0.0
    %2766 = vmatprep.subr.mxu0 0.0
    %2767 = vmatpush1.msra.mxu0 0.0
    %2768 = vmatprep.subr.mxu0 0.0
    %2769 = vmatpush1.msra.mxu0 0.0
    %2770 = vmatprep.subr.mxu0 0.0
    %2771 = vmatpush1.msra.mxu0 0.0
    %2772 = vmatprep.subr.mxu0 0.0
    %2773 = vmatpush1.msra.mxu0 0.0
    %2774 = vmatprep.subr.mxu0 0.0
    %2775 = vmatpush1.msra.mxu0 0.0
    %2776 = vmatprep.subr.mxu0 0.0
    %2777 = vmatpush1.msra.mxu0 0.0
    %2778 = vmatprep.subr.mxu0 0.0
    %2779 = vmatpush1.msra.mxu0 0.0
    %2780 = vmatprep.subr.mxu0 0.0
    %2781 = vmatpush1.msra.mxu0 0.0
    %2782 = vmatprep.subr.mxu0 0.0
    %2783 = vmatpush1.msra.mxu0 0.0
    %2784 = vmatprep.subr.mxu0 0.0
    %2785 = vmatpush1.msra.mxu0 0.0
    %2786 = vmatprep.subr.mxu0 0.0
    %2787 = vmatpush1.msra.mxu0 0.0
    %2788 = vmatprep.mubr.f32.mxu0 0.0
    %2789 = vmatmul.mubr.f32.gmra.mrb[0].mxu0 %v2719
    %v2790 = vpop.f32.mrb[0].mxu0
    %v2791 = vadd.f32 %v2717, %v2790
    %v2792 = vpop.f32.mrb[0].mxu0
    %2793 = vmatprep.mubr.f32.mxu0 0.0
    %2794 = vmatmul.mubr.f32.gmra.mrb[0].mxu0 %v2722
    %v2795 = vpop.f32.mrb[0].mxu0
    %v2796 = vadd.f32 %v2717, %v2795
    %v2797 = vpop.f32.mrb[0].mxu0
    %2798 = vdwg.mxu0
    %2799 = vmax.xlane.f32.xlu0 %v2791
    %v2800 = vpop.xlane.xlu0 %2799
    %2801 = vmax.xlane.f32.xlu0 %v2796
    %v2802 = vpop.xlane.xlu0 %2801
    %v2803 = vsub.f32 %v2791, %v2800
    %v2804 = vsub.f32 %v2796, %v2802
    %v2805 = vmul.f32 %v2803, 1.442695
    %v2806 = vpow.pop %v2805
    %v2807 = vmul.f32 %v2804, 1.442695
    %v2808 = vpow.pop %v2807
    %2809 = vadd.xlane.f32.xlu0 %v2806
    %v2810 = vpop.xlane.xlu0 %2809
    %2811 = vadd.xlane.f32.xlu0 %v2808
    %v2812 = vpop.xlane.xlu0 %2811
    %v2813 = vrcp.pop %v2810
    %v2814 = vrcp.pop %v2812
    %v2815 = vmul.f32 %v2806, %v2813
    %v2816 = vmul.f32 %v2808, %v2814
    %2817 = vst [vmem:[#allocation2] sm:$0xff] %v2815
    %2818 = vst [vmem:[#allocation2 + $0x8] sm:$0xff] %v2816
    // Predicated region
    $region18: #{tpu_custom_call.1} parent=1 // pred_check
      _
    $region19: #{tpu_custom_call.1} parent=1 // pred_check_branch
      %2820 = sbr.rel (0) target = $region21
    $region20: #{tpu_custom_call.1} parent=1 // pred_region
      %s2822 = ssub.s32 256, 256
      %2823 = vsyncadd [#allocation3], %s2822
      %s2824 = sshll.u32 [#allocation2], 4
      %s2825 = int_to_ptr.vmem [resolvable:$true] %s2824
      %2830 = dma.vmem_to_hbm [thread:$0]  %s2825, 256, %s4, [#allocation3], 128, 128, 8
    $region21: #{tpu_custom_call.1} parent=1 // pred_fallthru
      _
    // Predicated region
    $region22: #{tpu_custom_call.1} parent=1 // pred_check
      _
    $region23: #{tpu_custom_call.1} parent=1 // pred_check_branch
      %2832 = sbr.rel (0) target = $region25
    $region24: #{tpu_custom_call.1} parent=1 // pred_region
      %2833 = dma.done [#allocation3], 256
    $region25: #{tpu_custom_call.1} parent=1 // pred_fallthru
      _
    %2834 = vsyncpa [#allocation3], 1

</llo_original>
